<compile_context>
chip_gen: v7x
topology: tpu7x:2x2x1
jax: 0.10.0
libtpu: 0.0.40
codegen_flags: <defaults>
</compile_context>

<pallas_src>
import math
from functools import partial

import jax
import jax.numpy as jnp
from jax.experimental import pallas as pl
from jax.experimental.pallas import tpu as pltpu

# Geometry fixed by the PyTorch module (view(1,1,5,256) / view(1,5,256)).
H_IMG, W_IMG = 5, 256
NPIX = H_IMG * W_IMG            # 1280 lanes, exact multiple of 128
T_SEQ = 5
F_DIM = 256
H_DIM = 256
G_DIM = 4 * H_DIM
EPS_BN = 1e-5

assert W_IMG & (W_IMG - 1) == 0  # power-of-two width -> cheap column masks


def _pad_to8(c):
    return max(8, -(-c // 8) * 8)


# ----------------------------------------------------------------------------
# Fused kernel: [optional SepConv branches] + 4 LSTM layers.
# grid=(4,) = LSTM layer index ("arbitrary": layers chained via VMEM scratch).
# wih/whh are BlockSpec-indexed per layer -> their bf16 DMA pipelines with the
# previous layer's recurrence.
# ----------------------------------------------------------------------------
def _astro_kernel(*refs, B, with_conv):
    if with_conv:
        (x_ref,
         w1, g1, b1, w2, g2, b2, w3, g3, b3, w4, g4, b4,
         wih_ref, whh_ref, pr_ref, pr1_ref, seq_ref) = refs
        conv_halves = ((w1, g1, b1), (w2, g2, b2), (w3, g3, b3), (w4, g4, b4))
    else:
        (x_ref, wih_ref, whh_ref, pr_ref, seq_ref) = refs
        pr1_ref = None
        conv_halves = None

    l = pl.program_id(0)

    # ------- step 0 only: build the LSTM input sequence in seq_ref ----------
    @pl.when(l == 0)
    def _init_seq():
        if with_conv:
            x = x_ref[...]                                   # (1, NPIX) f32
            # Stacked-channel input: row 0 = trans1 ch0, row 1 = trans2 ch0.
            rowi = jax.lax.broadcasted_iota(jnp.int32, (8, NPIX), 0)
            h = jnp.where(rowi < 2, jnp.broadcast_to(x, (8, NPIX)), 0.0)

            # Halo masks, hoisted once for all 4 SepConv halves.
            p = jax.lax.broadcasted_iota(jnp.int32, (1, NPIX), 1)
            col = jnp.bitwise_and(p, W_IMG - 1)
            m_left = col >= 1
            m_right = col <= W_IMG - 2
            m_top = p >= W_IMG
            m_bot = p < (H_IMG - 1) * W_IMG

            def half(xc, w_ref, gm_ref, bt_ref):
                # Column taps: only 2 expensive +-1 lane rolls, column masks
                # folded in so the row-shifted copies inherit them for free.
                xl = jnp.where(m_left, pltpu.roll(xc, shift=1, axis=1), 0.0)
                xr = jnp.where(m_right,
                               pltpu.roll(xc, shift=NPIX - 1, axis=1), 0.0)
                xlcr = jnp.concatenate([xl, xc, xr], axis=0)  # (3*cip, NPIX)
                # Row taps: +-W_IMG rolls are multiples of the 128-lane vreg.
                xt = jnp.where(m_top,
                               pltpu.roll(xlcr, shift=W_IMG, axis=1), 0.0)
                xb = jnp.where(m_bot,
                               pltpu.roll(xlcr, shift=NPIX - W_IMG, axis=1), 0.0)
                # 3 MXU matmuls per half (dx taps stacked on contraction axis),
                # block-diagonal over the two trans branches.
                acc = (jnp.dot(w_ref[0], xt, preferred_element_type=jnp.float32)
                       + jnp.dot(w_ref[1], xlcr, preferred_element_type=jnp.float32)
                       + jnp.dot(w_ref[2], xb, preferred_element_type=jnp.float32))
                # Training-mode BatchNorm (N=1, biased var) per channel.
                mean = jnp.mean(acc, axis=-1, keepdims=True)
                cen = acc - mean
                var = jnp.mean(cen * cen, axis=-1, keepdims=True)
                y = cen * jax.lax.rsqrt(var + EPS_BN)
                y = gm_ref[...] * y + bt_ref[...]
                return jnp.maximum(y, 0.0)

            for (w_ref, gm_ref, bt_ref) in conv_halves:
                h = half(h, w_ref, gm_ref, bt_ref)
            # h: (8, NPIX); rows 0/1 hold the trans1/trans2 outputs.  Re-pack
            # into the (T*B, F) time-major layout the LSTM consumes directly.
            for t in range(T_SEQ):
                seq_ref[t * B:(t + 1) * B, :] = h[0:B, t * W_IMG:(t + 1) * W_IMG]
        else:
            seq_ref[...] = x_ref[...]                        # already (T, F)

    # ------- one LSTM layer per grid step (bias-free, zero h0/c0) -----------
    wih = wih_ref[0]                                         # (F, 4H) bf16
    whh = whh_ref[0]                                         # (H, 4H) bf16
    seq = seq_ref[...]                                       # (T*B, F) f32
    # Input projection hoisted out of the recurrence: one MXU call per layer.
    xp = jnp.dot(seq.astype(jnp.bfloat16), wih,
                 preferred_element_type=jnp.float32)         # (T*B, 4H)
    h_st = jnp.zeros((B, H_DIM), jnp.float32)
    c_st = jnp.zeros((B, H_DIM), jnp.float32)
    hs = []
    for t in range(T_SEQ):
        gates = xp[t * B:(t + 1) * B, :] + jnp.dot(
            h_st.astype(jnp.bfloat16), whh, preferred_element_type=jnp.float32)
        i_g = jax.nn.sigmoid(gates[:, 0:H_DIM])
        f_g = jax.nn.sigmoid(gates[:, H_DIM:2 * H_DIM])
        g_g = jnp.tanh(gates[:, 2 * H_DIM:3 * H_DIM])
        o_g = jax.nn.sigmoid(gates[:, 3 * H_DIM:4 * H_DIM])
        c_st = f_g * c_st + i_g * g_g
        h_st = o_g * jnp.tanh(c_st)
        hs.append(h_st)
    hseq = jnp.concatenate(hs, axis=0)                       # (T*B, H) time-major

    def batch_rows(b):                                       # (T, H) for batch b
        return jnp.concatenate([hs[t][b:b + 1, :] for t in range(T_SEQ)], axis=0)

    @pl.when(jnp.logical_or(l == 0, l == 2))
    def _store_raw():                   # raw output feeds the next LSTM layer
        seq_ref[...] = hseq

    @pl.when(l == 1)
    def _store_lstm1_out():             # sigmoid(lstm1) -> pr1 and lstm2 input
        seq_ref[...] = jax.nn.sigmoid(hseq)
        if with_conv:
            for b in range(B):
                pr1_ref[b, :, :] = jax.nn.sigmoid(batch_rows(b))

    @pl.when(l == 3)
    def _store_lstm2_out():             # sigmoid(lstm2) -> pr
        if with_conv:
            for b in range(B):
                pr_ref[b, :, :] = jax.nn.sigmoid(batch_rows(b))
        else:
            pr_ref[...] = jax.nn.sigmoid(hseq)


def _layer_specs():
    return [pl.BlockSpec((1, F_DIM, G_DIM), lambda l: (l, 0, 0)),
            pl.BlockSpec((1, H_DIM, G_DIM), lambda l: (l, 0, 0))]


def lstm_only_call(x_tf, wih, whh):
    """i == 0 path: 4 fused LSTM layers, B=1, layer-pipelined bf16 weights."""
    return pl.pallas_call(
        partial(_astro_kernel, B=1, with_conv=False),
        grid=(4,),
        out_shape=jax.ShapeDtypeStruct((T_SEQ, H_DIM), jnp.float32),
        in_specs=[pl.BlockSpec((T_SEQ, F_DIM), lambda l: (0, 0))] + _layer_specs(),
        out_specs=pl.BlockSpec((T_SEQ, H_DIM), lambda l: (0, 0)),
        scratch_shapes=[pltpu.VMEM((T_SEQ, F_DIM), jnp.float32)],
        compiler_params=pltpu.CompilerParams(
            dimension_semantics=("arbitrary",),
            vmem_limit_bytes=32 * 1024 * 1024),
    )(x_tf, wih, whh)


def conv_lstm_call(x_row, conv_args, wih, whh):
    """i != 0 path: both SepConv branches + 4 LSTM layers in ONE pallas_call."""
    in_specs = [pl.BlockSpec((1, NPIX), lambda l: (0, 0))]
    for arr in conv_args:
        in_specs.append(pl.BlockSpec(arr.shape, lambda l, n=arr.ndim: (0,) * n))
    in_specs += _layer_specs()
    out_sd = jax.ShapeDtypeStruct((2, T_SEQ, H_DIM), jnp.float32)
    return pl.pallas_call(
        partial(_astro_kernel, B=2, with_conv=True),
        grid=(4,),
        out_shape=(out_sd, out_sd),
        in_specs=in_specs,
        out_specs=(pl.BlockSpec((2, T_SEQ, H_DIM), lambda l: (0, 0, 0)),
                   pl.BlockSpec((2, T_SEQ, H_DIM), lambda l: (0, 0, 0))),
        scratch_shapes=[pltpu.VMEM((T_SEQ * 2, F_DIM), jnp.float32)],
        compiler_params=pltpu.CompilerParams(
            dimension_semantics=("arbitrary",),
            vmem_limit_bytes=32 * 1024 * 1024),
    )(x_row, *conv_args, wih, whh)


# ----------------------------------------------------------------------------
# Astrocyte_Network_3 forward (i selects the branch, as in the PyTorch code).
# ----------------------------------------------------------------------------
def astrocyte_forward(weight_avg, i, packed):
    if i == 0:
        x = weight_avg.reshape(T_SEQ, F_DIM)
        return lstm_only_call(x, packed["wih"], packed["whh"])      # (5, 256)
    x_row = weight_avg.reshape(1, NPIX)
    pr, pr1 = conv_lstm_call(x_row, packed["conv"], packed["wih"], packed["whh"])
    return [pr, pr1]                                                # (2,5,256) each


# ----------------------------------------------------------------------------
# Deterministic synthetic parameters (PyTorch layouts) + kernel-ready packing.
# ----------------------------------------------------------------------------
def init_params(key, input_size=256, hidden_size=256, num_layers=2, expansion=1):
    keys = iter(jax.random.split(key, 256))

    def u(shape, scale):
        return jax.random.uniform(next(keys), shape, jnp.float32, -scale, scale)

    Hh = hidden_size
    k = 1.0 / math.sqrt(Hh)

    def lstm_params():
        layers = []
        for layer in range(num_layers):
            in_sz = input_size if layer == 0 else Hh
            layers.append((u((4 * Hh, in_sz), k),     # weight_ih (4H, in): i,f,g,o
                           u((4 * Hh, Hh), k)))       # weight_hh (4H, H)
        return layers

    def sepconv_params(cin, cout):
        return dict(
            dw1=u((cin, 3, 3), 1.0 / 3.0),
            pw1=u((cin, cin), 1.0 / math.sqrt(cin)),
            g1=1.0 + u((cin,), 0.1), b1=u((cin,), 0.1),
            dw2=u((cin, 3, 3), 1.0 / 3.0),
            pw2=u((cout, cin), 1.0 / math.sqrt(cin)),
            g2=1.0 + u((cout,), 0.1), b2=u((cout,), 0.1),
        )

    c1, c16 = 1 * expansion, 16 * expansion
    return dict(
        lstm1=lstm_params(), lstm2=lstm_params(),
        trans1=[sepconv_params(c1, c16), sepconv_params(c16, c1)],
        trans2=[sepconv_params(c1, c16), sepconv_params(c16, c1)],
    )


def pack_conv_params(params):
    """Fuse dw3x3*pw1x1 into per-dy (cop, 3*cip) matrices; block-diagonally
    stack trans1/trans2 so both branches share one set of matmuls; pad
    channel dims to multiples of 8 (padded channels provably stay zero)."""

    def halves_of(branch):
        s1, s2 = branch
        return [(s1["dw1"], s1["pw1"], s1["g1"], s1["b1"]),
                (s1["dw2"], s1["pw2"], s1["g2"], s1["b2"]),
                (s2["dw1"], s2["pw1"], s2["g1"], s2["b1"]),
                (s2["dw2"], s2["pw2"], s2["g2"], s2["b2"])]

    def w9_of(dw, pw):
        cout, cin = pw.shape
        dwk = jnp.transpose(dw.reshape(cin, 9))           # (9, cin), k = dy*3+dx
        return pw[None, :, :] * dwk[:, None, :]           # (9, cout, cin)

    b1 = halves_of(params["trans1"])
    b2 = halves_of(params["trans2"])
    args = []
    for h1, h2 in zip(b1, b2):
        cout, cin = h1[1].shape
        cip_s, cop_s = _pad_to8(2 * cin), _pad_to8(2 * cout)
        w9 = jnp.zeros((9, cop_s, cip_s), jnp.float32)
        w9 = w9.at[:, 0:cout, 0:cin].set(w9_of(h1[0], h1[1]))
        w9 = w9.at[:, cout:2 * cout, cin:2 * cin].set(w9_of(h2[0], h2[1]))
        # Concat the 3 dx taps along the contraction axis, per dy.
        w3 = jnp.stack(
            [jnp.concatenate([w9[dy * 3 + dx] for dx in range(3)], axis=1)
             for dy in range(3)], axis=0)                 # (3, cop_s, 3*cip_s)
        gm = jnp.zeros((cop_s, 1), jnp.float32)
        gm = gm.at[0:cout, 0].set(h1[2]).at[cout:2 * cout, 0].set(h2[2])
        bt = jnp.zeros((cop_s, 1), jnp.float32)
        bt = bt.at[0:cout, 0].set(h1[3]).at[cout:2 * cout, 0].set(h2[3])
        args.extend([w3, gm, bt])
    return tuple(args)


def pack_lstm_params(params):
    """Transpose to (in, 4H)/(H, 4H), stack the 4 layers, cast to bf16."""
    layers = params["lstm1"] + params["lstm2"]
    wih = jnp.stack([jnp.transpose(w) for (w, _) in layers], 0).astype(jnp.bfloat16)
    whh = jnp.stack([jnp.transpose(w) for (_, w) in layers], 0).astype(jnp.bfloat16)
    return wih, whh


# ----------------------------------------------------------------------------
# Pure-JAX f32 reference (LSTM weights bf16-rounded to isolate kernel rounding)
# ----------------------------------------------------------------------------
def _bf16r(w):
    return w.astype(jnp.bfloat16).astype(jnp.float32)


def _ref_sepconv_half(x, dw, pw, g, b):
    xp = jnp.pad(x, ((0, 0), (1, 1), (1, 1)))
    dwc = jnp.zeros_like(x)
    for dy in range(3):
        for dx in range(3):
            dwc = dwc + dw[:, dy, dx][:, None, None] * xp[:, dy:dy + H_IMG, dx:dx + W_IMG]
    y = jnp.einsum("oc,chw->ohw", pw, dwc)
    mean = jnp.mean(y, axis=(1, 2), keepdims=True)
    var = jnp.mean((y - mean) ** 2, axis=(1, 2), keepdims=True)
    y = (y - mean) * jax.lax.rsqrt(var + EPS_BN)
    y = g[:, None, None] * y + b[:, None, None]
    return jnp.maximum(y, 0.0)


def _ref_sepconv(x, p):
    y = _ref_sepconv_half(x, p["dw1"], p["pw1"], p["g1"], p["b1"])
    return _ref_sepconv_half(y, p["dw2"], p["pw2"], p["g2"], p["b2"])


def _ref_lstm2_sig(x, layers):
    seq = x
    for (w_ih, w_hh) in layers:
        wih, whh = _bf16r(w_ih), _bf16r(w_hh)
        Bn = seq.shape[0]
        h = jnp.zeros((Bn, H_DIM), jnp.float32)
        c = jnp.zeros((Bn, H_DIM), jnp.float32)
        outs = []
        for t in range(T_SEQ):
            gt = seq[:, t, :] @ wih.T + h @ whh.T
            i_g = jax.nn.sigmoid(gt[:, 0:H_DIM])
            f_g = jax.nn.sigmoid(gt[:, H_DIM:2 * H_DIM])
            g_g = jnp.tanh(gt[:, 2 * H_DIM:3 * H_DIM])
            o_g = jax.nn.sigmoid(gt[:, 3 * H_DIM:4 * H_DIM])
            c = f_g * c + i_g * g_g
            h = o_g * jnp.tanh(c)
            outs.append(h)
        seq = jnp.stack(outs, axis=1)
    return jax.nn.sigmoid(seq)


def _ref_forward(weight_avg, i, params):
    if i == 0:
        x = weight_avg.reshape(1, T_SEQ, F_DIM)
        pr1 = _ref_lstm2_sig(x, params["lstm1"])
        pr = _ref_lstm2_sig(pr1, params["lstm2"])
        return pr.reshape(-1, F_DIM)
    x = weight_avg.reshape(1, H_IMG, W_IMG)
    wa1 = _ref_sepconv(_ref_sepconv(x, params["trans1"][0]), params["trans1"][1])
    wa2 = _ref_sepconv(_ref_sepconv(x, params["trans2"][0]), params["trans2"][1])
    wa = jnp.concatenate([wa1.reshape(1, T_SEQ, F_DIM),
                          wa2.reshape(1, T_SEQ, F_DIM)], axis=0)
    pr1 = _ref_lstm2_sig(wa, params["lstm1"])
    pr = _ref_lstm2_sig(pr1, params["lstm2"])
    return pr, pr1


if __name__ == "__main__":
    key = jax.random.PRNGKey(0)
    kp, kx = jax.random.split(key)
    params = init_params(kp)
    wih, whh = pack_lstm_params(params)
    packed = dict(conv=pack_conv_params(params), wih=wih, whh=whh)

    # weight_avg holds 5*256 elements (viewed as (1,5,256) / (1,1,5,256)).
    weight_avg = jax.random.normal(kx, (T_SEQ, F_DIM), jnp.float32)

    # Branch i == 0: two stacked 2-layer LSTMs only.
    f0 = jax.jit(lambda w: astrocyte_forward(w, 0, packed))
    out0 = jax.block_until_ready(f0(weight_avg))
    assert out0.shape == (T_SEQ, F_DIM)
    assert bool(jnp.all(jnp.isfinite(out0)))
    assert bool(jnp.all((out0 >= 0.0) & (out0 <= 1.0)))          # sigmoid range

    # Branch i != 0: fused SepConv branches + LSTMs in one pallas_call.
    f1 = jax.jit(lambda w: tuple(astrocyte_forward(w, 1, packed)))
    pr, pr1 = f1(weight_avg)
    pr = jax.block_until_ready(pr)
    pr1 = jax.block_until_ready(pr1)
    assert pr.shape == (2, T_SEQ, F_DIM) and pr1.shape == (2, T_SEQ, F_DIM)
    assert bool(jnp.all(jnp.isfinite(pr))) and bool(jnp.all(jnp.isfinite(pr1)))
    assert bool(jnp.all((pr >= 0.0) & (pr <= 1.0)))
    assert bool(jnp.all((pr1 >= 0.0) & (pr1 <= 1.0)))

    # Numerical check vs the pure-JAX reference (loose tol: kernel rounds the
    # matmul LHS to bf16 while the reference keeps f32 activations).
    ref0 = jax.jit(lambda w: _ref_forward(w, 0, params))(weight_avg)
    refp, refp1 = jax.jit(lambda w: _ref_forward(w, 1, params))(weight_avg)
    assert bool(jnp.max(jnp.abs(out0 - ref0)) < 5e-2)
    assert bool(jnp.max(jnp.abs(pr - refp)) < 5e-2)
    assert bool(jnp.max(jnp.abs(pr1 - refp1)) < 5e-2)

    print("KERNEL_OK")
</pallas_src>

<mosaic_0001>
module attributes {stable_mosaic.version = 11 : i64} {
  func.func @_astro_kernel(%arg0: i32, %arg1: memref<5x256xf32, #tpu.memory_space<vmem>>, %arg2: memref<1x256x1024xbf16, #tpu.memory_space<vmem>>, %arg3: memref<1x256x1024xbf16, #tpu.memory_space<vmem>>, %arg4: memref<5x256xf32, #tpu.memory_space<vmem>>, %arg5: memref<5x256xf32, #tpu.memory_space<vmem>>) attributes {dimension_semantics = [#tpu.dimension_semantics<arbitrary>], iteration_bounds = array<i64: 4>, scalar_prefetch = 0 : i64, scratch_operands = 1 : i64, tpu.core_type = #tpu.core_type<tc>, window_params = [{pipeline_mode = #tpu.pipeline_mode<synchronous>, transform_indices = @transform_0, window_bounds = array<i64: 5, 256>}, {transform_indices = @transform_1, window_bounds = array<i64: 1, 256, 1024>}, {transform_indices = @transform_2, window_bounds = array<i64: 1, 256, 1024>}, {pipeline_mode = #tpu.pipeline_mode<synchronous>, transform_indices = @transform_3, window_bounds = array<i64: 5, 256>}]} {
    %c0_i32 = arith.constant 0 : i32
    %0 = arith.cmpi eq, %arg0, %c0_i32 : i32
    %1 = arith.extui %0 : i1 to i32
    %c0_i32_0 = arith.constant 0 : i32
    %2 = arith.cmpi ne, %1, %c0_i32_0 : i32
    scf.if %2 {
      %c0_34 = arith.constant 0 : index
      %c0_35 = arith.constant 0 : index
      %169 = vector.load %arg1[%c0_34, %c0_35] : memref<5x256xf32, #tpu.memory_space<vmem>>, vector<5x256xf32>
      %c0_36 = arith.constant 0 : index
      %c0_37 = arith.constant 0 : index
      %170 = vector.load %arg5[%c0_36, %c0_37] : memref<5x256xf32, #tpu.memory_space<vmem>>, vector<5x256xf32>
      tpu.vector_store %arg5[%c0_36, %c0_37], %169 {strides = array<i32>} : memref<5x256xf32, #tpu.memory_space<vmem>>, vector<5x256xf32>,
    } else {
    }
    %c0 = arith.constant 0 : index
    %c0_1 = arith.constant 0 : index
    %c0_2 = arith.constant 0 : index
    %3 = vector.load %arg2[%c0, %c0_1, %c0_2] : memref<1x256x1024xbf16, #tpu.memory_space<vmem>>, vector<1x256x1024xbf16>
    %4 = vector.shape_cast %3 : vector<1x256x1024xbf16> to vector<256x1024xbf16>
    %c0_3 = arith.constant 0 : index
    %c0_4 = arith.constant 0 : index
    %c0_5 = arith.constant 0 : index
    %5 = vector.load %arg3[%c0_3, %c0_4, %c0_5] : memref<1x256x1024xbf16, #tpu.memory_space<vmem>>, vector<1x256x1024xbf16>
    %6 = vector.shape_cast %5 : vector<1x256x1024xbf16> to vector<256x1024xbf16>
    %c0_6 = arith.constant 0 : index
    %c0_7 = arith.constant 0 : index
    %7 = vector.load %arg5[%c0_6, %c0_7] : memref<5x256xf32, #tpu.memory_space<vmem>>, vector<5x256xf32>
    %8 = arith.truncf %7 : vector<5x256xf32> to vector<5x256xbf16>
    %cst = arith.constant dense<0.000000e+00> : vector<5x1024xf32>
    %9 = tpu.matmul %8, %4, %cst {dimension_numbers = #tpu.dot_dimension_numbers<[1], [0], [0], [1], [0, 0, 1, 1], [], []>} : vector<5x256xbf16>, vector<256x1024xbf16>, vector<5x1024xf32> -> vector<5x1024xf32>
    %cst_8 = arith.constant 0.000000e+00 : f32
    %10 = vector.broadcast %cst_8 : f32 to vector<1x256xf32>
    %cst_9 = arith.constant 0.000000e+00 : f32
    %11 = vector.broadcast %cst_9 : f32 to vector<1x256xf32>
    %12 = vector.extract_strided_slice %9 {offsets = [0, 0], sizes = [1, 1024], strides = [1, 1]} : vector<5x1024xf32> to vector<1x1024xf32>
    %13 = arith.truncf %10 : vector<1x256xf32> to vector<1x256xbf16>
    %cst_10 = arith.constant dense<0.000000e+00> : vector<1x1024xf32>
    %14 = tpu.matmul %13, %6, %cst_10 {dimension_numbers = #tpu.dot_dimension_numbers<[1], [0], [0], [1], [0, 0, 1, 1], [], []>} : vector<1x256xbf16>, vector<256x1024xbf16>, vector<1x1024xf32> -> vector<1x1024xf32>
    %15 = arith.addf %12, %14 : vector<1x1024xf32>
    %16 = vector.extract_strided_slice %15 {offsets = [0, 0], sizes = [1, 256], strides = [1, 1]} : vector<1x1024xf32> to vector<1x256xf32>
    %17 = arith.negf %16 : vector<1x256xf32>
    %18 = math.exp %17 : vector<1x256xf32>
    %cst_11 = arith.constant 1.000000e+00 : f32
    %19 = vector.broadcast %cst_11 : f32 to vector<1x256xf32>
    %20 = arith.addf %19, %18 : vector<1x256xf32>
    %21 = arith.divf %19, %20 : vector<1x256xf32>
    %22 = vector.extract_strided_slice %15 {offsets = [0, 256], sizes = [1, 256], strides = [1, 1]} : vector<1x1024xf32> to vector<1x256xf32>
    %23 = arith.negf %22 : vector<1x256xf32>
    %24 = math.exp %23 : vector<1x256xf32>
    %cst_12 = arith.constant 1.000000e+00 : f32
    %25 = vector.broadcast %cst_12 : f32 to vector<1x256xf32>
    %26 = arith.addf %25, %24 : vector<1x256xf32>
    %27 = arith.divf %25, %26 : vector<1x256xf32>
    %28 = vector.extract_strided_slice %15 {offsets = [0, 512], sizes = [1, 256], strides = [1, 1]} : vector<1x1024xf32> to vector<1x256xf32>
    %29 = math.tanh %28 : vector<1x256xf32>
    %30 = vector.extract_strided_slice %15 {offsets = [0, 768], sizes = [1, 256], strides = [1, 1]} : vector<1x1024xf32> to vector<1x256xf32>
    %31 = arith.negf %30 : vector<1x256xf32>
    %32 = math.exp %31 : vector<1x256xf32>
    %cst_13 = arith.constant 1.000000e+00 : f32
    %33 = vector.broadcast %cst_13 : f32 to vector<1x256xf32>
    %34 = arith.addf %33, %32 : vector<1x256xf32>
    %35 = arith.divf %33, %34 : vector<1x256xf32>
    %36 = arith.mulf %27, %11 : vector<1x256xf32>
    %37 = arith.mulf %21, %29 : vector<1x256xf32>
    %38 = arith.addf %36, %37 : vector<1x256xf32>
    %39 = math.tanh %38 : vector<1x256xf32>
    %40 = arith.mulf %35, %39 : vector<1x256xf32>
    %41 = vector.extract_strided_slice %9 {offsets = [1, 0], sizes = [1, 1024], strides = [1, 1]} : vector<5x1024xf32> to vector<1x1024xf32>
    %42 = arith.truncf %40 : vector<1x256xf32> to vector<1x256xbf16>
    %cst_14 = arith.constant dense<0.000000e+00> : vector<1x1024xf32>
    %43 = tpu.matmul %42, %6, %cst_14 {dimension_numbers = #tpu.dot_dimension_numbers<[1], [0], [0], [1], [0, 0, 1, 1], [], []>} : vector<1x256xbf16>, vector<256x1024xbf16>, vector<1x1024xf32> -> vector<1x1024xf32>
    %44 = arith.addf %41, %43 : vector<1x1024xf32>
    %45 = vector.extract_strided_slice %44 {offsets = [0, 0], sizes = [1, 256], strides = [1, 1]} : vector<1x1024xf32> to vector<1x256xf32>
    %46 = arith.negf %45 : vector<1x256xf32>
    %47 = math.exp %46 : vector<1x256xf32>
    %cst_15 = arith.constant 1.000000e+00 : f32
    %48 = vector.broadcast %cst_15 : f32 to vector<1x256xf32>
    %49 = arith.addf %48, %47 : vector<1x256xf32>
    %50 = arith.divf %48, %49 : vector<1x256xf32>
    %51 = vector.extract_strided_slice %44 {offsets = [0, 256], sizes = [1, 256], strides = [1, 1]} : vector<1x1024xf32> to vector<1x256xf32>
    %52 = arith.negf %51 : vector<1x256xf32>
    %53 = math.exp %52 : vector<1x256xf32>
    %cst_16 = arith.constant 1.000000e+00 : f32
    %54 = vector.broadcast %cst_16 : f32 to vector<1x256xf32>
    %55 = arith.addf %54, %53 : vector<1x256xf32>
    %56 = arith.divf %54, %55 : vector<1x256xf32>
    %57 = vector.extract_strided_slice %44 {offsets = [0, 512], sizes = [1, 256], strides = [1, 1]} : vector<1x1024xf32> to vector<1x256xf32>
    %58 = math.tanh %57 : vector<1x256xf32>
    %59 = vector.extract_strided_slice %44 {offsets = [0, 768], sizes = [1, 256], strides = [1, 1]} : vector<1x1024xf32> to vector<1x256xf32>
    %60 = arith.negf %59 : vector<1x256xf32>
    %61 = math.exp %60 : vector<1x256xf32>
    %cst_17 = arith.constant 1.000000e+00 : f32
    %62 = vector.broadcast %cst_17 : f32 to vector<1x256xf32>
    %63 = arith.addf %62, %61 : vector<1x256xf32>
    %64 = arith.divf %62, %63 : vector<1x256xf32>
    %65 = arith.mulf %56, %38 : vector<1x256xf32>
    %66 = arith.mulf %50, %58 : vector<1x256xf32>
    %67 = arith.addf %65, %66 : vector<1x256xf32>
    %68 = math.tanh %67 : vector<1x256xf32>
    %69 = arith.mulf %64, %68 : vector<1x256xf32>
    %70 = vector.extract_strided_slice %9 {offsets = [2, 0], sizes = [1, 1024], strides = [1, 1]} : vector<5x1024xf32> to vector<1x1024xf32>
    %71 = arith.truncf %69 : vector<1x256xf32> to vector<1x256xbf16>
    %cst_18 = arith.constant dense<0.000000e+00> : vector<1x1024xf32>
    %72 = tpu.matmul %71, %6, %cst_18 {dimension_numbers = #tpu.dot_dimension_numbers<[1], [0], [0], [1], [0, 0, 1, 1], [], []>} : vector<1x256xbf16>, vector<256x1024xbf16>, vector<1x1024xf32> -> vector<1x1024xf32>
    %73 = arith.addf %70, %72 : vector<1x1024xf32>
    %74 = vector.extract_strided_slice %73 {offsets = [0, 0], sizes = [1, 256], strides = [1, 1]} : vector<1x1024xf32> to vector<1x256xf32>
    %75 = arith.negf %74 : vector<1x256xf32>
    %76 = math.exp %75 : vector<1x256xf32>
    %cst_19 = arith.constant 1.000000e+00 : f32
    %77 = vector.broadcast %cst_19 : f32 to vector<1x256xf32>
    %78 = arith.addf %77, %76 : vector<1x256xf32>
    %79 = arith.divf %77, %78 : vector<1x256xf32>
    %80 = vector.extract_strided_slice %73 {offsets = [0, 256], sizes = [1, 256], strides = [1, 1]} : vector<1x1024xf32> to vector<1x256xf32>
    %81 = arith.negf %80 : vector<1x256xf32>
    %82 = math.exp %81 : vector<1x256xf32>
    %cst_20 = arith.constant 1.000000e+00 : f32
    %83 = vector.broadcast %cst_20 : f32 to vector<1x256xf32>
    %84 = arith.addf %83, %82 : vector<1x256xf32>
    %85 = arith.divf %83, %84 : vector<1x256xf32>
    %86 = vector.extract_strided_slice %73 {offsets = [0, 512], sizes = [1, 256], strides = [1, 1]} : vector<1x1024xf32> to vector<1x256xf32>
    %87 = math.tanh %86 : vector<1x256xf32>
    %88 = vector.extract_strided_slice %73 {offsets = [0, 768], sizes = [1, 256], strides = [1, 1]} : vector<1x1024xf32> to vector<1x256xf32>
    %89 = arith.negf %88 : vector<1x256xf32>
    %90 = math.exp %89 : vector<1x256xf32>
    %cst_21 = arith.constant 1.000000e+00 : f32
    %91 = vector.broadcast %cst_21 : f32 to vector<1x256xf32>
    %92 = arith.addf %91, %90 : vector<1x256xf32>
    %93 = arith.divf %91, %92 : vector<1x256xf32>
    %94 = arith.mulf %85, %67 : vector<1x256xf32>
    %95 = arith.mulf %79, %87 : vector<1x256xf32>
    %96 = arith.addf %94, %95 : vector<1x256xf32>
    %97 = math.tanh %96 : vector<1x256xf32>
    %98 = arith.mulf %93, %97 : vector<1x256xf32>
    %99 = vector.extract_strided_slice %9 {offsets = [3, 0], sizes = [1, 1024], strides = [1, 1]} : vector<5x1024xf32> to vector<1x1024xf32>
    %100 = arith.truncf %98 : vector<1x256xf32> to vector<1x256xbf16>
    %cst_22 = arith.constant dense<0.000000e+00> : vector<1x1024xf32>
    %101 = tpu.matmul %100, %6, %cst_22 {dimension_numbers = #tpu.dot_dimension_numbers<[1], [0], [0], [1], [0, 0, 1, 1], [], []>} : vector<1x256xbf16>, vector<256x1024xbf16>, vector<1x1024xf32> -> vector<1x1024xf32>
    %102 = arith.addf %99, %101 : vector<1x1024xf32>
    %103 = vector.extract_strided_slice %102 {offsets = [0, 0], sizes = [1, 256], strides = [1, 1]} : vector<1x1024xf32> to vector<1x256xf32>
    %104 = arith.negf %103 : vector<1x256xf32>
    %105 = math.exp %104 : vector<1x256xf32>
    %cst_23 = arith.constant 1.000000e+00 : f32
    %106 = vector.broadcast %cst_23 : f32 to vector<1x256xf32>
    %107 = arith.addf %106, %105 : vector<1x256xf32>
    %108 = arith.divf %106, %107 : vector<1x256xf32>
    %109 = vector.extract_strided_slice %102 {offsets = [0, 256], sizes = [1, 256], strides = [1, 1]} : vector<1x1024xf32> to vector<1x256xf32>
    %110 = arith.negf %109 : vector<1x256xf32>
    %111 = math.exp %110 : vector<1x256xf32>
    %cst_24 = arith.constant 1.000000e+00 : f32
    %112 = vector.broadcast %cst_24 : f32 to vector<1x256xf32>
    %113 = arith.addf %112, %111 : vector<1x256xf32>
    %114 = arith.divf %112, %113 : vector<1x256xf32>
    %115 = vector.extract_strided_slice %102 {offsets = [0, 512], sizes = [1, 256], strides = [1, 1]} : vector<1x1024xf32> to vector<1x256xf32>
    %116 = math.tanh %115 : vector<1x256xf32>
    %117 = vector.extract_strided_slice %102 {offsets = [0, 768], sizes = [1, 256], strides = [1, 1]} : vector<1x1024xf32> to vector<1x256xf32>
    %118 = arith.negf %117 : vector<1x256xf32>
    %119 = math.exp %118 : vector<1x256xf32>
    %cst_25 = arith.constant 1.000000e+00 : f32
    %120 = vector.broadcast %cst_25 : f32 to vector<1x256xf32>
    %121 = arith.addf %120, %119 : vector<1x256xf32>
    %122 = arith.divf %120, %121 : vector<1x256xf32>
    %123 = arith.mulf %114, %96 : vector<1x256xf32>
    %124 = arith.mulf %108, %116 : vector<1x256xf32>
    %125 = arith.addf %123, %124 : vector<1x256xf32>
    %126 = math.tanh %125 : vector<1x256xf32>
    %127 = arith.mulf %122, %126 : vector<1x256xf32>
    %128 = vector.extract_strided_slice %9 {offsets = [4, 0], sizes = [1, 1024], strides = [1, 1]} : vector<5x1024xf32> to vector<1x1024xf32>
    %129 = arith.truncf %127 : vector<1x256xf32> to vector<1x256xbf16>
    %cst_26 = arith.constant dense<0.000000e+00> : vector<1x1024xf32>
    %130 = tpu.matmul %129, %6, %cst_26 {dimension_numbers = #tpu.dot_dimension_numbers<[1], [0], [0], [1], [0, 0, 1, 1], [], []>} : vector<1x256xbf16>, vector<256x1024xbf16>, vector<1x1024xf32> -> vector<1x1024xf32>
    %131 = arith.addf %128, %130 : vector<1x1024xf32>
    %132 = vector.extract_strided_slice %131 {offsets = [0, 0], sizes = [1, 256], strides = [1, 1]} : vector<1x1024xf32> to vector<1x256xf32>
    %133 = arith.negf %132 : vector<1x256xf32>
    %134 = math.exp %133 : vector<1x256xf32>
    %cst_27 = arith.constant 1.000000e+00 : f32
    %135 = vector.broadcast %cst_27 : f32 to vector<1x256xf32>
    %136 = arith.addf %135, %134 : vector<1x256xf32>
    %137 = arith.divf %135, %136 : vector<1x256xf32>
    %138 = vector.extract_strided_slice %131 {offsets = [0, 256], sizes = [1, 256], strides = [1, 1]} : vector<1x1024xf32> to vector<1x256xf32>
    %139 = arith.negf %138 : vector<1x256xf32>
    %140 = math.exp %139 : vector<1x256xf32>
    %cst_28 = arith.constant 1.000000e+00 : f32
    %141 = vector.broadcast %cst_28 : f32 to vector<1x256xf32>
    %142 = arith.addf %141, %140 : vector<1x256xf32>
    %143 = arith.divf %141, %142 : vector<1x256xf32>
    %144 = vector.extract_strided_slice %131 {offsets = [0, 512], sizes = [1, 256], strides = [1, 1]} : vector<1x1024xf32> to vector<1x256xf32>
    %145 = math.tanh %144 : vector<1x256xf32>
    %146 = vector.extract_strided_slice %131 {offsets = [0, 768], sizes = [1, 256], strides = [1, 1]} : vector<1x1024xf32> to vector<1x256xf32>
    %147 = arith.negf %146 : vector<1x256xf32>
    %148 = math.exp %147 : vector<1x256xf32>
    %cst_29 = arith.constant 1.000000e+00 : f32
    %149 = vector.broadcast %cst_29 : f32 to vector<1x256xf32>
    %150 = arith.addf %149, %148 : vector<1x256xf32>
    %151 = arith.divf %149, %150 : vector<1x256xf32>
    %152 = arith.mulf %143, %125 : vector<1x256xf32>
    %153 = arith.mulf %137, %145 : vector<1x256xf32>
    %154 = arith.addf %152, %153 : vector<1x256xf32>
    %155 = math.tanh %154 : vector<1x256xf32>
    %156 = arith.mulf %151, %155 : vector<1x256xf32>
    %157 = tpu.concatenate %40, %69, %98, %127, %156 in 0 : vector<1x256xf32>, vector<1x256xf32>, vector<1x256xf32>, vector<1x256xf32>, vector<1x256xf32> -> vector<5x256xf32>
    %c0_i32_30 = arith.constant 0 : i32
    %158 = arith.cmpi eq, %arg0, %c0_i32_30 : i32
    %c2_i32 = arith.constant 2 : i32
    %159 = arith.cmpi eq, %arg0, %c2_i32 : i32
    %160 = arith.ori %158, %159 : i1
    %161 = arith.extui %160 : i1 to i32
    %c0_i32_31 = arith.constant 0 : i32
    %162 = arith.cmpi ne, %161, %c0_i32_31 : i32
    scf.if %162 {
      %c0_34 = arith.constant 0 : index
      %c0_35 = arith.constant 0 : index
      %169 = vector.load %arg5[%c0_34, %c0_35] : memref<5x256xf32, #tpu.memory_space<vmem>>, vector<5x256xf32>
      tpu.vector_store %arg5[%c0_34, %c0_35], %157 {strides = array<i32>} : memref<5x256xf32, #tpu.memory_space<vmem>>, vector<5x256xf32>,
    } else {
    }
    %c1_i32 = arith.constant 1 : i32
    %163 = arith.cmpi eq, %arg0, %c1_i32 : i32
    %164 = arith.extui %163 : i1 to i32
    %c0_i32_32 = arith.constant 0 : i32
    %165 = arith.cmpi ne, %164, %c0_i32_32 : i32
    scf.if %165 {
      %169 = arith.negf %157 : vector<5x256xf32>
      %170 = math.exp %169 : vector<5x256xf32>
      %cst_34 = arith.constant 1.000000e+00 : f32
      %171 = vector.broadcast %cst_34 : f32 to vector<5x256xf32>
      %172 = arith.addf %171, %170 : vector<5x256xf32>
      %173 = arith.divf %171, %172 : vector<5x256xf32>
      %c0_35 = arith.constant 0 : index
      %c0_36 = arith.constant 0 : index
      %174 = vector.load %arg5[%c0_35, %c0_36] : memref<5x256xf32, #tpu.memory_space<vmem>>, vector<5x256xf32>
      tpu.vector_store %arg5[%c0_35, %c0_36], %173 {strides = array<i32>} : memref<5x256xf32, #tpu.memory_space<vmem>>, vector<5x256xf32>,
    } else {
    }
    %c3_i32 = arith.constant 3 : i32
    %166 = arith.cmpi eq, %arg0, %c3_i32 : i32
    %167 = arith.extui %166 : i1 to i32
    %c0_i32_33 = arith.constant 0 : i32
    %168 = arith.cmpi ne, %167, %c0_i32_33 : i32
    scf.if %168 {
      %169 = arith.negf %157 : vector<5x256xf32>
      %170 = math.exp %169 : vector<5x256xf32>
      %cst_34 = arith.constant 1.000000e+00 : f32
      %171 = vector.broadcast %cst_34 : f32 to vector<5x256xf32>
      %172 = arith.addf %171, %170 : vector<5x256xf32>
      %173 = arith.divf %171, %172 : vector<5x256xf32>
      %c0_35 = arith.constant 0 : index
      %c0_36 = arith.constant 0 : index
      %174 = vector.load %arg4[%c0_35, %c0_36] : memref<5x256xf32, #tpu.memory_space<vmem>>, vector<5x256xf32>
      tpu.vector_store %arg4[%c0_35, %c0_36], %173 {strides = array<i32>} : memref<5x256xf32, #tpu.memory_space<vmem>>, vector<5x256xf32>,
    } else {
    }
    return
  }
  func.func @transform_0(%arg0: i32) -> (i32, i32) {
    %c0_i32 = arith.constant 0 : i32
    %c0_i32_0 = arith.constant 0 : i32
    %c0_i32_1 = arith.constant 0 : i32
    return %c0_i32, %c0_i32_0 : i32, i32
  }
  func.func @transform_1(%arg0: i32) -> (i32, i32, i32) {
    %c0_i32 = arith.constant 0 : i32
    %c0_i32_0 = arith.constant 0 : i32
    %c0_i32_1 = arith.constant 0 : i32
    return %arg0, %c0_i32, %c0_i32_0 : i32, i32, i32
  }
  func.func @transform_2(%arg0: i32) -> (i32, i32, i32) {
    %c0_i32 = arith.constant 0 : i32
    %c0_i32_0 = arith.constant 0 : i32
    %c0_i32_1 = arith.constant 0 : i32
    return %arg0, %c0_i32, %c0_i32_0 : i32, i32, i32
  }
  func.func @transform_3(%arg0: i32) -> (i32, i32) {
    %c0_i32 = arith.constant 0 : i32
    %c0_i32_0 = arith.constant 0 : i32
    %c0_i32_1 = arith.constant 0 : i32
    return %c0_i32, %c0_i32_0 : i32, i32
  }
}

</mosaic_0001>

<llo_original>
// kernel: _lambda_.1
$region0: #{_lambda_.1}
  #allocation0 [shape = 'u32[]', space=smem, size = 0x4, offset = 0x4, fixed_abs, tag = 'smem constant byte address 0x4 - core index']
  #allocation1 [shape = 'u32[144,128]{1,0:T(1,128)}', space=vmem, size = 0x12000, scoped, tag = 'internal scratch']
  #allocation2 [shape = 'f32[5,256]{1,0:T(8,128)}', space=vmem, size = 0x2000, scoped, tag = 'scratch operand']
  %s0 = inlined_call_operand.vmem [shape: f32[5,256], index: 0, kind: input, shape index: {}]
  %s1 = inlined_call_operand.vmem [shape: bf16[4,256,1024], index: 1, kind: input, shape index: {}]
  %s2 = inlined_call_operand.vmem [shape: bf16[4,256,1024], index: 2, kind: input, shape index: {}]
  %s3 = inlined_call_operand.hbm [shape: f32[5,256], index: 3, kind: output, shape index: {}]
  %s4 = sld [smem:[#allocation0]]
  $region61: #{_lambda_.1} parent=0
    _
  %s6 = ssub.s32 1, %s4
  %s7 = scalar_select 0, %s6, %s4
  $region1: #{_lambda_.1} parent=0
    #allocation3 [shape = 'u8[8192]{0}', space=vmem, size = 0x2000, scoped, tag = 'output window, operand 0, single buffered']
    #allocation4 [shape = 's32[2]{0}', space=sflag, size = 0x8, scoped, tag = 'scoped memory for _lambda_.1']
    %8 = vsyncpa [#allocation4], 0
    loop: start=0, step=1, limit=6
    $region2: #{_lambda_.1} parent=1 // loop_pre_header
      _
    $region3: #{_lambda_.1} parent=1 // loop_header
      %s10 = sphi 0, %s14
      %p11 = scmp.ge.s32.totalorder %s10, 6
      %s18 = sphi 0, %s18
      %s20 = sphi 0, %s18
      %s21 = sphi 0, %s20
      %s35 = sphi 0, %s21
      %s41 = sphi 0, %s43
      %s44 = sphi 0, %s41
      %s45 = sphi 0, %s44
      %s61 = sphi 0, %s45
      %s67 = sphi 0, %s69
      %s70 = sphi 0, %s67
      %s71 = sphi 0, %s70
      %s87 = sphi 0, %s71
      %s91 = sphi 0, %s91
      %s93 = sphi 0, %s91
      %s94 = sphi 0, %s93
      %s108 = sphi 0, %s94
    $region4: #{_lambda_.1} parent=1 // loop_header_branch
      %13 = sbr.rel (%p11) target = $region8
    $region5: #{_lambda_.1} parent=1 // loop_body
      %s15 = ssub.s32 %s10, 1
      %s16 = ssub.s32 %s10, 2
      %s17 = sadd.s32 %s10, 1
      %s19 = sadd.s32 %s18, 1
      %p22 = scmp.eq.s32.totalorder %s10, 3
      %p23 = scmp.ne.s32.totalorder %s18, %s20
      %p24 = scmp.eq.s32.totalorder %s10, 0
      %p25 = por %p23, %p24
      %p26 = scmp.ne.s32.totalorder %s18, %s20
      %p27 = scmp.eq.s32.totalorder %s15, 3
      %p28 = por %p26, %p27
      %p29 = scmp.ne.s32.totalorder %s20, %s21
      %p30 = scmp.eq.s32.totalorder %s15, 0
      %p31 = por %p29, %p30
      %p32 = scmp.ne.s32.totalorder %s20, %s21
      %p33 = scmp.eq.s32.totalorder %s16, 3
      %p34 = por %p32, %p33
      %p36 = scmp.ne.s32.totalorder %s21, %s35
      %p37 = scmp.eq.s32.totalorder %s16, 0
      %p38 = por %p36, %p37
      %s39 = ssub.s32 %s10, %s17
      %p40 = scmp.eq.s32.totalorder %s39, 0
      %s42 = sadd.s32 %s41, 1
      %s43 = scalar_select %p40, %s41, %s42
      %p46 = pneg %p40
      %p47 = scmp.eq.s32.totalorder %s10, 3
      %p48 = por %p46, %p47
      %p49 = scmp.ne.s32.totalorder %s41, %s44
      %p50 = scmp.eq.s32.totalorder %s10, 0
      %p51 = por %p49, %p50
      %p52 = scmp.ne.s32.totalorder %s41, %s44
      %p53 = scmp.eq.s32.totalorder %s15, 3
      %p54 = por %p52, %p53
      %p55 = scmp.ne.s32.totalorder %s44, %s45
      %p56 = scmp.eq.s32.totalorder %s15, 0
      %p57 = por %p55, %p56
      %p58 = scmp.ne.s32.totalorder %s44, %s45
      %p59 = scmp.eq.s32.totalorder %s16, 3
      %p60 = por %p58, %p59
      %p62 = scmp.ne.s32.totalorder %s45, %s61
      %p63 = scmp.eq.s32.totalorder %s16, 0
      %p64 = por %p62, %p63
      %s65 = ssub.s32 %s10, %s17
      %p66 = scmp.eq.s32.totalorder %s65, 0
      %s68 = sadd.s32 %s67, 1
      %s69 = scalar_select %p66, %s67, %s68
      %p72 = pneg %p66
      %p73 = scmp.eq.s32.totalorder %s10, 3
      %p74 = por %p72, %p73
      %p75 = scmp.ne.s32.totalorder %s67, %s70
      %p76 = scmp.eq.s32.totalorder %s10, 0
      %p77 = por %p75, %p76
      %p78 = scmp.ne.s32.totalorder %s67, %s70
      %p79 = scmp.eq.s32.totalorder %s15, 3
      %p80 = por %p78, %p79
      %p81 = scmp.ne.s32.totalorder %s70, %s71
      %p82 = scmp.eq.s32.totalorder %s15, 0
      %p83 = por %p81, %p82
      %p84 = scmp.ne.s32.totalorder %s70, %s71
      %p85 = scmp.eq.s32.totalorder %s16, 3
      %p86 = por %p84, %p85
      %p88 = scmp.ne.s32.totalorder %s71, %s87
      %p89 = scmp.eq.s32.totalorder %s16, 0
      %p90 = por %p88, %p89
      %s92 = sadd.s32 %s91, 1
      %p95 = scmp.eq.s32.totalorder %s10, 3
      %p96 = scmp.ne.s32.totalorder %s91, %s93
      %p97 = scmp.eq.s32.totalorder %s10, 0
      %p98 = por %p96, %p97
      %p99 = scmp.ne.s32.totalorder %s91, %s93
      %p100 = scmp.eq.s32.totalorder %s15, 3
      %p101 = por %p99, %p100
      %p102 = scmp.ne.s32.totalorder %s93, %s94
      %p103 = scmp.eq.s32.totalorder %s15, 0
      %p104 = por %p102, %p103
      %p105 = scmp.ne.s32.totalorder %s93, %s94
      %p106 = scmp.eq.s32.totalorder %s16, 3
      %p107 = por %p105, %p106
      %p109 = scmp.ne.s32.totalorder %s94, %s108
      %p110 = scmp.eq.s32.totalorder %s16, 0
      %p111 = por %p109, %p110
      %p112 = scmp.le.s32.totalorder 1, %s10
      %p113 = scmp.lt.s32.totalorder %s10, 5
      %p114 = pnand %p112, %p113
      %p115 = pneg %p114
      // Predicated region
      $region9: #{_lambda_.1} parent=5 // pred_check
        _
      $region10: #{_lambda_.1} parent=5 // pred_check_branch
        %117 = sbr.rel (%p114) target = $region12
      $region11: #{_lambda_.1} parent=5 // pred_region
        %s118 = ssub.s32 %s10, 1
        // Predicated region
        $region13: #{_lambda_.1} parent=11 // pred_check
          %p119 = pneg %p31
        $region14: #{_lambda_.1} parent=11 // pred_check_branch
          %121 = sbr.rel (%p119) target = $region16
        $region15: #{_lambda_.1} parent=11 // pred_region
          _
        $region16: #{_lambda_.1} parent=11 // pred_fallthru
          _
      $region12: #{_lambda_.1} parent=5 // pred_fallthru
        _
      %p122 = scmp.lt.s32.totalorder %s10, 4
      // Predicated region
      $region17: #{_lambda_.1} parent=5 // pred_check
        %p123 = pneg %p122
      $region18: #{_lambda_.1} parent=5 // pred_check_branch
        %125 = sbr.rel (%p123) target = $region20
      $region19: #{_lambda_.1} parent=5 // pred_region
        // Predicated region
        $region21: #{_lambda_.1} parent=19 // pred_check
          %p126 = pneg %p51
        $region22: #{_lambda_.1} parent=19 // pred_check_branch
          %128 = sbr.rel (%p126) target = $region24
        $region23: #{_lambda_.1} parent=19 // pred_region
          %p129 = scmp.lt.s32.totalorder %s10, 3
          %s130 = scalar_select %p129, %s10, 3
          %s131 = smul.addr %s130, 256
          %s132 = smul.addr %s131, 4
          %s133 = scalar_lea.vmem %s1, %s132
        $region24: #{_lambda_.1} parent=19 // pred_fallthru
          _
        // Predicated region
        $region25: #{_lambda_.1} parent=19 // pred_check
          %p134 = pneg %p77
        $region26: #{_lambda_.1} parent=19 // pred_check_branch
          %136 = sbr.rel (%p134) target = $region28
        $region27: #{_lambda_.1} parent=19 // pred_region
          %p137 = scmp.lt.s32.totalorder %s10, 3
          %s138 = scalar_select %p137, %s10, 3
          %s139 = smul.addr %s138, 256
          %s140 = smul.addr %s139, 4
          %s141 = scalar_lea.vmem %s2, %s140
        $region28: #{_lambda_.1} parent=19 // pred_fallthru
          _
      $region20: #{_lambda_.1} parent=5 // pred_fallthru
        _
      %p142 = scmp.le.s32.totalorder 1, %s10
      %p143 = scmp.lt.s32.totalorder %s10, 5
      %p144 = pnand %p142, %p143
      %p145 = pneg %p144
      // Predicated region
      $region29: #{_lambda_.1} parent=5 // pred_check
        _
      $region30: #{_lambda_.1} parent=5 // pred_check_branch
        %147 = sbr.rel (%p144) target = $region32
      $region31: #{_lambda_.1} parent=5 // pred_region
        %s148 = ssub.s32 %s10, 1
        %p149 = pneg %p31
        %p150 = pneg %p28
        %p151 = scmp.lt.s32.totalorder %s15, 3
        %s152 = scalar_select %p151, %s15, 3
        %s153 = smul.addr %s152, 256
        %s154 = smul.addr %s153, 4
        %s155 = scalar_lea.vmem %s1, %s154
        %p156 = pneg %p57
        %p157 = pneg %p54
        %p158 = scmp.lt.s32.totalorder %s15, 3
        %s159 = scalar_select %p158, %s15, 3
        %s160 = smul.addr %s159, 256
        %s161 = smul.addr %s160, 4
        %s162 = scalar_lea.vmem %s2, %s161
        %p163 = pneg %p83
        %p164 = pneg %p80
        %p165 = pneg %p104
        %p166 = pneg %p101
        %p167 = scmp.lt.s32.totalorder %s15, 3
        %s168 = scalar_select %p167, %s15, 3
        %s169 = smul.addr %s168, 256
        %s170 = smul.addr %s169, 4
        %s171 = scalar_lea.vmem %s1, %s170
        %p172 = scmp.lt.s32.totalorder %s15, 3
        %s173 = scalar_select %p172, %s15, 3
        %s174 = smul.addr %s173, 256
        %s175 = smul.addr %s174, 4
        %s176 = scalar_lea.vmem %s2, %s175
        %p178 = scmp.eq.s32.totalorder %s15, 0
        // Predicated region
        $region33: #{_lambda_.1} parent=31 // pred_check
          %p179 = pneg %p178
        $region34: #{_lambda_.1} parent=31 // pred_check_branch
          %181 = sbr.rel (%p179) target = $region36
        $region35: #{_lambda_.1} parent=31 // pred_region
          %v182 = vld [vmem:[%s0] sm:$0x1f]
          %v183 = vld [vmem:[%s0 + $0x8] sm:$0x1f]
          %184 = vst [vmem:[#allocation2] sm:$0x1f] %v182
          %185 = vst [vmem:[#allocation2 + $0x8] sm:$0x1f] %v183
        $region36: #{_lambda_.1} parent=31 // pred_fallthru
          _
        %v186 = vld [vmem:[%s171] sm:$0xff]
        %v187 = vld [vmem:[%s171 + $0x8] sm:$0xff]
        %v188 = vld [vmem:[%s171 + $0x10] sm:$0xff]
        %v189 = vld [vmem:[%s171 + $0x18] sm:$0xff]
        %v190 = vld [vmem:[%s171 + $0x20] sm:$0xff]
        %v191 = vld [vmem:[%s171 + $0x28] sm:$0xff]
        %v192 = vld [vmem:[%s171 + $0x30] sm:$0xff]
        %v193 = vld [vmem:[%s171 + $0x38] sm:$0xff]
        %v194 = vld [vmem:[%s171 + $0x40] sm:$0xff]
        %v195 = vld [vmem:[%s171 + $0x48] sm:$0xff]
        %v196 = vld [vmem:[%s171 + $0x50] sm:$0xff]
        %v197 = vld [vmem:[%s171 + $0x58] sm:$0xff]
        %v198 = vld [vmem:[%s171 + $0x60] sm:$0xff]
        %v199 = vld [vmem:[%s171 + $0x68] sm:$0xff]
        %v200 = vld [vmem:[%s171 + $0x70] sm:$0xff]
        %v201 = vld [vmem:[%s171 + $0x78] sm:$0xff]
        %v202 = vld [vmem:[%s171 + $0x80] sm:$0xff]
        %v203 = vld [vmem:[%s171 + $0x88] sm:$0xff]
        %v204 = vld [vmem:[%s171 + $0x90] sm:$0xff]
        %v205 = vld [vmem:[%s171 + $0x98] sm:$0xff]
        %v206 = vld [vmem:[%s171 + $0xa0] sm:$0xff]
        %v207 = vld [vmem:[%s171 + $0xa8] sm:$0xff]
        %v208 = vld [vmem:[%s171 + $0xb0] sm:$0xff]
        %v209 = vld [vmem:[%s171 + $0xb8] sm:$0xff]
        %v210 = vld [vmem:[%s171 + $0xc0] sm:$0xff]
        %v211 = vld [vmem:[%s171 + $0xc8] sm:$0xff]
        %v212 = vld [vmem:[%s171 + $0xd0] sm:$0xff]
        %v213 = vld [vmem:[%s171 + $0xd8] sm:$0xff]
        %v214 = vld [vmem:[%s171 + $0xe0] sm:$0xff]
        %v215 = vld [vmem:[%s171 + $0xe8] sm:$0xff]
        %v216 = vld [vmem:[%s171 + $0xf0] sm:$0xff]
        %v217 = vld [vmem:[%s171 + $0xf8] sm:$0xff]
        %v218 = vld [vmem:[%s171 + $0x100] sm:$0xff]
        %v219 = vld [vmem:[%s171 + $0x108] sm:$0xff]
        %v220 = vld [vmem:[%s171 + $0x110] sm:$0xff]
        %v221 = vld [vmem:[%s171 + $0x118] sm:$0xff]
        %v222 = vld [vmem:[%s171 + $0x120] sm:$0xff]
        %v223 = vld [vmem:[%s171 + $0x128] sm:$0xff]
        %v224 = vld [vmem:[%s171 + $0x130] sm:$0xff]
        %v225 = vld [vmem:[%s171 + $0x138] sm:$0xff]
        %v226 = vld [vmem:[%s171 + $0x140] sm:$0xff]
        %v227 = vld [vmem:[%s171 + $0x148] sm:$0xff]
        %v228 = vld [vmem:[%s171 + $0x150] sm:$0xff]
        %v229 = vld [vmem:[%s171 + $0x158] sm:$0xff]
        %v230 = vld [vmem:[%s171 + $0x160] sm:$0xff]
        %v231 = vld [vmem:[%s171 + $0x168] sm:$0xff]
        %v232 = vld [vmem:[%s171 + $0x170] sm:$0xff]
        %v233 = vld [vmem:[%s171 + $0x178] sm:$0xff]
        %v234 = vld [vmem:[%s171 + $0x180] sm:$0xff]
        %v235 = vld [vmem:[%s171 + $0x188] sm:$0xff]
        %v236 = vld [vmem:[%s171 + $0x190] sm:$0xff]
        %v237 = vld [vmem:[%s171 + $0x198] sm:$0xff]
        %v238 = vld [vmem:[%s171 + $0x1a0] sm:$0xff]
        %v239 = vld [vmem:[%s171 + $0x1a8] sm:$0xff]
        %v240 = vld [vmem:[%s171 + $0x1b0] sm:$0xff]
        %v241 = vld [vmem:[%s171 + $0x1b8] sm:$0xff]
        %v242 = vld [vmem:[%s171 + $0x1c0] sm:$0xff]
        %v243 = vld [vmem:[%s171 + $0x1c8] sm:$0xff]
        %v244 = vld [vmem:[%s171 + $0x1d0] sm:$0xff]
        %v245 = vld [vmem:[%s171 + $0x1d8] sm:$0xff]
        %v246 = vld [vmem:[%s171 + $0x1e0] sm:$0xff]
        %v247 = vld [vmem:[%s171 + $0x1e8] sm:$0xff]
        %v248 = vld [vmem:[%s171 + $0x1f0] sm:$0xff]
        %v249 = vld [vmem:[%s171 + $0x1f8] sm:$0xff]
        %v250 = vld [vmem:[%s171 + $0x200] sm:$0xff]
        %v251 = vld [vmem:[%s171 + $0x208] sm:$0xff]
        %v252 = vld [vmem:[%s171 + $0x210] sm:$0xff]
        %v253 = vld [vmem:[%s171 + $0x218] sm:$0xff]
        %v254 = vld [vmem:[%s171 + $0x220] sm:$0xff]
        %v255 = vld [vmem:[%s171 + $0x228] sm:$0xff]
        %v256 = vld [vmem:[%s171 + $0x230] sm:$0xff]
        %v257 = vld [vmem:[%s171 + $0x238] sm:$0xff]
        %v258 = vld [vmem:[%s171 + $0x240] sm:$0xff]
        %v259 = vld [vmem:[%s171 + $0x248] sm:$0xff]
        %v260 = vld [vmem:[%s171 + $0x250] sm:$0xff]
        %v261 = vld [vmem:[%s171 + $0x258] sm:$0xff]
        %v262 = vld [vmem:[%s171 + $0x260] sm:$0xff]
        %v263 = vld [vmem:[%s171 + $0x268] sm:$0xff]
        %v264 = vld [vmem:[%s171 + $0x270] sm:$0xff]
        %v265 = vld [vmem:[%s171 + $0x278] sm:$0xff]
        %v266 = vld [vmem:[%s171 + $0x280] sm:$0xff]
        %v267 = vld [vmem:[%s171 + $0x288] sm:$0xff]
        %v268 = vld [vmem:[%s171 + $0x290] sm:$0xff]
        %v269 = vld [vmem:[%s171 + $0x298] sm:$0xff]
        %v270 = vld [vmem:[%s171 + $0x2a0] sm:$0xff]
        %v271 = vld [vmem:[%s171 + $0x2a8] sm:$0xff]
        %v272 = vld [vmem:[%s171 + $0x2b0] sm:$0xff]
        %v273 = vld [vmem:[%s171 + $0x2b8] sm:$0xff]
        %v274 = vld [vmem:[%s171 + $0x2c0] sm:$0xff]
        %v275 = vld [vmem:[%s171 + $0x2c8] sm:$0xff]
        %v276 = vld [vmem:[%s171 + $0x2d0] sm:$0xff]
        %v277 = vld [vmem:[%s171 + $0x2d8] sm:$0xff]
        %v278 = vld [vmem:[%s171 + $0x2e0] sm:$0xff]
        %v279 = vld [vmem:[%s171 + $0x2e8] sm:$0xff]
        %v280 = vld [vmem:[%s171 + $0x2f0] sm:$0xff]
        %v281 = vld [vmem:[%s171 + $0x2f8] sm:$0xff]
        %v282 = vld [vmem:[%s171 + $0x300] sm:$0xff]
        %v283 = vld [vmem:[%s171 + $0x308] sm:$0xff]
        %v284 = vld [vmem:[%s171 + $0x310] sm:$0xff]
        %v285 = vld [vmem:[%s171 + $0x318] sm:$0xff]
        %v286 = vld [vmem:[%s171 + $0x320] sm:$0xff]
        %v287 = vld [vmem:[%s171 + $0x328] sm:$0xff]
        %v288 = vld [vmem:[%s171 + $0x330] sm:$0xff]
        %v289 = vld [vmem:[%s171 + $0x338] sm:$0xff]
        %v290 = vld [vmem:[%s171 + $0x340] sm:$0xff]
        %v291 = vld [vmem:[%s171 + $0x348] sm:$0xff]
        %v292 = vld [vmem:[%s171 + $0x350] sm:$0xff]
        %v293 = vld [vmem:[%s171 + $0x358] sm:$0xff]
        %v294 = vld [vmem:[%s171 + $0x360] sm:$0xff]
        %v295 = vld [vmem:[%s171 + $0x368] sm:$0xff]
        %v296 = vld [vmem:[%s171 + $0x370] sm:$0xff]
        %v297 = vld [vmem:[%s171 + $0x378] sm:$0xff]
        %v298 = vld [vmem:[%s171 + $0x380] sm:$0xff]
        %v299 = vld [vmem:[%s171 + $0x388] sm:$0xff]
        %v300 = vld [vmem:[%s171 + $0x390] sm:$0xff]
        %v301 = vld [vmem:[%s171 + $0x398] sm:$0xff]
        %v302 = vld [vmem:[%s171 + $0x3a0] sm:$0xff]
        %v303 = vld [vmem:[%s171 + $0x3a8] sm:$0xff]
        %v304 = vld [vmem:[%s171 + $0x3b0] sm:$0xff]
        %v305 = vld [vmem:[%s171 + $0x3b8] sm:$0xff]
        %v306 = vld [vmem:[%s171 + $0x3c0] sm:$0xff]
        %v307 = vld [vmem:[%s171 + $0x3c8] sm:$0xff]
        %v308 = vld [vmem:[%s171 + $0x3d0] sm:$0xff]
        %v309 = vld [vmem:[%s171 + $0x3d8] sm:$0xff]
        %v310 = vld [vmem:[%s171 + $0x3e0] sm:$0xff]
        %v311 = vld [vmem:[%s171 + $0x3e8] sm:$0xff]
        %v312 = vld [vmem:[%s171 + $0x3f0] sm:$0xff]
        %v313 = vld [vmem:[%s171 + $0x3f8] sm:$0xff]
        %v314 = vld [vmem:[%s176] sm:$0xff]
        %v315 = vld [vmem:[%s176 + $0x8] sm:$0xff]
        %v316 = vld [vmem:[%s176 + $0x10] sm:$0xff]
        %v317 = vld [vmem:[%s176 + $0x18] sm:$0xff]
        %v318 = vld [vmem:[%s176 + $0x20] sm:$0xff]
        %v319 = vld [vmem:[%s176 + $0x28] sm:$0xff]
        %v320 = vld [vmem:[%s176 + $0x30] sm:$0xff]
        %v321 = vld [vmem:[%s176 + $0x38] sm:$0xff]
        %v322 = vld [vmem:[%s176 + $0x40] sm:$0xff]
        %v323 = vld [vmem:[%s176 + $0x48] sm:$0xff]
        %v324 = vld [vmem:[%s176 + $0x50] sm:$0xff]
        %v325 = vld [vmem:[%s176 + $0x58] sm:$0xff]
        %v326 = vld [vmem:[%s176 + $0x60] sm:$0xff]
        %v327 = vld [vmem:[%s176 + $0x68] sm:$0xff]
        %v328 = vld [vmem:[%s176 + $0x70] sm:$0xff]
        %v329 = vld [vmem:[%s176 + $0x78] sm:$0xff]
        %v330 = vld [vmem:[%s176 + $0x80] sm:$0xff]
        %v331 = vld [vmem:[%s176 + $0x88] sm:$0xff]
        %v332 = vld [vmem:[%s176 + $0x90] sm:$0xff]
        %v333 = vld [vmem:[%s176 + $0x98] sm:$0xff]
        %v334 = vld [vmem:[%s176 + $0xa0] sm:$0xff]
        %v335 = vld [vmem:[%s176 + $0xa8] sm:$0xff]
        %v336 = vld [vmem:[%s176 + $0xb0] sm:$0xff]
        %v337 = vld [vmem:[%s176 + $0xb8] sm:$0xff]
        %v338 = vld [vmem:[%s176 + $0xc0] sm:$0xff]
        %v339 = vld [vmem:[%s176 + $0xc8] sm:$0xff]
        %v340 = vld [vmem:[%s176 + $0xd0] sm:$0xff]
        %v341 = vld [vmem:[%s176 + $0xd8] sm:$0xff]
        %v342 = vld [vmem:[%s176 + $0xe0] sm:$0xff]
        %v343 = vld [vmem:[%s176 + $0xe8] sm:$0xff]
        %v344 = vld [vmem:[%s176 + $0xf0] sm:$0xff]
        %v345 = vld [vmem:[%s176 + $0xf8] sm:$0xff]
        %v346 = vld [vmem:[%s176 + $0x100] sm:$0xff]
        %v347 = vld [vmem:[%s176 + $0x108] sm:$0xff]
        %v348 = vld [vmem:[%s176 + $0x110] sm:$0xff]
        %v349 = vld [vmem:[%s176 + $0x118] sm:$0xff]
        %v350 = vld [vmem:[%s176 + $0x120] sm:$0xff]
        %v351 = vld [vmem:[%s176 + $0x128] sm:$0xff]
        %v352 = vld [vmem:[%s176 + $0x130] sm:$0xff]
        %v353 = vld [vmem:[%s176 + $0x138] sm:$0xff]
        %v354 = vld [vmem:[%s176 + $0x140] sm:$0xff]
        %v355 = vld [vmem:[%s176 + $0x148] sm:$0xff]
        %v356 = vld [vmem:[%s176 + $0x150] sm:$0xff]
        %v357 = vld [vmem:[%s176 + $0x158] sm:$0xff]
        %v358 = vld [vmem:[%s176 + $0x160] sm:$0xff]
        %v359 = vld [vmem:[%s176 + $0x168] sm:$0xff]
        %v360 = vld [vmem:[%s176 + $0x170] sm:$0xff]
        %v361 = vld [vmem:[%s176 + $0x178] sm:$0xff]
        %v362 = vld [vmem:[%s176 + $0x180] sm:$0xff]
        %v363 = vld [vmem:[%s176 + $0x188] sm:$0xff]
        %v364 = vld [vmem:[%s176 + $0x190] sm:$0xff]
        %v365 = vld [vmem:[%s176 + $0x198] sm:$0xff]
        %v366 = vld [vmem:[%s176 + $0x1a0] sm:$0xff]
        %v367 = vld [vmem:[%s176 + $0x1a8] sm:$0xff]
        %v368 = vld [vmem:[%s176 + $0x1b0] sm:$0xff]
        %v369 = vld [vmem:[%s176 + $0x1b8] sm:$0xff]
        %v370 = vld [vmem:[%s176 + $0x1c0] sm:$0xff]
        %v371 = vld [vmem:[%s176 + $0x1c8] sm:$0xff]
        %v372 = vld [vmem:[%s176 + $0x1d0] sm:$0xff]
        %v373 = vld [vmem:[%s176 + $0x1d8] sm:$0xff]
        %v374 = vld [vmem:[%s176 + $0x1e0] sm:$0xff]
        %v375 = vld [vmem:[%s176 + $0x1e8] sm:$0xff]
        %v376 = vld [vmem:[%s176 + $0x1f0] sm:$0xff]
        %v377 = vld [vmem:[%s176 + $0x1f8] sm:$0xff]
        %v378 = vld [vmem:[%s176 + $0x200] sm:$0xff]
        %v379 = vld [vmem:[%s176 + $0x208] sm:$0xff]
        %v380 = vld [vmem:[%s176 + $0x210] sm:$0xff]
        %v381 = vld [vmem:[%s176 + $0x218] sm:$0xff]
        %v382 = vld [vmem:[%s176 + $0x220] sm:$0xff]
        %v383 = vld [vmem:[%s176 + $0x228] sm:$0xff]
        %v384 = vld [vmem:[%s176 + $0x230] sm:$0xff]
        %v385 = vld [vmem:[%s176 + $0x238] sm:$0xff]
        %v386 = vld [vmem:[%s176 + $0x240] sm:$0xff]
        %v387 = vld [vmem:[%s176 + $0x248] sm:$0xff]
        %v388 = vld [vmem:[%s176 + $0x250] sm:$0xff]
        %v389 = vld [vmem:[%s176 + $0x258] sm:$0xff]
        %v390 = vld [vmem:[%s176 + $0x260] sm:$0xff]
        %v391 = vld [vmem:[%s176 + $0x268] sm:$0xff]
        %v392 = vld [vmem:[%s176 + $0x270] sm:$0xff]
        %v393 = vld [vmem:[%s176 + $0x278] sm:$0xff]
        %v394 = vld [vmem:[%s176 + $0x280] sm:$0xff]
        %v395 = vld [vmem:[%s176 + $0x288] sm:$0xff]
        %v396 = vld [vmem:[%s176 + $0x290] sm:$0xff]
        %v397 = vld [vmem:[%s176 + $0x298] sm:$0xff]
        %v398 = vld [vmem:[%s176 + $0x2a0] sm:$0xff]
        %v399 = vld [vmem:[%s176 + $0x2a8] sm:$0xff]
        %v400 = vld [vmem:[%s176 + $0x2b0] sm:$0xff]
        %v401 = vld [vmem:[%s176 + $0x2b8] sm:$0xff]
        %v402 = vld [vmem:[%s176 + $0x2c0] sm:$0xff]
        %v403 = vld [vmem:[%s176 + $0x2c8] sm:$0xff]
        %v404 = vld [vmem:[%s176 + $0x2d0] sm:$0xff]
        %v405 = vld [vmem:[%s176 + $0x2d8] sm:$0xff]
        %v406 = vld [vmem:[%s176 + $0x2e0] sm:$0xff]
        %v407 = vld [vmem:[%s176 + $0x2e8] sm:$0xff]
        %v408 = vld [vmem:[%s176 + $0x2f0] sm:$0xff]
        %v409 = vld [vmem:[%s176 + $0x2f8] sm:$0xff]
        %v410 = vld [vmem:[%s176 + $0x300] sm:$0xff]
        %v411 = vld [vmem:[%s176 + $0x308] sm:$0xff]
        %v412 = vld [vmem:[%s176 + $0x310] sm:$0xff]
        %v413 = vld [vmem:[%s176 + $0x318] sm:$0xff]
        %v414 = vld [vmem:[%s176 + $0x320] sm:$0xff]
        %v415 = vld [vmem:[%s176 + $0x328] sm:$0xff]
        %v416 = vld [vmem:[%s176 + $0x330] sm:$0xff]
        %v417 = vld [vmem:[%s176 + $0x338] sm:$0xff]
        %v418 = vld [vmem:[%s176 + $0x340] sm:$0xff]
        %v419 = vld [vmem:[%s176 + $0x348] sm:$0xff]
        %v420 = vld [vmem:[%s176 + $0x350] sm:$0xff]
        %v421 = vld [vmem:[%s176 + $0x358] sm:$0xff]
        %v422 = vld [vmem:[%s176 + $0x360] sm:$0xff]
        %v423 = vld [vmem:[%s176 + $0x368] sm:$0xff]
        %v424 = vld [vmem:[%s176 + $0x370] sm:$0xff]
        %v425 = vld [vmem:[%s176 + $0x378] sm:$0xff]
        %v426 = vld [vmem:[%s176 + $0x380] sm:$0xff]
        %v427 = vld [vmem:[%s176 + $0x388] sm:$0xff]
        %v428 = vld [vmem:[%s176 + $0x390] sm:$0xff]
        %v429 = vld [vmem:[%s176 + $0x398] sm:$0xff]
        %v430 = vld [vmem:[%s176 + $0x3a0] sm:$0xff]
        %v431 = vld [vmem:[%s176 + $0x3a8] sm:$0xff]
        %v432 = vld [vmem:[%s176 + $0x3b0] sm:$0xff]
        %v433 = vld [vmem:[%s176 + $0x3b8] sm:$0xff]
        %v434 = vld [vmem:[%s176 + $0x3c0] sm:$0xff]
        %v435 = vld [vmem:[%s176 + $0x3c8] sm:$0xff]
        %v436 = vld [vmem:[%s176 + $0x3d0] sm:$0xff]
        %v437 = vld [vmem:[%s176 + $0x3d8] sm:$0xff]
        %v438 = vld [vmem:[%s176 + $0x3e0] sm:$0xff]
        %v439 = vld [vmem:[%s176 + $0x3e8] sm:$0xff]
        %v440 = vld [vmem:[%s176 + $0x3f0] sm:$0xff]
        %v441 = vld [vmem:[%s176 + $0x3f8] sm:$0xff]
        %v442 = vld [vmem:[#allocation2] sm:$0x1f]
        %v443 = vld [vmem:[#allocation2 + $0x8] sm:$0x1f]
        %v444 = vpack.c.bf16 %v442, %v442
        %v445 = vpack.c.bf16 %v443, %v443
        %v574 = vunpack.c.l.b16 %v186
        %v575 = vunpack.c.h.b16 %v186
        %v576 = vunpack.c.l.b16 %v187
        %v577 = vunpack.c.h.b16 %v187
        %v578 = vunpack.c.l.b16 %v188
        %v579 = vunpack.c.h.b16 %v188
        %v580 = vunpack.c.l.b16 %v189
        %v581 = vunpack.c.h.b16 %v189
        %v582 = vunpack.c.l.b16 %v190
        %v583 = vunpack.c.h.b16 %v190
        %v584 = vunpack.c.l.b16 %v191
        %v585 = vunpack.c.h.b16 %v191
        %v586 = vunpack.c.l.b16 %v192
        %v587 = vunpack.c.h.b16 %v192
        %v588 = vunpack.c.l.b16 %v193
        %v589 = vunpack.c.h.b16 %v193
        %v590 = vunpack.c.l.b16 %v194
        %v591 = vunpack.c.h.b16 %v194
        %v592 = vunpack.c.l.b16 %v195
        %v593 = vunpack.c.h.b16 %v195
        %v594 = vunpack.c.l.b16 %v196
        %v595 = vunpack.c.h.b16 %v196
        %v596 = vunpack.c.l.b16 %v197
        %v597 = vunpack.c.h.b16 %v197
        %v598 = vunpack.c.l.b16 %v198
        %v599 = vunpack.c.h.b16 %v198
        %v600 = vunpack.c.l.b16 %v199
        %v601 = vunpack.c.h.b16 %v199
        %v602 = vunpack.c.l.b16 %v200
        %v603 = vunpack.c.h.b16 %v200
        %v604 = vunpack.c.l.b16 %v201
        %v605 = vunpack.c.h.b16 %v201
        %v606 = vunpack.c.l.b16 %v202
        %v607 = vunpack.c.h.b16 %v202
        %v608 = vunpack.c.l.b16 %v203
        %v609 = vunpack.c.h.b16 %v203
        %v610 = vunpack.c.l.b16 %v204
        %v611 = vunpack.c.h.b16 %v204
        %v612 = vunpack.c.l.b16 %v205
        %v613 = vunpack.c.h.b16 %v205
        %v614 = vunpack.c.l.b16 %v206
        %v615 = vunpack.c.h.b16 %v206
        %v616 = vunpack.c.l.b16 %v207
        %v617 = vunpack.c.h.b16 %v207
        %v618 = vunpack.c.l.b16 %v208
        %v619 = vunpack.c.h.b16 %v208
        %v620 = vunpack.c.l.b16 %v209
        %v621 = vunpack.c.h.b16 %v209
        %v622 = vunpack.c.l.b16 %v210
        %v623 = vunpack.c.h.b16 %v210
        %v624 = vunpack.c.l.b16 %v211
        %v625 = vunpack.c.h.b16 %v211
        %v626 = vunpack.c.l.b16 %v212
        %v627 = vunpack.c.h.b16 %v212
        %v628 = vunpack.c.l.b16 %v213
        %v629 = vunpack.c.h.b16 %v213
        %v630 = vunpack.c.l.b16 %v214
        %v631 = vunpack.c.h.b16 %v214
        %v632 = vunpack.c.l.b16 %v215
        %v633 = vunpack.c.h.b16 %v215
        %v634 = vunpack.c.l.b16 %v216
        %v635 = vunpack.c.h.b16 %v216
        %v636 = vunpack.c.l.b16 %v217
        %v637 = vunpack.c.h.b16 %v217
        %v638 = vunpack.c.l.b16 %v218
        %v639 = vunpack.c.h.b16 %v218
        %v640 = vunpack.c.l.b16 %v219
        %v641 = vunpack.c.h.b16 %v219
        %v642 = vunpack.c.l.b16 %v220
        %v643 = vunpack.c.h.b16 %v220
        %v644 = vunpack.c.l.b16 %v221
        %v645 = vunpack.c.h.b16 %v221
        %v646 = vunpack.c.l.b16 %v222
        %v647 = vunpack.c.h.b16 %v222
        %v648 = vunpack.c.l.b16 %v223
        %v649 = vunpack.c.h.b16 %v223
        %v650 = vunpack.c.l.b16 %v224
        %v651 = vunpack.c.h.b16 %v224
        %v652 = vunpack.c.l.b16 %v225
        %v653 = vunpack.c.h.b16 %v225
        %v654 = vunpack.c.l.b16 %v226
        %v655 = vunpack.c.h.b16 %v226
        %v656 = vunpack.c.l.b16 %v227
        %v657 = vunpack.c.h.b16 %v227
        %v658 = vunpack.c.l.b16 %v228
        %v659 = vunpack.c.h.b16 %v228
        %v660 = vunpack.c.l.b16 %v229
        %v661 = vunpack.c.h.b16 %v229
        %v662 = vunpack.c.l.b16 %v230
        %v663 = vunpack.c.h.b16 %v230
        %v664 = vunpack.c.l.b16 %v231
        %v665 = vunpack.c.h.b16 %v231
        %v666 = vunpack.c.l.b16 %v232
        %v667 = vunpack.c.h.b16 %v232
        %v668 = vunpack.c.l.b16 %v233
        %v669 = vunpack.c.h.b16 %v233
        %v670 = vunpack.c.l.b16 %v234
        %v671 = vunpack.c.h.b16 %v234
        %v672 = vunpack.c.l.b16 %v235
        %v673 = vunpack.c.h.b16 %v235
        %v674 = vunpack.c.l.b16 %v236
        %v675 = vunpack.c.h.b16 %v236
        %v676 = vunpack.c.l.b16 %v237
        %v677 = vunpack.c.h.b16 %v237
        %v678 = vunpack.c.l.b16 %v238
        %v679 = vunpack.c.h.b16 %v238
        %v680 = vunpack.c.l.b16 %v239
        %v681 = vunpack.c.h.b16 %v239
        %v682 = vunpack.c.l.b16 %v240
        %v683 = vunpack.c.h.b16 %v240
        %v684 = vunpack.c.l.b16 %v241
        %v685 = vunpack.c.h.b16 %v241
        %v686 = vunpack.c.l.b16 %v242
        %v687 = vunpack.c.h.b16 %v242
        %v688 = vunpack.c.l.b16 %v243
        %v689 = vunpack.c.h.b16 %v243
        %v690 = vunpack.c.l.b16 %v244
        %v691 = vunpack.c.h.b16 %v244
        %v692 = vunpack.c.l.b16 %v245
        %v693 = vunpack.c.h.b16 %v245
        %v694 = vunpack.c.l.b16 %v246
        %v695 = vunpack.c.h.b16 %v246
        %v696 = vunpack.c.l.b16 %v247
        %v697 = vunpack.c.h.b16 %v247
        %v698 = vunpack.c.l.b16 %v248
        %v699 = vunpack.c.h.b16 %v248
        %v700 = vunpack.c.l.b16 %v249
        %v701 = vunpack.c.h.b16 %v249
        %v702 = vunpack.c.l.b16 %v250
        %v703 = vunpack.c.h.b16 %v250
        %v704 = vunpack.c.l.b16 %v251
        %v705 = vunpack.c.h.b16 %v251
        %v706 = vunpack.c.l.b16 %v252
        %v707 = vunpack.c.h.b16 %v252
        %v708 = vunpack.c.l.b16 %v253
        %v709 = vunpack.c.h.b16 %v253
        %v710 = vunpack.c.l.b16 %v254
        %v711 = vunpack.c.h.b16 %v254
        %v712 = vunpack.c.l.b16 %v255
        %v713 = vunpack.c.h.b16 %v255
        %v714 = vunpack.c.l.b16 %v256
        %v715 = vunpack.c.h.b16 %v256
        %v716 = vunpack.c.l.b16 %v257
        %v717 = vunpack.c.h.b16 %v257
        %v718 = vunpack.c.l.b16 %v258
        %v719 = vunpack.c.h.b16 %v258
        %v720 = vunpack.c.l.b16 %v259
        %v721 = vunpack.c.h.b16 %v259
        %v722 = vunpack.c.l.b16 %v260
        %v723 = vunpack.c.h.b16 %v260
        %v724 = vunpack.c.l.b16 %v261
        %v725 = vunpack.c.h.b16 %v261
        %v726 = vunpack.c.l.b16 %v262
        %v727 = vunpack.c.h.b16 %v262
        %v728 = vunpack.c.l.b16 %v263
        %v729 = vunpack.c.h.b16 %v263
        %v730 = vunpack.c.l.b16 %v264
        %v731 = vunpack.c.h.b16 %v264
        %v732 = vunpack.c.l.b16 %v265
        %v733 = vunpack.c.h.b16 %v265
        %v734 = vunpack.c.l.b16 %v266
        %v735 = vunpack.c.h.b16 %v266
        %v736 = vunpack.c.l.b16 %v267
        %v737 = vunpack.c.h.b16 %v267
        %v738 = vunpack.c.l.b16 %v268
        %v739 = vunpack.c.h.b16 %v268
        %v740 = vunpack.c.l.b16 %v269
        %v741 = vunpack.c.h.b16 %v269
        %v742 = vunpack.c.l.b16 %v270
        %v743 = vunpack.c.h.b16 %v270
        %v744 = vunpack.c.l.b16 %v271
        %v745 = vunpack.c.h.b16 %v271
        %v746 = vunpack.c.l.b16 %v272
        %v747 = vunpack.c.h.b16 %v272
        %v748 = vunpack.c.l.b16 %v273
        %v749 = vunpack.c.h.b16 %v273
        %v750 = vunpack.c.l.b16 %v274
        %v751 = vunpack.c.h.b16 %v274
        %v752 = vunpack.c.l.b16 %v275
        %v753 = vunpack.c.h.b16 %v275
        %v754 = vunpack.c.l.b16 %v276
        %v755 = vunpack.c.h.b16 %v276
        %v756 = vunpack.c.l.b16 %v277
        %v757 = vunpack.c.h.b16 %v277
        %v758 = vunpack.c.l.b16 %v278
        %v759 = vunpack.c.h.b16 %v278
        %v760 = vunpack.c.l.b16 %v279
        %v761 = vunpack.c.h.b16 %v279
        %v762 = vunpack.c.l.b16 %v280
        %v763 = vunpack.c.h.b16 %v280
        %v764 = vunpack.c.l.b16 %v281
        %v765 = vunpack.c.h.b16 %v281
        %v766 = vunpack.c.l.b16 %v282
        %v767 = vunpack.c.h.b16 %v282
        %v768 = vunpack.c.l.b16 %v283
        %v769 = vunpack.c.h.b16 %v283
        %v770 = vunpack.c.l.b16 %v284
        %v771 = vunpack.c.h.b16 %v284
        %v772 = vunpack.c.l.b16 %v285
        %v773 = vunpack.c.h.b16 %v285
        %v774 = vunpack.c.l.b16 %v286
        %v775 = vunpack.c.h.b16 %v286
        %v776 = vunpack.c.l.b16 %v287
        %v777 = vunpack.c.h.b16 %v287
        %v778 = vunpack.c.l.b16 %v288
        %v779 = vunpack.c.h.b16 %v288
        %v780 = vunpack.c.l.b16 %v289
        %v781 = vunpack.c.h.b16 %v289
        %v782 = vunpack.c.l.b16 %v290
        %v783 = vunpack.c.h.b16 %v290
        %v784 = vunpack.c.l.b16 %v291
        %v785 = vunpack.c.h.b16 %v291
        %v786 = vunpack.c.l.b16 %v292
        %v787 = vunpack.c.h.b16 %v292
        %v788 = vunpack.c.l.b16 %v293
        %v789 = vunpack.c.h.b16 %v293
        %v790 = vunpack.c.l.b16 %v294
        %v791 = vunpack.c.h.b16 %v294
        %v792 = vunpack.c.l.b16 %v295
        %v793 = vunpack.c.h.b16 %v295
        %v794 = vunpack.c.l.b16 %v296
        %v795 = vunpack.c.h.b16 %v296
        %v796 = vunpack.c.l.b16 %v297
        %v797 = vunpack.c.h.b16 %v297
        %v798 = vunpack.c.l.b16 %v298
        %v799 = vunpack.c.h.b16 %v298
        %v800 = vunpack.c.l.b16 %v299
        %v801 = vunpack.c.h.b16 %v299
        %v802 = vunpack.c.l.b16 %v300
        %v803 = vunpack.c.h.b16 %v300
        %v804 = vunpack.c.l.b16 %v301
        %v805 = vunpack.c.h.b16 %v301
        %v806 = vunpack.c.l.b16 %v302
        %v807 = vunpack.c.h.b16 %v302
        %v808 = vunpack.c.l.b16 %v303
        %v809 = vunpack.c.h.b16 %v303
        %v810 = vunpack.c.l.b16 %v304
        %v811 = vunpack.c.h.b16 %v304
        %v812 = vunpack.c.l.b16 %v305
        %v813 = vunpack.c.h.b16 %v305
        %v814 = vunpack.c.l.b16 %v306
        %v815 = vunpack.c.h.b16 %v306
        %v816 = vunpack.c.l.b16 %v307
        %v817 = vunpack.c.h.b16 %v307
        %v818 = vunpack.c.l.b16 %v308
        %v819 = vunpack.c.h.b16 %v308
        %v820 = vunpack.c.l.b16 %v309
        %v821 = vunpack.c.h.b16 %v309
        %v822 = vunpack.c.l.b16 %v310
        %v823 = vunpack.c.h.b16 %v310
        %v824 = vunpack.c.l.b16 %v311
        %v825 = vunpack.c.h.b16 %v311
        %v826 = vunpack.c.l.b16 %v312
        %v827 = vunpack.c.h.b16 %v312
        %v828 = vunpack.c.l.b16 %v313
        %v829 = vunpack.c.h.b16 %v313
        %v830 = vpack.c.b16 %v582, %v574
        %v831 = vpack.c.b16 %v583, %v575
        %v832 = vpack.c.b16 %v584, %v576
        %v833 = vpack.c.b16 %v585, %v577
        %v834 = vpack.c.b16 %v586, %v578
        %v835 = vpack.c.b16 %v587, %v579
        %v836 = vpack.c.b16 %v588, %v580
        %v837 = vpack.c.b16 %v589, %v581
        %v838 = vpack.c.b16 %v598, %v590
        %v839 = vpack.c.b16 %v599, %v591
        %v840 = vpack.c.b16 %v600, %v592
        %v841 = vpack.c.b16 %v601, %v593
        %v842 = vpack.c.b16 %v602, %v594
        %v843 = vpack.c.b16 %v603, %v595
        %v844 = vpack.c.b16 %v604, %v596
        %v845 = vpack.c.b16 %v605, %v597
        %v846 = vpack.c.b16 %v614, %v606
        %v847 = vpack.c.b16 %v615, %v607
        %v848 = vpack.c.b16 %v616, %v608
        %v849 = vpack.c.b16 %v617, %v609
        %v850 = vpack.c.b16 %v618, %v610
        %v851 = vpack.c.b16 %v619, %v611
        %v852 = vpack.c.b16 %v620, %v612
        %v853 = vpack.c.b16 %v621, %v613
        %v854 = vpack.c.b16 %v630, %v622
        %v855 = vpack.c.b16 %v631, %v623
        %v856 = vpack.c.b16 %v632, %v624
        %v857 = vpack.c.b16 %v633, %v625
        %v858 = vpack.c.b16 %v634, %v626
        %v859 = vpack.c.b16 %v635, %v627
        %v860 = vpack.c.b16 %v636, %v628
        %v861 = vpack.c.b16 %v637, %v629
        %v862 = vpack.c.b16 %v646, %v638
        %v863 = vpack.c.b16 %v647, %v639
        %v864 = vpack.c.b16 %v648, %v640
        %v865 = vpack.c.b16 %v649, %v641
        %v866 = vpack.c.b16 %v650, %v642
        %v867 = vpack.c.b16 %v651, %v643
        %v868 = vpack.c.b16 %v652, %v644
        %v869 = vpack.c.b16 %v653, %v645
        %v870 = vpack.c.b16 %v662, %v654
        %v871 = vpack.c.b16 %v663, %v655
        %v872 = vpack.c.b16 %v664, %v656
        %v873 = vpack.c.b16 %v665, %v657
        %v874 = vpack.c.b16 %v666, %v658
        %v875 = vpack.c.b16 %v667, %v659
        %v876 = vpack.c.b16 %v668, %v660
        %v877 = vpack.c.b16 %v669, %v661
        %v878 = vpack.c.b16 %v678, %v670
        %v879 = vpack.c.b16 %v679, %v671
        %v880 = vpack.c.b16 %v680, %v672
        %v881 = vpack.c.b16 %v681, %v673
        %v882 = vpack.c.b16 %v682, %v674
        %v883 = vpack.c.b16 %v683, %v675
        %v884 = vpack.c.b16 %v684, %v676
        %v885 = vpack.c.b16 %v685, %v677
        %v886 = vpack.c.b16 %v694, %v686
        %v887 = vpack.c.b16 %v695, %v687
        %v888 = vpack.c.b16 %v696, %v688
        %v889 = vpack.c.b16 %v697, %v689
        %v890 = vpack.c.b16 %v698, %v690
        %v891 = vpack.c.b16 %v699, %v691
        %v892 = vpack.c.b16 %v700, %v692
        %v893 = vpack.c.b16 %v701, %v693
        %v894 = vpack.c.b16 %v710, %v702
        %v895 = vpack.c.b16 %v711, %v703
        %v896 = vpack.c.b16 %v712, %v704
        %v897 = vpack.c.b16 %v713, %v705
        %v898 = vpack.c.b16 %v714, %v706
        %v899 = vpack.c.b16 %v715, %v707
        %v900 = vpack.c.b16 %v716, %v708
        %v901 = vpack.c.b16 %v717, %v709
        %v902 = vpack.c.b16 %v726, %v718
        %v903 = vpack.c.b16 %v727, %v719
        %v904 = vpack.c.b16 %v728, %v720
        %v905 = vpack.c.b16 %v729, %v721
        %v906 = vpack.c.b16 %v730, %v722
        %v907 = vpack.c.b16 %v731, %v723
        %v908 = vpack.c.b16 %v732, %v724
        %v909 = vpack.c.b16 %v733, %v725
        %v910 = vpack.c.b16 %v742, %v734
        %v911 = vpack.c.b16 %v743, %v735
        %v912 = vpack.c.b16 %v744, %v736
        %v913 = vpack.c.b16 %v745, %v737
        %v914 = vpack.c.b16 %v746, %v738
        %v915 = vpack.c.b16 %v747, %v739
        %v916 = vpack.c.b16 %v748, %v740
        %v917 = vpack.c.b16 %v749, %v741
        %v918 = vpack.c.b16 %v758, %v750
        %v919 = vpack.c.b16 %v759, %v751
        %v920 = vpack.c.b16 %v760, %v752
        %v921 = vpack.c.b16 %v761, %v753
        %v922 = vpack.c.b16 %v762, %v754
        %v923 = vpack.c.b16 %v763, %v755
        %v924 = vpack.c.b16 %v764, %v756
        %v925 = vpack.c.b16 %v765, %v757
        %v926 = vpack.c.b16 %v774, %v766
        %v927 = vpack.c.b16 %v775, %v767
        %v928 = vpack.c.b16 %v776, %v768
        %v929 = vpack.c.b16 %v777, %v769
        %v930 = vpack.c.b16 %v778, %v770
        %v931 = vpack.c.b16 %v779, %v771
        %v932 = vpack.c.b16 %v780, %v772
        %v933 = vpack.c.b16 %v781, %v773
        %v934 = vpack.c.b16 %v790, %v782
        %v935 = vpack.c.b16 %v791, %v783
        %v936 = vpack.c.b16 %v792, %v784
        %v937 = vpack.c.b16 %v793, %v785
        %v938 = vpack.c.b16 %v794, %v786
        %v939 = vpack.c.b16 %v795, %v787
        %v940 = vpack.c.b16 %v796, %v788
        %v941 = vpack.c.b16 %v797, %v789
        %v942 = vpack.c.b16 %v806, %v798
        %v943 = vpack.c.b16 %v807, %v799
        %v944 = vpack.c.b16 %v808, %v800
        %v945 = vpack.c.b16 %v809, %v801
        %v946 = vpack.c.b16 %v810, %v802
        %v947 = vpack.c.b16 %v811, %v803
        %v948 = vpack.c.b16 %v812, %v804
        %v949 = vpack.c.b16 %v813, %v805
        %v950 = vpack.c.b16 %v822, %v814
        %v951 = vpack.c.b16 %v823, %v815
        %v952 = vpack.c.b16 %v824, %v816
        %v953 = vpack.c.b16 %v825, %v817
        %v954 = vpack.c.b16 %v826, %v818
        %v955 = vpack.c.b16 %v827, %v819
        %v956 = vpack.c.b16 %v828, %v820
        %v957 = vpack.c.b16 %v829, %v821
        %1086 = vmatprep.subr.bf16.mxu0 %v831
        %1087 = vmatpush1.bf16.msra.mxu0 %v830
        %1088 = vmatprep.subr.bf16.mxu0 %v839
        %1089 = vmatpush1.bf16.msra.mxu0 %v838
        %1090 = vmatprep.subr.bf16.mxu0 %v847
        %1091 = vmatpush1.bf16.msra.mxu0 %v846
        %1092 = vmatprep.subr.bf16.mxu0 %v855
        %1093 = vmatpush1.bf16.msra.mxu0 %v854
        %1094 = vmatprep.subr.bf16.mxu0 %v863
        %1095 = vmatpush1.bf16.msra.mxu0 %v862
        %1096 = vmatprep.subr.bf16.mxu0 %v871
        %1097 = vmatpush1.bf16.msra.mxu0 %v870
        %1098 = vmatprep.subr.bf16.mxu0 %v879
        %1099 = vmatpush1.bf16.msra.mxu0 %v878
        %1100 = vmatprep.subr.bf16.mxu0 %v887
        %1101 = vmatpush1.bf16.msra.mxu0 %v886
        %1102 = vmatprep.subr.bf16.mxu0 %v895
        %1103 = vmatpush1.bf16.msra.mxu0 %v894
        %1104 = vmatprep.subr.bf16.mxu0 %v903
        %1105 = vmatpush1.bf16.msra.mxu0 %v902
        %1106 = vmatprep.subr.bf16.mxu0 %v911
        %1107 = vmatpush1.bf16.msra.mxu0 %v910
        %1108 = vmatprep.subr.bf16.mxu0 %v919
        %1109 = vmatpush1.bf16.msra.mxu0 %v918
        %1110 = vmatprep.subr.bf16.mxu0 %v927
        %1111 = vmatpush1.bf16.msra.mxu0 %v926
        %1112 = vmatprep.subr.bf16.mxu0 %v935
        %1113 = vmatpush1.bf16.msra.mxu0 %v934
        %1114 = vmatprep.subr.bf16.mxu0 %v943
        %1115 = vmatpush1.bf16.msra.mxu0 %v942
        %1116 = vmatprep.subr.bf16.mxu0 %v951
        %1117 = vmatpush1.bf16.msra.mxu0 %v950
        %1118 = vmatprep.mubr.bf16.mxu0 %v445
        %1119 = vmatmul.mubr.bf16.gmra.mrb[0].mxu0 %v444
        %v1120 = vpop.f32.mrb[0].mxu0
        %v1121 = vadd.f32 0.0, %v1120
        %v1122 = vpop.f32.mrb[0].mxu0
        %v1123 = vadd.f32 0.0, %v1122
        %v1124 = vpop.f32.mrb[0].mxu0
        %v1125 = vpop.f32.mrb[0].mxu0
        %1126 = vdwg.mxu0
        %1127 = vmatprep.subr.bf16.mxu0 %v833
        %1128 = vmatpush1.bf16.msra.mxu0 %v832
        %1129 = vmatprep.subr.bf16.mxu0 %v841
        %1130 = vmatpush1.bf16.msra.mxu0 %v840
        %1131 = vmatprep.subr.bf16.mxu0 %v849
        %1132 = vmatpush1.bf16.msra.mxu0 %v848
        %1133 = vmatprep.subr.bf16.mxu0 %v857
        %1134 = vmatpush1.bf16.msra.mxu0 %v856
        %1135 = vmatprep.subr.bf16.mxu0 %v865
        %1136 = vmatpush1.bf16.msra.mxu0 %v864
        %1137 = vmatprep.subr.bf16.mxu0 %v873
        %1138 = vmatpush1.bf16.msra.mxu0 %v872
        %1139 = vmatprep.subr.bf16.mxu0 %v881
        %1140 = vmatpush1.bf16.msra.mxu0 %v880
        %1141 = vmatprep.subr.bf16.mxu0 %v889
        %1142 = vmatpush1.bf16.msra.mxu0 %v888
        %1143 = vmatprep.subr.bf16.mxu0 %v897
        %1144 = vmatpush1.bf16.msra.mxu0 %v896
        %1145 = vmatprep.subr.bf16.mxu0 %v905
        %1146 = vmatpush1.bf16.msra.mxu0 %v904
        %1147 = vmatprep.subr.bf16.mxu0 %v913
        %1148 = vmatpush1.bf16.msra.mxu0 %v912
        %1149 = vmatprep.subr.bf16.mxu0 %v921
        %1150 = vmatpush1.bf16.msra.mxu0 %v920
        %1151 = vmatprep.subr.bf16.mxu0 %v929
        %1152 = vmatpush1.bf16.msra.mxu0 %v928
        %1153 = vmatprep.subr.bf16.mxu0 %v937
        %1154 = vmatpush1.bf16.msra.mxu0 %v936
        %1155 = vmatprep.subr.bf16.mxu0 %v945
        %1156 = vmatpush1.bf16.msra.mxu0 %v944
        %1157 = vmatprep.subr.bf16.mxu0 %v953
        %1158 = vmatpush1.bf16.msra.mxu0 %v952
        %1159 = vmatprep.mubr.bf16.mxu0 %v445
        %1160 = vmatmul.mubr.bf16.gmra.mrb[0].mxu0 %v444
        %v1161 = vpop.f32.mrb[0].mxu0
        %v1162 = vadd.f32 0.0, %v1161
        %v1163 = vpop.f32.mrb[0].mxu0
        %v1164 = vadd.f32 0.0, %v1163
        %v1165 = vpop.f32.mrb[0].mxu0
        %v1166 = vpop.f32.mrb[0].mxu0
        %1167 = vdwg.mxu0
        %1168 = vmatprep.subr.bf16.mxu0 %v835
        %1169 = vmatpush1.bf16.msra.mxu0 %v834
        %1170 = vmatprep.subr.bf16.mxu0 %v843
        %1171 = vmatpush1.bf16.msra.mxu0 %v842
        %1172 = vmatprep.subr.bf16.mxu0 %v851
        %1173 = vmatpush1.bf16.msra.mxu0 %v850
        %1174 = vmatprep.subr.bf16.mxu0 %v859
        %1175 = vmatpush1.bf16.msra.mxu0 %v858
        %1176 = vmatprep.subr.bf16.mxu0 %v867
        %1177 = vmatpush1.bf16.msra.mxu0 %v866
        %1178 = vmatprep.subr.bf16.mxu0 %v875
        %1179 = vmatpush1.bf16.msra.mxu0 %v874
        %1180 = vmatprep.subr.bf16.mxu0 %v883
        %1181 = vmatpush1.bf16.msra.mxu0 %v882
        %1182 = vmatprep.subr.bf16.mxu0 %v891
        %1183 = vmatpush1.bf16.msra.mxu0 %v890
        %1184 = vmatprep.subr.bf16.mxu0 %v899
        %1185 = vmatpush1.bf16.msra.mxu0 %v898
        %1186 = vmatprep.subr.bf16.mxu0 %v907
        %1187 = vmatpush1.bf16.msra.mxu0 %v906
        %1188 = vmatprep.subr.bf16.mxu0 %v915
        %1189 = vmatpush1.bf16.msra.mxu0 %v914
        %1190 = vmatprep.subr.bf16.mxu0 %v923
        %1191 = vmatpush1.bf16.msra.mxu0 %v922
        %1192 = vmatprep.subr.bf16.mxu0 %v931
        %1193 = vmatpush1.bf16.msra.mxu0 %v930
        %1194 = vmatprep.subr.bf16.mxu0 %v939
        %1195 = vmatpush1.bf16.msra.mxu0 %v938
        %1196 = vmatprep.subr.bf16.mxu0 %v947
        %1197 = vmatpush1.bf16.msra.mxu0 %v946
        %1198 = vmatprep.subr.bf16.mxu0 %v955
        %1199 = vmatpush1.bf16.msra.mxu0 %v954
        %1200 = vmatprep.mubr.bf16.mxu0 %v445
        %1201 = vmatmul.mubr.bf16.gmra.mrb[0].mxu0 %v444
        %v1202 = vpop.f32.mrb[0].mxu0
        %v1203 = vadd.f32 0.0, %v1202
        %v1204 = vpop.f32.mrb[0].mxu0
        %v1205 = vadd.f32 0.0, %v1204
        %v1206 = vpop.f32.mrb[0].mxu0
        %v1207 = vpop.f32.mrb[0].mxu0
        %1208 = vdwg.mxu0
        %1209 = vmatprep.subr.bf16.mxu0 %v837
        %1210 = vmatpush1.bf16.msra.mxu0 %v836
        %1211 = vmatprep.subr.bf16.mxu0 %v845
        %1212 = vmatpush1.bf16.msra.mxu0 %v844
        %1213 = vmatprep.subr.bf16.mxu0 %v853
        %1214 = vmatpush1.bf16.msra.mxu0 %v852
        %1215 = vmatprep.subr.bf16.mxu0 %v861
        %1216 = vmatpush1.bf16.msra.mxu0 %v860
        %1217 = vmatprep.subr.bf16.mxu0 %v869
        %1218 = vmatpush1.bf16.msra.mxu0 %v868
        %1219 = vmatprep.subr.bf16.mxu0 %v877
        %1220 = vmatpush1.bf16.msra.mxu0 %v876
        %1221 = vmatprep.subr.bf16.mxu0 %v885
        %1222 = vmatpush1.bf16.msra.mxu0 %v884
        %1223 = vmatprep.subr.bf16.mxu0 %v893
        %1224 = vmatpush1.bf16.msra.mxu0 %v892
        %1225 = vmatprep.subr.bf16.mxu0 %v901
        %1226 = vmatpush1.bf16.msra.mxu0 %v900
        %1227 = vmatprep.subr.bf16.mxu0 %v909
        %1228 = vmatpush1.bf16.msra.mxu0 %v908
        %1229 = vmatprep.subr.bf16.mxu0 %v917
        %1230 = vmatpush1.bf16.msra.mxu0 %v916
        %1231 = vmatprep.subr.bf16.mxu0 %v925
        %1232 = vmatpush1.bf16.msra.mxu0 %v924
        %1233 = vmatprep.subr.bf16.mxu0 %v933
        %1234 = vmatpush1.bf16.msra.mxu0 %v932
        %1235 = vmatprep.subr.bf16.mxu0 %v941
        %1236 = vmatpush1.bf16.msra.mxu0 %v940
        %1237 = vmatprep.subr.bf16.mxu0 %v949
        %1238 = vmatpush1.bf16.msra.mxu0 %v948
        %1239 = vmatprep.subr.bf16.mxu0 %v957
        %1240 = vmatpush1.bf16.msra.mxu0 %v956
        %1241 = vmatprep.mubr.bf16.mxu0 %v445
        %1242 = vmatmul.mubr.bf16.gmra.mrb[0].mxu0 %v444
        %v1243 = vpop.f32.mrb[0].mxu0
        %v1244 = vadd.f32 0.0, %v1243
        %v1245 = vpop.f32.mrb[0].mxu0
        %v1246 = vadd.f32 0.0, %v1245
        %v1247 = vpop.f32.mrb[0].mxu0
        %v1248 = vpop.f32.mrb[0].mxu0
        %1249 = vdwg.mxu0
        %v1378 = vunpack.c.l.b16 %v314
        %v1379 = vunpack.c.h.b16 %v314
        %v1380 = vunpack.c.l.b16 %v315
        %v1381 = vunpack.c.h.b16 %v315
        %v1382 = vunpack.c.l.b16 %v316
        %v1383 = vunpack.c.h.b16 %v316
        %v1384 = vunpack.c.l.b16 %v317
        %v1385 = vunpack.c.h.b16 %v317
        %v1386 = vunpack.c.l.b16 %v318
        %v1387 = vunpack.c.h.b16 %v318
        %v1388 = vunpack.c.l.b16 %v319
        %v1389 = vunpack.c.h.b16 %v319
        %v1390 = vunpack.c.l.b16 %v320
        %v1391 = vunpack.c.h.b16 %v320
        %v1392 = vunpack.c.l.b16 %v321
        %v1393 = vunpack.c.h.b16 %v321
        %v1394 = vunpack.c.l.b16 %v322
        %v1395 = vunpack.c.h.b16 %v322
        %v1396 = vunpack.c.l.b16 %v323
        %v1397 = vunpack.c.h.b16 %v323
        %v1398 = vunpack.c.l.b16 %v324
        %v1399 = vunpack.c.h.b16 %v324
        %v1400 = vunpack.c.l.b16 %v325
        %v1401 = vunpack.c.h.b16 %v325
        %v1402 = vunpack.c.l.b16 %v326
        %v1403 = vunpack.c.h.b16 %v326
        %v1404 = vunpack.c.l.b16 %v327
        %v1405 = vunpack.c.h.b16 %v327
        %v1406 = vunpack.c.l.b16 %v328
        %v1407 = vunpack.c.h.b16 %v328
        %v1408 = vunpack.c.l.b16 %v329
        %v1409 = vunpack.c.h.b16 %v329
        %v1410 = vunpack.c.l.b16 %v330
        %v1411 = vunpack.c.h.b16 %v330
        %v1412 = vunpack.c.l.b16 %v331
        %v1413 = vunpack.c.h.b16 %v331
        %v1414 = vunpack.c.l.b16 %v332
        %v1415 = vunpack.c.h.b16 %v332
        %v1416 = vunpack.c.l.b16 %v333
        %v1417 = vunpack.c.h.b16 %v333
        %v1418 = vunpack.c.l.b16 %v334
        %v1419 = vunpack.c.h.b16 %v334
        %v1420 = vunpack.c.l.b16 %v335
        %v1421 = vunpack.c.h.b16 %v335
        %v1422 = vunpack.c.l.b16 %v336
        %v1423 = vunpack.c.h.b16 %v336
        %v1424 = vunpack.c.l.b16 %v337
        %v1425 = vunpack.c.h.b16 %v337
        %v1426 = vunpack.c.l.b16 %v338
        %v1427 = vunpack.c.h.b16 %v338
        %v1428 = vunpack.c.l.b16 %v339
        %v1429 = vunpack.c.h.b16 %v339
        %v1430 = vunpack.c.l.b16 %v340
        %v1431 = vunpack.c.h.b16 %v340
        %v1432 = vunpack.c.l.b16 %v341
        %v1433 = vunpack.c.h.b16 %v341
        %v1434 = vunpack.c.l.b16 %v342
        %v1435 = vunpack.c.h.b16 %v342
        %v1436 = vunpack.c.l.b16 %v343
        %v1437 = vunpack.c.h.b16 %v343
        %v1438 = vunpack.c.l.b16 %v344
        %v1439 = vunpack.c.h.b16 %v344
        %v1440 = vunpack.c.l.b16 %v345
        %v1441 = vunpack.c.h.b16 %v345
        %v1442 = vunpack.c.l.b16 %v346
        %v1443 = vunpack.c.h.b16 %v346
        %v1444 = vunpack.c.l.b16 %v347
        %v1445 = vunpack.c.h.b16 %v347
        %v1446 = vunpack.c.l.b16 %v348
        %v1447 = vunpack.c.h.b16 %v348
        %v1448 = vunpack.c.l.b16 %v349
        %v1449 = vunpack.c.h.b16 %v349
        %v1450 = vunpack.c.l.b16 %v350
        %v1451 = vunpack.c.h.b16 %v350
        %v1452 = vunpack.c.l.b16 %v351
        %v1453 = vunpack.c.h.b16 %v351
        %v1454 = vunpack.c.l.b16 %v352
        %v1455 = vunpack.c.h.b16 %v352
        %v1456 = vunpack.c.l.b16 %v353
        %v1457 = vunpack.c.h.b16 %v353
        %v1458 = vunpack.c.l.b16 %v354
        %v1459 = vunpack.c.h.b16 %v354
        %v1460 = vunpack.c.l.b16 %v355
        %v1461 = vunpack.c.h.b16 %v355
        %v1462 = vunpack.c.l.b16 %v356
        %v1463 = vunpack.c.h.b16 %v356
        %v1464 = vunpack.c.l.b16 %v357
        %v1465 = vunpack.c.h.b16 %v357
        %v1466 = vunpack.c.l.b16 %v358
        %v1467 = vunpack.c.h.b16 %v358
        %v1468 = vunpack.c.l.b16 %v359
        %v1469 = vunpack.c.h.b16 %v359
        %v1470 = vunpack.c.l.b16 %v360
        %v1471 = vunpack.c.h.b16 %v360
        %v1472 = vunpack.c.l.b16 %v361
        %v1473 = vunpack.c.h.b16 %v361
        %v1474 = vunpack.c.l.b16 %v362
        %v1475 = vunpack.c.h.b16 %v362
        %v1476 = vunpack.c.l.b16 %v363
        %v1477 = vunpack.c.h.b16 %v363
        %v1478 = vunpack.c.l.b16 %v364
        %v1479 = vunpack.c.h.b16 %v364
        %v1480 = vunpack.c.l.b16 %v365
        %v1481 = vunpack.c.h.b16 %v365
        %v1482 = vunpack.c.l.b16 %v366
        %v1483 = vunpack.c.h.b16 %v366
        %v1484 = vunpack.c.l.b16 %v367
        %v1485 = vunpack.c.h.b16 %v367
        %v1486 = vunpack.c.l.b16 %v368
        %v1487 = vunpack.c.h.b16 %v368
        %v1488 = vunpack.c.l.b16 %v369
        %v1489 = vunpack.c.h.b16 %v369
        %v1490 = vunpack.c.l.b16 %v370
        %v1491 = vunpack.c.h.b16 %v370
        %v1492 = vunpack.c.l.b16 %v371
        %v1493 = vunpack.c.h.b16 %v371
        %v1494 = vunpack.c.l.b16 %v372
        %v1495 = vunpack.c.h.b16 %v372
        %v1496 = vunpack.c.l.b16 %v373
        %v1497 = vunpack.c.h.b16 %v373
        %v1498 = vunpack.c.l.b16 %v374
        %v1499 = vunpack.c.h.b16 %v374
        %v1500 = vunpack.c.l.b16 %v375
        %v1501 = vunpack.c.h.b16 %v375
        %v1502 = vunpack.c.l.b16 %v376
        %v1503 = vunpack.c.h.b16 %v376
        %v1504 = vunpack.c.l.b16 %v377
        %v1505 = vunpack.c.h.b16 %v377
        %v1506 = vunpack.c.l.b16 %v378
        %v1507 = vunpack.c.h.b16 %v378
        %v1508 = vunpack.c.l.b16 %v379
        %v1509 = vunpack.c.h.b16 %v379
        %v1510 = vunpack.c.l.b16 %v380
        %v1511 = vunpack.c.h.b16 %v380
        %v1512 = vunpack.c.l.b16 %v381
        %v1513 = vunpack.c.h.b16 %v381
        %v1514 = vunpack.c.l.b16 %v382
        %v1515 = vunpack.c.h.b16 %v382
        %v1516 = vunpack.c.l.b16 %v383
        %v1517 = vunpack.c.h.b16 %v383
        %v1518 = vunpack.c.l.b16 %v384
        %v1519 = vunpack.c.h.b16 %v384
        %v1520 = vunpack.c.l.b16 %v385
        %v1521 = vunpack.c.h.b16 %v385
        %v1522 = vunpack.c.l.b16 %v386
        %v1523 = vunpack.c.h.b16 %v386
        %v1524 = vunpack.c.l.b16 %v387
        %v1525 = vunpack.c.h.b16 %v387
        %v1526 = vunpack.c.l.b16 %v388
        %v1527 = vunpack.c.h.b16 %v388
        %v1528 = vunpack.c.l.b16 %v389
        %v1529 = vunpack.c.h.b16 %v389
        %v1530 = vunpack.c.l.b16 %v390
        %v1531 = vunpack.c.h.b16 %v390
        %v1532 = vunpack.c.l.b16 %v391
        %v1533 = vunpack.c.h.b16 %v391
        %v1534 = vunpack.c.l.b16 %v392
        %v1535 = vunpack.c.h.b16 %v392
        %v1536 = vunpack.c.l.b16 %v393
        %v1537 = vunpack.c.h.b16 %v393
        %v1538 = vunpack.c.l.b16 %v394
        %v1539 = vunpack.c.h.b16 %v394
        %v1540 = vunpack.c.l.b16 %v395
        %v1541 = vunpack.c.h.b16 %v395
        %v1542 = vunpack.c.l.b16 %v396
        %v1543 = vunpack.c.h.b16 %v396
        %v1544 = vunpack.c.l.b16 %v397
        %v1545 = vunpack.c.h.b16 %v397
        %v1546 = vunpack.c.l.b16 %v398
        %v1547 = vunpack.c.h.b16 %v398
        %v1548 = vunpack.c.l.b16 %v399
        %v1549 = vunpack.c.h.b16 %v399
        %v1550 = vunpack.c.l.b16 %v400
        %v1551 = vunpack.c.h.b16 %v400
        %v1552 = vunpack.c.l.b16 %v401
        %v1553 = vunpack.c.h.b16 %v401
        %v1554 = vunpack.c.l.b16 %v402
        %v1555 = vunpack.c.h.b16 %v402
        %v1556 = vunpack.c.l.b16 %v403
        %v1557 = vunpack.c.h.b16 %v403
        %v1558 = vunpack.c.l.b16 %v404
        %v1559 = vunpack.c.h.b16 %v404
        %v1560 = vunpack.c.l.b16 %v405
        %v1561 = vunpack.c.h.b16 %v405
        %v1562 = vunpack.c.l.b16 %v406
        %v1563 = vunpack.c.h.b16 %v406
        %v1564 = vunpack.c.l.b16 %v407
        %v1565 = vunpack.c.h.b16 %v407
        %v1566 = vunpack.c.l.b16 %v408
        %v1567 = vunpack.c.h.b16 %v408
        %v1568 = vunpack.c.l.b16 %v409
        %v1569 = vunpack.c.h.b16 %v409
        %v1570 = vunpack.c.l.b16 %v410
        %v1571 = vunpack.c.h.b16 %v410
        %v1572 = vunpack.c.l.b16 %v411
        %v1573 = vunpack.c.h.b16 %v411
        %v1574 = vunpack.c.l.b16 %v412
        %v1575 = vunpack.c.h.b16 %v412
        %v1576 = vunpack.c.l.b16 %v413
        %v1577 = vunpack.c.h.b16 %v413
        %v1578 = vunpack.c.l.b16 %v414
        %v1579 = vunpack.c.h.b16 %v414
        %v1580 = vunpack.c.l.b16 %v415
        %v1581 = vunpack.c.h.b16 %v415
        %v1582 = vunpack.c.l.b16 %v416
        %v1583 = vunpack.c.h.b16 %v416
        %v1584 = vunpack.c.l.b16 %v417
        %v1585 = vunpack.c.h.b16 %v417
        %v1586 = vunpack.c.l.b16 %v418
        %v1587 = vunpack.c.h.b16 %v418
        %v1588 = vunpack.c.l.b16 %v419
        %v1589 = vunpack.c.h.b16 %v419
        %v1590 = vunpack.c.l.b16 %v420
        %v1591 = vunpack.c.h.b16 %v420
        %v1592 = vunpack.c.l.b16 %v421
        %v1593 = vunpack.c.h.b16 %v421
        %v1594 = vunpack.c.l.b16 %v422
        %v1595 = vunpack.c.h.b16 %v422
        %v1596 = vunpack.c.l.b16 %v423
        %v1597 = vunpack.c.h.b16 %v423
        %v1598 = vunpack.c.l.b16 %v424
        %v1599 = vunpack.c.h.b16 %v424
        %v1600 = vunpack.c.l.b16 %v425
        %v1601 = vunpack.c.h.b16 %v425
        %v1602 = vunpack.c.l.b16 %v426
        %v1603 = vunpack.c.h.b16 %v426
        %v1604 = vunpack.c.l.b16 %v427
        %v1605 = vunpack.c.h.b16 %v427
        %v1606 = vunpack.c.l.b16 %v428
        %v1607 = vunpack.c.h.b16 %v428
        %v1608 = vunpack.c.l.b16 %v429
        %v1609 = vunpack.c.h.b16 %v429
        %v1610 = vunpack.c.l.b16 %v430
        %v1611 = vunpack.c.h.b16 %v430
        %v1612 = vunpack.c.l.b16 %v431
        %v1613 = vunpack.c.h.b16 %v431
        %v1614 = vunpack.c.l.b16 %v432
        %v1615 = vunpack.c.h.b16 %v432
        %v1616 = vunpack.c.l.b16 %v433
        %v1617 = vunpack.c.h.b16 %v433
        %v1618 = vunpack.c.l.b16 %v434
        %v1619 = vunpack.c.h.b16 %v434
        %v1620 = vunpack.c.l.b16 %v435
        %v1621 = vunpack.c.h.b16 %v435
        %v1622 = vunpack.c.l.b16 %v436
        %v1623 = vunpack.c.h.b16 %v436
        %v1624 = vunpack.c.l.b16 %v437
        %v1625 = vunpack.c.h.b16 %v437
        %v1626 = vunpack.c.l.b16 %v438
        %v1627 = vunpack.c.h.b16 %v438
        %v1628 = vunpack.c.l.b16 %v439
        %v1629 = vunpack.c.h.b16 %v439
        %v1630 = vunpack.c.l.b16 %v440
        %v1631 = vunpack.c.h.b16 %v440
        %v1632 = vunpack.c.l.b16 %v441
        %v1633 = vunpack.c.h.b16 %v441
        %v1634 = vpack.c.b16 %v1386, %v1378
        %v1635 = vpack.c.b16 %v1387, %v1379
        %v1636 = vpack.c.b16 %v1388, %v1380
        %v1637 = vpack.c.b16 %v1389, %v1381
        %v1638 = vpack.c.b16 %v1390, %v1382
        %v1639 = vpack.c.b16 %v1391, %v1383
        %v1640 = vpack.c.b16 %v1392, %v1384
        %v1641 = vpack.c.b16 %v1393, %v1385
        %v1642 = vpack.c.b16 %v1402, %v1394
        %v1643 = vpack.c.b16 %v1403, %v1395
        %v1644 = vpack.c.b16 %v1404, %v1396
        %v1645 = vpack.c.b16 %v1405, %v1397
        %v1646 = vpack.c.b16 %v1406, %v1398
        %v1647 = vpack.c.b16 %v1407, %v1399
        %v1648 = vpack.c.b16 %v1408, %v1400
        %v1649 = vpack.c.b16 %v1409, %v1401
        %v1650 = vpack.c.b16 %v1418, %v1410
        %v1651 = vpack.c.b16 %v1419, %v1411
        %v1652 = vpack.c.b16 %v1420, %v1412
        %v1653 = vpack.c.b16 %v1421, %v1413
        %v1654 = vpack.c.b16 %v1422, %v1414
        %v1655 = vpack.c.b16 %v1423, %v1415
        %v1656 = vpack.c.b16 %v1424, %v1416
        %v1657 = vpack.c.b16 %v1425, %v1417
        %v1658 = vpack.c.b16 %v1434, %v1426
        %v1659 = vpack.c.b16 %v1435, %v1427
        %v1660 = vpack.c.b16 %v1436, %v1428
        %v1661 = vpack.c.b16 %v1437, %v1429
        %v1662 = vpack.c.b16 %v1438, %v1430
        %v1663 = vpack.c.b16 %v1439, %v1431
        %v1664 = vpack.c.b16 %v1440, %v1432
        %v1665 = vpack.c.b16 %v1441, %v1433
        %v1666 = vpack.c.b16 %v1450, %v1442
        %v1667 = vpack.c.b16 %v1451, %v1443
        %v1668 = vpack.c.b16 %v1452, %v1444
        %v1669 = vpack.c.b16 %v1453, %v1445
        %v1670 = vpack.c.b16 %v1454, %v1446
        %v1671 = vpack.c.b16 %v1455, %v1447
        %v1672 = vpack.c.b16 %v1456, %v1448
        %v1673 = vpack.c.b16 %v1457, %v1449
        %v1674 = vpack.c.b16 %v1466, %v1458
        %v1675 = vpack.c.b16 %v1467, %v1459
        %v1676 = vpack.c.b16 %v1468, %v1460
        %v1677 = vpack.c.b16 %v1469, %v1461
        %v1678 = vpack.c.b16 %v1470, %v1462
        %v1679 = vpack.c.b16 %v1471, %v1463
        %v1680 = vpack.c.b16 %v1472, %v1464
        %v1681 = vpack.c.b16 %v1473, %v1465
        %v1682 = vpack.c.b16 %v1482, %v1474
        %v1683 = vpack.c.b16 %v1483, %v1475
        %v1684 = vpack.c.b16 %v1484, %v1476
        %v1685 = vpack.c.b16 %v1485, %v1477
        %v1686 = vpack.c.b16 %v1486, %v1478
        %v1687 = vpack.c.b16 %v1487, %v1479
        %v1688 = vpack.c.b16 %v1488, %v1480
        %v1689 = vpack.c.b16 %v1489, %v1481
        %v1690 = vpack.c.b16 %v1498, %v1490
        %v1691 = vpack.c.b16 %v1499, %v1491
        %v1692 = vpack.c.b16 %v1500, %v1492
        %v1693 = vpack.c.b16 %v1501, %v1493
        %v1694 = vpack.c.b16 %v1502, %v1494
        %v1695 = vpack.c.b16 %v1503, %v1495
        %v1696 = vpack.c.b16 %v1504, %v1496
        %v1697 = vpack.c.b16 %v1505, %v1497
        %v1698 = vpack.c.b16 %v1514, %v1506
        %v1699 = vpack.c.b16 %v1515, %v1507
        %v1700 = vpack.c.b16 %v1516, %v1508
        %v1701 = vpack.c.b16 %v1517, %v1509
        %v1702 = vpack.c.b16 %v1518, %v1510
        %v1703 = vpack.c.b16 %v1519, %v1511
        %v1704 = vpack.c.b16 %v1520, %v1512
        %v1705 = vpack.c.b16 %v1521, %v1513
        %v1706 = vpack.c.b16 %v1530, %v1522
        %v1707 = vpack.c.b16 %v1531, %v1523
        %v1708 = vpack.c.b16 %v1532, %v1524
        %v1709 = vpack.c.b16 %v1533, %v1525
        %v1710 = vpack.c.b16 %v1534, %v1526
        %v1711 = vpack.c.b16 %v1535, %v1527
        %v1712 = vpack.c.b16 %v1536, %v1528
        %v1713 = vpack.c.b16 %v1537, %v1529
        %v1714 = vpack.c.b16 %v1546, %v1538
        %v1715 = vpack.c.b16 %v1547, %v1539
        %v1716 = vpack.c.b16 %v1548, %v1540
        %v1717 = vpack.c.b16 %v1549, %v1541
        %v1718 = vpack.c.b16 %v1550, %v1542
        %v1719 = vpack.c.b16 %v1551, %v1543
        %v1720 = vpack.c.b16 %v1552, %v1544
        %v1721 = vpack.c.b16 %v1553, %v1545
        %v1722 = vpack.c.b16 %v1562, %v1554
        %v1723 = vpack.c.b16 %v1563, %v1555
        %v1724 = vpack.c.b16 %v1564, %v1556
        %v1725 = vpack.c.b16 %v1565, %v1557
        %v1726 = vpack.c.b16 %v1566, %v1558
        %v1727 = vpack.c.b16 %v1567, %v1559
        %v1728 = vpack.c.b16 %v1568, %v1560
        %v1729 = vpack.c.b16 %v1569, %v1561
        %v1730 = vpack.c.b16 %v1578, %v1570
        %v1731 = vpack.c.b16 %v1579, %v1571
        %v1732 = vpack.c.b16 %v1580, %v1572
        %v1733 = vpack.c.b16 %v1581, %v1573
        %v1734 = vpack.c.b16 %v1582, %v1574
        %v1735 = vpack.c.b16 %v1583, %v1575
        %v1736 = vpack.c.b16 %v1584, %v1576
        %v1737 = vpack.c.b16 %v1585, %v1577
        %v1738 = vpack.c.b16 %v1594, %v1586
        %v1739 = vpack.c.b16 %v1595, %v1587
        %v1740 = vpack.c.b16 %v1596, %v1588
        %v1741 = vpack.c.b16 %v1597, %v1589
        %v1742 = vpack.c.b16 %v1598, %v1590
        %v1743 = vpack.c.b16 %v1599, %v1591
        %v1744 = vpack.c.b16 %v1600, %v1592
        %v1745 = vpack.c.b16 %v1601, %v1593
        %v1746 = vpack.c.b16 %v1610, %v1602
        %v1747 = vpack.c.b16 %v1611, %v1603
        %v1748 = vpack.c.b16 %v1612, %v1604
        %v1749 = vpack.c.b16 %v1613, %v1605
        %v1750 = vpack.c.b16 %v1614, %v1606
        %v1751 = vpack.c.b16 %v1615, %v1607
        %v1752 = vpack.c.b16 %v1616, %v1608
        %v1753 = vpack.c.b16 %v1617, %v1609
        %v1754 = vpack.c.b16 %v1626, %v1618
        %v1755 = vpack.c.b16 %v1627, %v1619
        %v1756 = vpack.c.b16 %v1628, %v1620
        %v1757 = vpack.c.b16 %v1629, %v1621
        %v1758 = vpack.c.b16 %v1630, %v1622
        %v1759 = vpack.c.b16 %v1631, %v1623
        %v1760 = vpack.c.b16 %v1632, %v1624
        %v1761 = vpack.c.b16 %v1633, %v1625
        %1890 = vmatprep.subr.bf16.mxu0 %v1635
        %1891 = vmatpush1.bf16.msra.mxu0 %v1634
        %1892 = vmatprep.subr.bf16.mxu0 %v1643
        %1893 = vmatpush1.bf16.msra.mxu0 %v1642
        %1894 = vmatprep.subr.bf16.mxu0 %v1651
        %1895 = vmatpush1.bf16.msra.mxu0 %v1650
        %1896 = vmatprep.subr.bf16.mxu0 %v1659
        %1897 = vmatpush1.bf16.msra.mxu0 %v1658
        %1898 = vmatprep.subr.bf16.mxu0 %v1667
        %1899 = vmatpush1.bf16.msra.mxu0 %v1666
        %1900 = vmatprep.subr.bf16.mxu0 %v1675
        %1901 = vmatpush1.bf16.msra.mxu0 %v1674
        %1902 = vmatprep.subr.bf16.mxu0 %v1683
        %1903 = vmatpush1.bf16.msra.mxu0 %v1682
        %1904 = vmatprep.subr.bf16.mxu0 %v1691
        %1905 = vmatpush1.bf16.msra.mxu0 %v1690
        %1906 = vmatprep.subr.bf16.mxu0 %v1699
        %1907 = vmatpush1.bf16.msra.mxu0 %v1698
        %1908 = vmatprep.subr.bf16.mxu0 %v1707
        %1909 = vmatpush1.bf16.msra.mxu0 %v1706
        %1910 = vmatprep.subr.bf16.mxu0 %v1715
        %1911 = vmatpush1.bf16.msra.mxu0 %v1714
        %1912 = vmatprep.subr.bf16.mxu0 %v1723
        %1913 = vmatpush1.bf16.msra.mxu0 %v1722
        %1914 = vmatprep.subr.bf16.mxu0 %v1731
        %1915 = vmatpush1.bf16.msra.mxu0 %v1730
        %1916 = vmatprep.subr.bf16.mxu0 %v1739
        %1917 = vmatpush1.bf16.msra.mxu0 %v1738
        %1918 = vmatprep.subr.bf16.mxu0 %v1747
        %1919 = vmatpush1.bf16.msra.mxu0 %v1746
        %1920 = vmatprep.subr.bf16.mxu0 %v1755
        %1921 = vmatpush1.bf16.msra.mxu0 %v1754
        %1922 = vmatprep.mubr.bf16.mxu0 0
        %1923 = vmatmul.mubr.bf16.gmra.mrb[0].mxu0 0
        %v1924 = vpop.f32.mrb[0].mxu0
        %v1925 = vadd.f32 0.0, %v1924
        %v1926 = vpop.f32.mrb[0].mxu0
        %v1927 = vadd.f32 0.0, %v1926
        %v1928 = vpop.f32.mrb[0].mxu0
        %v1929 = vpop.f32.mrb[0].mxu0
        %1930 = vdwg.mxu0
        %1931 = vmatprep.subr.bf16.mxu0 %v1637
        %1932 = vmatpush1.bf16.msra.mxu0 %v1636
        %1933 = vmatprep.subr.bf16.mxu0 %v1645
        %1934 = vmatpush1.bf16.msra.mxu0 %v1644
        %1935 = vmatprep.subr.bf16.mxu0 %v1653
        %1936 = vmatpush1.bf16.msra.mxu0 %v1652
        %1937 = vmatprep.subr.bf16.mxu0 %v1661
        %1938 = vmatpush1.bf16.msra.mxu0 %v1660
        %1939 = vmatprep.subr.bf16.mxu0 %v1669
        %1940 = vmatpush1.bf16.msra.mxu0 %v1668
        %1941 = vmatprep.subr.bf16.mxu0 %v1677
        %1942 = vmatpush1.bf16.msra.mxu0 %v1676
        %1943 = vmatprep.subr.bf16.mxu0 %v1685
        %1944 = vmatpush1.bf16.msra.mxu0 %v1684
        %1945 = vmatprep.subr.bf16.mxu0 %v1693
        %1946 = vmatpush1.bf16.msra.mxu0 %v1692
        %1947 = vmatprep.subr.bf16.mxu0 %v1701
        %1948 = vmatpush1.bf16.msra.mxu0 %v1700
        %1949 = vmatprep.subr.bf16.mxu0 %v1709
        %1950 = vmatpush1.bf16.msra.mxu0 %v1708
        %1951 = vmatprep.subr.bf16.mxu0 %v1717
        %1952 = vmatpush1.bf16.msra.mxu0 %v1716
        %1953 = vmatprep.subr.bf16.mxu0 %v1725
        %1954 = vmatpush1.bf16.msra.mxu0 %v1724
        %1955 = vmatprep.subr.bf16.mxu0 %v1733
        %1956 = vmatpush1.bf16.msra.mxu0 %v1732
        %1957 = vmatprep.subr.bf16.mxu0 %v1741
        %1958 = vmatpush1.bf16.msra.mxu0 %v1740
        %1959 = vmatprep.subr.bf16.mxu0 %v1749
        %1960 = vmatpush1.bf16.msra.mxu0 %v1748
        %1961 = vmatprep.subr.bf16.mxu0 %v1757
        %1962 = vmatpush1.bf16.msra.mxu0 %v1756
        %1963 = vmatprep.mubr.bf16.mxu0 0
        %1964 = vmatmul.mubr.bf16.gmra.mrb[0].mxu0 0
        %v1965 = vpop.f32.mrb[0].mxu0
        %v1966 = vadd.f32 0.0, %v1965
        %v1967 = vpop.f32.mrb[0].mxu0
        %v1968 = vadd.f32 0.0, %v1967
        %v1969 = vpop.f32.mrb[0].mxu0
        %v1970 = vpop.f32.mrb[0].mxu0
        %1971 = vdwg.mxu0
        %1972 = vmatprep.subr.bf16.mxu0 %v1639
        %1973 = vmatpush1.bf16.msra.mxu0 %v1638
        %1974 = vmatprep.subr.bf16.mxu0 %v1647
        %1975 = vmatpush1.bf16.msra.mxu0 %v1646
        %1976 = vmatprep.subr.bf16.mxu0 %v1655
        %1977 = vmatpush1.bf16.msra.mxu0 %v1654
        %1978 = vmatprep.subr.bf16.mxu0 %v1663
        %1979 = vmatpush1.bf16.msra.mxu0 %v1662
        %1980 = vmatprep.subr.bf16.mxu0 %v1671
        %1981 = vmatpush1.bf16.msra.mxu0 %v1670
        %1982 = vmatprep.subr.bf16.mxu0 %v1679
        %1983 = vmatpush1.bf16.msra.mxu0 %v1678
        %1984 = vmatprep.subr.bf16.mxu0 %v1687
        %1985 = vmatpush1.bf16.msra.mxu0 %v1686
        %1986 = vmatprep.subr.bf16.mxu0 %v1695
        %1987 = vmatpush1.bf16.msra.mxu0 %v1694
        %1988 = vmatprep.subr.bf16.mxu0 %v1703
        %1989 = vmatpush1.bf16.msra.mxu0 %v1702
        %1990 = vmatprep.subr.bf16.mxu0 %v1711
        %1991 = vmatpush1.bf16.msra.mxu0 %v1710
        %1992 = vmatprep.subr.bf16.mxu0 %v1719
        %1993 = vmatpush1.bf16.msra.mxu0 %v1718
        %1994 = vmatprep.subr.bf16.mxu0 %v1727
        %1995 = vmatpush1.bf16.msra.mxu0 %v1726
        %1996 = vmatprep.subr.bf16.mxu0 %v1735
        %1997 = vmatpush1.bf16.msra.mxu0 %v1734
        %1998 = vmatprep.subr.bf16.mxu0 %v1743
        %1999 = vmatpush1.bf16.msra.mxu0 %v1742
        %2000 = vmatprep.subr.bf16.mxu0 %v1751
        %2001 = vmatpush1.bf16.msra.mxu0 %v1750
        %2002 = vmatprep.subr.bf16.mxu0 %v1759
        %2003 = vmatpush1.bf16.msra.mxu0 %v1758
        %2004 = vmatprep.mubr.bf16.mxu0 0
        %2005 = vmatmul.mubr.bf16.gmra.mrb[0].mxu0 0
        %v2006 = vpop.f32.mrb[0].mxu0
        %v2007 = vadd.f32 0.0, %v2006
        %v2008 = vpop.f32.mrb[0].mxu0
        %v2009 = vadd.f32 0.0, %v2008
        %v2010 = vpop.f32.mrb[0].mxu0
        %v2011 = vpop.f32.mrb[0].mxu0
        %2012 = vdwg.mxu0
        %2013 = vmatprep.subr.bf16.mxu0 %v1641
        %2014 = vmatpush1.bf16.msra.mxu0 %v1640
        %2015 = vmatprep.subr.bf16.mxu0 %v1649
        %2016 = vmatpush1.bf16.msra.mxu0 %v1648
        %2017 = vmatprep.subr.bf16.mxu0 %v1657
        %2018 = vmatpush1.bf16.msra.mxu0 %v1656
        %2019 = vmatprep.subr.bf16.mxu0 %v1665
        %2020 = vmatpush1.bf16.msra.mxu0 %v1664
        %2021 = vmatprep.subr.bf16.mxu0 %v1673
        %2022 = vmatpush1.bf16.msra.mxu0 %v1672
        %2023 = vmatprep.subr.bf16.mxu0 %v1681
        %2024 = vmatpush1.bf16.msra.mxu0 %v1680
        %2025 = vmatprep.subr.bf16.mxu0 %v1689
        %2026 = vmatpush1.bf16.msra.mxu0 %v1688
        %2027 = vmatprep.subr.bf16.mxu0 %v1697
        %2028 = vmatpush1.bf16.msra.mxu0 %v1696
        %2029 = vmatprep.subr.bf16.mxu0 %v1705
        %2030 = vmatpush1.bf16.msra.mxu0 %v1704
        %2031 = vmatprep.subr.bf16.mxu0 %v1713
        %2032 = vmatpush1.bf16.msra.mxu0 %v1712
        %2033 = vmatprep.subr.bf16.mxu0 %v1721
        %2034 = vmatpush1.bf16.msra.mxu0 %v1720
        %2035 = vmatprep.subr.bf16.mxu0 %v1729
        %2036 = vmatpush1.bf16.msra.mxu0 %v1728
        %2037 = vmatprep.subr.bf16.mxu0 %v1737
        %2038 = vmatpush1.bf16.msra.mxu0 %v1736
        %2039 = vmatprep.subr.bf16.mxu0 %v1745
        %2040 = vmatpush1.bf16.msra.mxu0 %v1744
        %2041 = vmatprep.subr.bf16.mxu0 %v1753
        %2042 = vmatpush1.bf16.msra.mxu0 %v1752
        %2043 = vmatprep.subr.bf16.mxu0 %v1761
        %2044 = vmatpush1.bf16.msra.mxu0 %v1760
        %2045 = vmatprep.mubr.bf16.mxu0 0
        %2046 = vmatmul.mubr.bf16.gmra.mrb[0].mxu0 0
        %v2047 = vpop.f32.mrb[0].mxu0
        %v2048 = vadd.f32 0.0, %v2047
        %v2049 = vpop.f32.mrb[0].mxu0
        %v2050 = vadd.f32 0.0, %v2049
        %v2051 = vpop.f32.mrb[0].mxu0
        %v2052 = vpop.f32.mrb[0].mxu0
        %2053 = vdwg.mxu0
        %v2054 = vadd.f32 %v1121, %v1925
        %v2055 = vadd.f32 %v1123, %v1927
        %v2056 = vadd.f32 %v1162, %v1966
        %v2057 = vadd.f32 %v1164, %v1968
        %v2058 = vadd.f32 %v1203, %v2007
        %v2059 = vadd.f32 %v1205, %v2009
        %v2060 = vadd.f32 %v1244, %v2048
        %v2061 = vadd.f32 %v1246, %v2050
        %v2062 = vxor.u32 %v2054, 2147483648
        %v2063 = vxor.u32 %v2055, 2147483648
        %v2064 = vmul.f32 %v2062, 1.442695
        %v2065 = vpow.pop %v2064
        %v2066 = vmul.f32 %v2063, 1.442695
        %v2067 = vpow.pop %v2066
        %v2068 = vadd.f32 %v2065, 1.0
        %v2069 = vadd.f32 %v2067, 1.0
        %v2070 = vrcp.pop %v2068
        %v2071 = vmul.f32 1.0, %v2070
        %v2072 = vrcp.pop %v2069
        %v2073 = vmul.f32 1.0, %v2072
        %v2074 = vxor.u32 %v2056, 2147483648
        %v2075 = vxor.u32 %v2057, 2147483648
        %v2076 = vmul.f32 %v2074, 1.442695
        %v2077 = vpow.pop %v2076
        %v2078 = vmul.f32 %v2075, 1.442695
        %v2079 = vpow.pop %v2078
        %v2080 = vadd.f32 %v2077, 1.0
        %v2081 = vadd.f32 %v2079, 1.0
        %v2082 = vrcp.pop %v2080
        %v2083 = vmul.f32 1.0, %v2082
        %v2084 = vrcp.pop %v2081
        %v2085 = vmul.f32 1.0, %v2084
        %v2086 = vtanh.pop %v2058
        %v2087 = vtanh.pop %v2059
        %v2088 = vxor.u32 %v2060, 2147483648
        %v2089 = vxor.u32 %v2061, 2147483648
        %v2090 = vmul.f32 %v2088, 1.442695
        %v2091 = vpow.pop %v2090
        %v2092 = vmul.f32 %v2089, 1.442695
        %v2093 = vpow.pop %v2092
        %v2094 = vadd.f32 %v2091, 1.0
        %v2095 = vadd.f32 %v2093, 1.0
        %v2096 = vrcp.pop %v2094
        %v2097 = vmul.f32 1.0, %v2096
        %v2098 = vrcp.pop %v2095
        %v2099 = vmul.f32 1.0, %v2098
        %v2100 = vmul.f32 %v2083, 0.0
        %v2101 = vmul.f32 %v2085, 0.0
        %v2102 = vmul.f32 %v2071, %v2086
        %v2103 = vmul.f32 %v2073, %v2087
        %v2104 = vadd.f32 %v2100, %v2102
        %v2105 = vadd.f32 %v2101, %v2103
        %v2106 = vtanh.pop %v2104
        %v2107 = vtanh.pop %v2105
        %v2108 = vmul.f32 %v2097, %v2106
        %v2109 = vmul.f32 %v2099, %v2107
        %v2110 = vpack.c.bf16 %v2108, %v2108
        %v2111 = vpack.c.bf16 %v2109, %v2109
        %2112 = vmatprep.subr.bf16.mxu0 %v1635
        %2113 = vmatpush1.bf16.msra.mxu0 %v1634
        %2114 = vmatprep.subr.bf16.mxu0 %v1643
        %2115 = vmatpush1.bf16.msra.mxu0 %v1642
        %2116 = vmatprep.subr.bf16.mxu0 %v1651
        %2117 = vmatpush1.bf16.msra.mxu0 %v1650
        %2118 = vmatprep.subr.bf16.mxu0 %v1659
        %2119 = vmatpush1.bf16.msra.mxu0 %v1658
        %2120 = vmatprep.subr.bf16.mxu0 %v1667
        %2121 = vmatpush1.bf16.msra.mxu0 %v1666
        %2122 = vmatprep.subr.bf16.mxu0 %v1675
        %2123 = vmatpush1.bf16.msra.mxu0 %v1674
        %2124 = vmatprep.subr.bf16.mxu0 %v1683
        %2125 = vmatpush1.bf16.msra.mxu0 %v1682
        %2126 = vmatprep.subr.bf16.mxu0 %v1691
        %2127 = vmatpush1.bf16.msra.mxu0 %v1690
        %2128 = vmatprep.subr.bf16.mxu0 %v1699
        %2129 = vmatpush1.bf16.msra.mxu0 %v1698
        %2130 = vmatprep.subr.bf16.mxu0 %v1707
        %2131 = vmatpush1.bf16.msra.mxu0 %v1706
        %2132 = vmatprep.subr.bf16.mxu0 %v1715
        %2133 = vmatpush1.bf16.msra.mxu0 %v1714
        %2134 = vmatprep.subr.bf16.mxu0 %v1723
        %2135 = vmatpush1.bf16.msra.mxu0 %v1722
        %2136 = vmatprep.subr.bf16.mxu0 %v1731
        %2137 = vmatpush1.bf16.msra.mxu0 %v1730
        %2138 = vmatprep.subr.bf16.mxu0 %v1739
        %2139 = vmatpush1.bf16.msra.mxu0 %v1738
        %2140 = vmatprep.subr.bf16.mxu0 %v1747
        %2141 = vmatpush1.bf16.msra.mxu0 %v1746
        %2142 = vmatprep.subr.bf16.mxu0 %v1755
        %2143 = vmatpush1.bf16.msra.mxu0 %v1754
        %2144 = vmatprep.mubr.bf16.mxu0 %v2111
        %2145 = vmatmul.mubr.bf16.gmra.mrb[0].mxu0 %v2110
        %v2146 = vpop.f32.mrb[0].mxu0
        %v2147 = vadd.f32 0.0, %v2146
        %v2148 = vpop.f32.mrb[0].mxu0
        %v2149 = vadd.f32 0.0, %v2148
        %v2150 = vpop.f32.mrb[0].mxu0
        %v2151 = vpop.f32.mrb[0].mxu0
        %2152 = vdwg.mxu0
        %2153 = vmatprep.subr.bf16.mxu0 %v1637
        %2154 = vmatpush1.bf16.msra.mxu0 %v1636
        %2155 = vmatprep.subr.bf16.mxu0 %v1645
        %2156 = vmatpush1.bf16.msra.mxu0 %v1644
        %2157 = vmatprep.subr.bf16.mxu0 %v1653
        %2158 = vmatpush1.bf16.msra.mxu0 %v1652
        %2159 = vmatprep.subr.bf16.mxu0 %v1661
        %2160 = vmatpush1.bf16.msra.mxu0 %v1660
        %2161 = vmatprep.subr.bf16.mxu0 %v1669
        %2162 = vmatpush1.bf16.msra.mxu0 %v1668
        %2163 = vmatprep.subr.bf16.mxu0 %v1677
        %2164 = vmatpush1.bf16.msra.mxu0 %v1676
        %2165 = vmatprep.subr.bf16.mxu0 %v1685
        %2166 = vmatpush1.bf16.msra.mxu0 %v1684
        %2167 = vmatprep.subr.bf16.mxu0 %v1693
        %2168 = vmatpush1.bf16.msra.mxu0 %v1692
        %2169 = vmatprep.subr.bf16.mxu0 %v1701
        %2170 = vmatpush1.bf16.msra.mxu0 %v1700
        %2171 = vmatprep.subr.bf16.mxu0 %v1709
        %2172 = vmatpush1.bf16.msra.mxu0 %v1708
        %2173 = vmatprep.subr.bf16.mxu0 %v1717
        %2174 = vmatpush1.bf16.msra.mxu0 %v1716
        %2175 = vmatprep.subr.bf16.mxu0 %v1725
        %2176 = vmatpush1.bf16.msra.mxu0 %v1724
        %2177 = vmatprep.subr.bf16.mxu0 %v1733
        %2178 = vmatpush1.bf16.msra.mxu0 %v1732
        %2179 = vmatprep.subr.bf16.mxu0 %v1741
        %2180 = vmatpush1.bf16.msra.mxu0 %v1740
        %2181 = vmatprep.subr.bf16.mxu0 %v1749
        %2182 = vmatpush1.bf16.msra.mxu0 %v1748
        %2183 = vmatprep.subr.bf16.mxu0 %v1757
        %2184 = vmatpush1.bf16.msra.mxu0 %v1756
        %2185 = vmatprep.mubr.bf16.mxu0 %v2111
        %2186 = vmatmul.mubr.bf16.gmra.mrb[0].mxu0 %v2110
        %v2187 = vpop.f32.mrb[0].mxu0
        %v2188 = vadd.f32 0.0, %v2187
        %v2189 = vpop.f32.mrb[0].mxu0
        %v2190 = vadd.f32 0.0, %v2189
        %v2191 = vpop.f32.mrb[0].mxu0
        %v2192 = vpop.f32.mrb[0].mxu0
        %2193 = vdwg.mxu0
        %2194 = vmatprep.subr.bf16.mxu0 %v1639
        %2195 = vmatpush1.bf16.msra.mxu0 %v1638
        %2196 = vmatprep.subr.bf16.mxu0 %v1647
        %2197 = vmatpush1.bf16.msra.mxu0 %v1646
        %2198 = vmatprep.subr.bf16.mxu0 %v1655
        %2199 = vmatpush1.bf16.msra.mxu0 %v1654
        %2200 = vmatprep.subr.bf16.mxu0 %v1663
        %2201 = vmatpush1.bf16.msra.mxu0 %v1662
        %2202 = vmatprep.subr.bf16.mxu0 %v1671
        %2203 = vmatpush1.bf16.msra.mxu0 %v1670
        %2204 = vmatprep.subr.bf16.mxu0 %v1679
        %2205 = vmatpush1.bf16.msra.mxu0 %v1678
        %2206 = vmatprep.subr.bf16.mxu0 %v1687
        %2207 = vmatpush1.bf16.msra.mxu0 %v1686
        %2208 = vmatprep.subr.bf16.mxu0 %v1695
        %2209 = vmatpush1.bf16.msra.mxu0 %v1694
        %2210 = vmatprep.subr.bf16.mxu0 %v1703
        %2211 = vmatpush1.bf16.msra.mxu0 %v1702
        %2212 = vmatprep.subr.bf16.mxu0 %v1711
        %2213 = vmatpush1.bf16.msra.mxu0 %v1710
        %2214 = vmatprep.subr.bf16.mxu0 %v1719
        %2215 = vmatpush1.bf16.msra.mxu0 %v1718
        %2216 = vmatprep.subr.bf16.mxu0 %v1727
        %2217 = vmatpush1.bf16.msra.mxu0 %v1726
        %2218 = vmatprep.subr.bf16.mxu0 %v1735
        %2219 = vmatpush1.bf16.msra.mxu0 %v1734
        %2220 = vmatprep.subr.bf16.mxu0 %v1743
        %2221 = vmatpush1.bf16.msra.mxu0 %v1742
        %2222 = vmatprep.subr.bf16.mxu0 %v1751
        %2223 = vmatpush1.bf16.msra.mxu0 %v1750
        %2224 = vmatprep.subr.bf16.mxu0 %v1759
        %2225 = vmatpush1.bf16.msra.mxu0 %v1758
        %2226 = vmatprep.mubr.bf16.mxu0 %v2111
        %2227 = vmatmul.mubr.bf16.gmra.mrb[0].mxu0 %v2110
        %v2228 = vpop.f32.mrb[0].mxu0
        %v2229 = vadd.f32 0.0, %v2228
        %v2230 = vpop.f32.mrb[0].mxu0
        %v2231 = vadd.f32 0.0, %v2230
        %v2232 = vpop.f32.mrb[0].mxu0
        %v2233 = vpop.f32.mrb[0].mxu0
        %2234 = vdwg.mxu0
        %2235 = vmatprep.subr.bf16.mxu0 %v1641
        %2236 = vmatpush1.bf16.msra.mxu0 %v1640
        %2237 = vmatprep.subr.bf16.mxu0 %v1649
        %2238 = vmatpush1.bf16.msra.mxu0 %v1648
        %2239 = vmatprep.subr.bf16.mxu0 %v1657
        %2240 = vmatpush1.bf16.msra.mxu0 %v1656
        %2241 = vmatprep.subr.bf16.mxu0 %v1665
        %2242 = vmatpush1.bf16.msra.mxu0 %v1664
        %2243 = vmatprep.subr.bf16.mxu0 %v1673
        %2244 = vmatpush1.bf16.msra.mxu0 %v1672
        %2245 = vmatprep.subr.bf16.mxu0 %v1681
        %2246 = vmatpush1.bf16.msra.mxu0 %v1680
        %2247 = vmatprep.subr.bf16.mxu0 %v1689
        %2248 = vmatpush1.bf16.msra.mxu0 %v1688
        %2249 = vmatprep.subr.bf16.mxu0 %v1697
        %2250 = vmatpush1.bf16.msra.mxu0 %v1696
        %2251 = vmatprep.subr.bf16.mxu0 %v1705
        %2252 = vmatpush1.bf16.msra.mxu0 %v1704
        %2253 = vmatprep.subr.bf16.mxu0 %v1713
        %2254 = vmatpush1.bf16.msra.mxu0 %v1712
        %2255 = vmatprep.subr.bf16.mxu0 %v1721
        %2256 = vmatpush1.bf16.msra.mxu0 %v1720
        %2257 = vmatprep.subr.bf16.mxu0 %v1729
        %2258 = vmatpush1.bf16.msra.mxu0 %v1728
        %2259 = vmatprep.subr.bf16.mxu0 %v1737
        %2260 = vmatpush1.bf16.msra.mxu0 %v1736
        %2261 = vmatprep.subr.bf16.mxu0 %v1745
        %2262 = vmatpush1.bf16.msra.mxu0 %v1744
        %2263 = vmatprep.subr.bf16.mxu0 %v1753
        %2264 = vmatpush1.bf16.msra.mxu0 %v1752
        %2265 = vmatprep.subr.bf16.mxu0 %v1761
        %2266 = vmatpush1.bf16.msra.mxu0 %v1760
        %2267 = vmatprep.mubr.bf16.mxu0 %v2111
        %2268 = vmatmul.mubr.bf16.gmra.mrb[0].mxu0 %v2110
        %v2269 = vpop.f32.mrb[0].mxu0
        %v2270 = vadd.f32 0.0, %v2269
        %v2271 = vpop.f32.mrb[0].mxu0
        %v2272 = vadd.f32 0.0, %v2271
        %v2273 = vpop.f32.mrb[0].mxu0
        %v2274 = vpop.f32.mrb[0].mxu0
        %2275 = vdwg.mxu0
        %v2284 = vrot.slane %v2147, 7
        %v2285 = vrot.slane %v2149, 7
        %v2286 = vrot.slane %v2188, 7
        %v2287 = vrot.slane %v2190, 7
        %v2288 = vrot.slane %v2229, 7
        %v2289 = vrot.slane %v2231, 7
        %v2290 = vrot.slane %v2270, 7
        %v2291 = vrot.slane %v2272, 7
        %v2300 = vadd.f32 %v1121, %v2284
        %v2301 = vadd.f32 %v1123, %v2285
        %v2302 = vadd.f32 %v1162, %v2286
        %v2303 = vadd.f32 %v1164, %v2287
        %v2304 = vadd.f32 %v1203, %v2288
        %v2305 = vadd.f32 %v1205, %v2289
        %v2306 = vadd.f32 %v1244, %v2290
        %v2307 = vadd.f32 %v1246, %v2291
        %v2308 = vxor.u32 %v2300, 2147483648
        %v2309 = vxor.u32 %v2301, 2147483648
        %v2310 = vmul.f32 %v2308, 1.442695
        %v2311 = vpow.pop %v2310
        %v2312 = vmul.f32 %v2309, 1.442695
        %v2313 = vpow.pop %v2312
        %v2314 = vadd.f32 %v2311, 1.0
        %v2315 = vadd.f32 %v2313, 1.0
        %v2316 = vrcp.pop %v2314
        %v2317 = vmul.f32 1.0, %v2316
        %v2318 = vrcp.pop %v2315
        %v2319 = vmul.f32 1.0, %v2318
        %v2320 = vxor.u32 %v2302, 2147483648
        %v2321 = vxor.u32 %v2303, 2147483648
        %v2322 = vmul.f32 %v2320, 1.442695
        %v2323 = vpow.pop %v2322
        %v2324 = vmul.f32 %v2321, 1.442695
        %v2325 = vpow.pop %v2324
        %v2326 = vadd.f32 %v2323, 1.0
        %v2327 = vadd.f32 %v2325, 1.0
        %v2328 = vrcp.pop %v2326
        %v2329 = vmul.f32 1.0, %v2328
        %v2330 = vrcp.pop %v2327
        %v2331 = vmul.f32 1.0, %v2330
        %v2332 = vtanh.pop %v2304
        %v2333 = vtanh.pop %v2305
        %v2334 = vxor.u32 %v2306, 2147483648
        %v2335 = vxor.u32 %v2307, 2147483648
        %v2336 = vmul.f32 %v2334, 1.442695
        %v2337 = vpow.pop %v2336
        %v2338 = vmul.f32 %v2335, 1.442695
        %v2339 = vpow.pop %v2338
        %v2340 = vadd.f32 %v2337, 1.0
        %v2341 = vadd.f32 %v2339, 1.0
        %v2342 = vrcp.pop %v2340
        %v2343 = vmul.f32 1.0, %v2342
        %v2344 = vrcp.pop %v2341
        %v2345 = vmul.f32 1.0, %v2344
        %v2348 = vrot.slane %v2104, 7
        %v2349 = vrot.slane %v2105, 7
        %v2352 = vmul.f32 %v2329, %v2348
        %v2353 = vmul.f32 %v2331, %v2349
        %v2354 = vmul.f32 %v2317, %v2332
        %v2355 = vmul.f32 %v2319, %v2333
        %v2356 = vadd.f32 %v2352, %v2354
        %v2357 = vadd.f32 %v2353, %v2355
        %v2358 = vtanh.pop %v2356
        %v2359 = vtanh.pop %v2357
        %v2360 = vmul.f32 %v2343, %v2358
        %v2361 = vmul.f32 %v2345, %v2359
        %v2362 = vpack.c.bf16 %v2360, %v2360
        %v2363 = vpack.c.bf16 %v2361, %v2361
        %v2365 = vshrl.u32 %v2362, 16
        %v2368 = vshrl.u32 %v2363, 16
        %2372 = vmatprep.subr.bf16.mxu0 %v1635
        %2373 = vmatpush1.bf16.msra.mxu0 %v1634
        %2374 = vmatprep.subr.bf16.mxu0 %v1643
        %2375 = vmatpush1.bf16.msra.mxu0 %v1642
        %2376 = vmatprep.subr.bf16.mxu0 %v1651
        %2377 = vmatpush1.bf16.msra.mxu0 %v1650
        %2378 = vmatprep.subr.bf16.mxu0 %v1659
        %2379 = vmatpush1.bf16.msra.mxu0 %v1658
        %2380 = vmatprep.subr.bf16.mxu0 %v1667
        %2381 = vmatpush1.bf16.msra.mxu0 %v1666
        %2382 = vmatprep.subr.bf16.mxu0 %v1675
        %2383 = vmatpush1.bf16.msra.mxu0 %v1674
        %2384 = vmatprep.subr.bf16.mxu0 %v1683
        %2385 = vmatpush1.bf16.msra.mxu0 %v1682
        %2386 = vmatprep.subr.bf16.mxu0 %v1691
        %2387 = vmatpush1.bf16.msra.mxu0 %v1690
        %2388 = vmatprep.subr.bf16.mxu0 %v1699
        %2389 = vmatpush1.bf16.msra.mxu0 %v1698
        %2390 = vmatprep.subr.bf16.mxu0 %v1707
        %2391 = vmatpush1.bf16.msra.mxu0 %v1706
        %2392 = vmatprep.subr.bf16.mxu0 %v1715
        %2393 = vmatpush1.bf16.msra.mxu0 %v1714
        %2394 = vmatprep.subr.bf16.mxu0 %v1723
        %2395 = vmatpush1.bf16.msra.mxu0 %v1722
        %2396 = vmatprep.subr.bf16.mxu0 %v1731
        %2397 = vmatpush1.bf16.msra.mxu0 %v1730
        %2398 = vmatprep.subr.bf16.mxu0 %v1739
        %2399 = vmatpush1.bf16.msra.mxu0 %v1738
        %2400 = vmatprep.subr.bf16.mxu0 %v1747
        %2401 = vmatpush1.bf16.msra.mxu0 %v1746
        %2402 = vmatprep.subr.bf16.mxu0 %v1755
        %2403 = vmatpush1.bf16.msra.mxu0 %v1754
        %2404 = vmatprep.mubr.bf16.mxu0 %v2368
        %2405 = vmatmul.mubr.bf16.gmra.mrb[0].mxu0 %v2365
        %v2406 = vpop.f32.mrb[0].mxu0
        %v2407 = vadd.f32 0.0, %v2406
        %v2408 = vpop.f32.mrb[0].mxu0
        %v2409 = vadd.f32 0.0, %v2408
        %v2410 = vpop.f32.mrb[0].mxu0
        %v2411 = vpop.f32.mrb[0].mxu0
        %2412 = vdwg.mxu0
        %2413 = vmatprep.subr.bf16.mxu0 %v1637
        %2414 = vmatpush1.bf16.msra.mxu0 %v1636
        %2415 = vmatprep.subr.bf16.mxu0 %v1645
        %2416 = vmatpush1.bf16.msra.mxu0 %v1644
        %2417 = vmatprep.subr.bf16.mxu0 %v1653
        %2418 = vmatpush1.bf16.msra.mxu0 %v1652
        %2419 = vmatprep.subr.bf16.mxu0 %v1661
        %2420 = vmatpush1.bf16.msra.mxu0 %v1660
        %2421 = vmatprep.subr.bf16.mxu0 %v1669
        %2422 = vmatpush1.bf16.msra.mxu0 %v1668
        %2423 = vmatprep.subr.bf16.mxu0 %v1677
        %2424 = vmatpush1.bf16.msra.mxu0 %v1676
        %2425 = vmatprep.subr.bf16.mxu0 %v1685
        %2426 = vmatpush1.bf16.msra.mxu0 %v1684
        %2427 = vmatprep.subr.bf16.mxu0 %v1693
        %2428 = vmatpush1.bf16.msra.mxu0 %v1692
        %2429 = vmatprep.subr.bf16.mxu0 %v1701
        %2430 = vmatpush1.bf16.msra.mxu0 %v1700
        %2431 = vmatprep.subr.bf16.mxu0 %v1709
        %2432 = vmatpush1.bf16.msra.mxu0 %v1708
        %2433 = vmatprep.subr.bf16.mxu0 %v1717
        %2434 = vmatpush1.bf16.msra.mxu0 %v1716
        %2435 = vmatprep.subr.bf16.mxu0 %v1725
        %2436 = vmatpush1.bf16.msra.mxu0 %v1724
        %2437 = vmatprep.subr.bf16.mxu0 %v1733
        %2438 = vmatpush1.bf16.msra.mxu0 %v1732
        %2439 = vmatprep.subr.bf16.mxu0 %v1741
        %2440 = vmatpush1.bf16.msra.mxu0 %v1740
        %2441 = vmatprep.subr.bf16.mxu0 %v1749
        %2442 = vmatpush1.bf16.msra.mxu0 %v1748
        %2443 = vmatprep.subr.bf16.mxu0 %v1757
        %2444 = vmatpush1.bf16.msra.mxu0 %v1756
        %2445 = vmatprep.mubr.bf16.mxu0 %v2368
        %2446 = vmatmul.mubr.bf16.gmra.mrb[0].mxu0 %v2365
        %v2447 = vpop.f32.mrb[0].mxu0
        %v2448 = vadd.f32 0.0, %v2447
        %v2449 = vpop.f32.mrb[0].mxu0
        %v2450 = vadd.f32 0.0, %v2449
        %v2451 = vpop.f32.mrb[0].mxu0
        %v2452 = vpop.f32.mrb[0].mxu0
        %2453 = vdwg.mxu0
        %2454 = vmatprep.subr.bf16.mxu0 %v1639
        %2455 = vmatpush1.bf16.msra.mxu0 %v1638
        %2456 = vmatprep.subr.bf16.mxu0 %v1647
        %2457 = vmatpush1.bf16.msra.mxu0 %v1646
        %2458 = vmatprep.subr.bf16.mxu0 %v1655
        %2459 = vmatpush1.bf16.msra.mxu0 %v1654
        %2460 = vmatprep.subr.bf16.mxu0 %v1663
        %2461 = vmatpush1.bf16.msra.mxu0 %v1662
        %2462 = vmatprep.subr.bf16.mxu0 %v1671
        %2463 = vmatpush1.bf16.msra.mxu0 %v1670
        %2464 = vmatprep.subr.bf16.mxu0 %v1679
        %2465 = vmatpush1.bf16.msra.mxu0 %v1678
        %2466 = vmatprep.subr.bf16.mxu0 %v1687
        %2467 = vmatpush1.bf16.msra.mxu0 %v1686
        %2468 = vmatprep.subr.bf16.mxu0 %v1695
        %2469 = vmatpush1.bf16.msra.mxu0 %v1694
        %2470 = vmatprep.subr.bf16.mxu0 %v1703
        %2471 = vmatpush1.bf16.msra.mxu0 %v1702
        %2472 = vmatprep.subr.bf16.mxu0 %v1711
        %2473 = vmatpush1.bf16.msra.mxu0 %v1710
        %2474 = vmatprep.subr.bf16.mxu0 %v1719
        %2475 = vmatpush1.bf16.msra.mxu0 %v1718
        %2476 = vmatprep.subr.bf16.mxu0 %v1727
        %2477 = vmatpush1.bf16.msra.mxu0 %v1726
        %2478 = vmatprep.subr.bf16.mxu0 %v1735
        %2479 = vmatpush1.bf16.msra.mxu0 %v1734
        %2480 = vmatprep.subr.bf16.mxu0 %v1743
        %2481 = vmatpush1.bf16.msra.mxu0 %v1742
        %2482 = vmatprep.subr.bf16.mxu0 %v1751
        %2483 = vmatpush1.bf16.msra.mxu0 %v1750
        %2484 = vmatprep.subr.bf16.mxu0 %v1759
        %2485 = vmatpush1.bf16.msra.mxu0 %v1758
        %2486 = vmatprep.mubr.bf16.mxu0 %v2368
        %2487 = vmatmul.mubr.bf16.gmra.mrb[0].mxu0 %v2365
        %v2488 = vpop.f32.mrb[0].mxu0
        %v2489 = vadd.f32 0.0, %v2488
        %v2490 = vpop.f32.mrb[0].mxu0
        %v2491 = vadd.f32 0.0, %v2490
        %v2492 = vpop.f32.mrb[0].mxu0
        %v2493 = vpop.f32.mrb[0].mxu0
        %2494 = vdwg.mxu0
        %2495 = vmatprep.subr.bf16.mxu0 %v1641
        %2496 = vmatpush1.bf16.msra.mxu0 %v1640
        %2497 = vmatprep.subr.bf16.mxu0 %v1649
        %2498 = vmatpush1.bf16.msra.mxu0 %v1648
        %2499 = vmatprep.subr.bf16.mxu0 %v1657
        %2500 = vmatpush1.bf16.msra.mxu0 %v1656
        %2501 = vmatprep.subr.bf16.mxu0 %v1665
        %2502 = vmatpush1.bf16.msra.mxu0 %v1664
        %2503 = vmatprep.subr.bf16.mxu0 %v1673
        %2504 = vmatpush1.bf16.msra.mxu0 %v1672
        %2505 = vmatprep.subr.bf16.mxu0 %v1681
        %2506 = vmatpush1.bf16.msra.mxu0 %v1680
        %2507 = vmatprep.subr.bf16.mxu0 %v1689
        %2508 = vmatpush1.bf16.msra.mxu0 %v1688
        %2509 = vmatprep.subr.bf16.mxu0 %v1697
        %2510 = vmatpush1.bf16.msra.mxu0 %v1696
        %2511 = vmatprep.subr.bf16.mxu0 %v1705
        %2512 = vmatpush1.bf16.msra.mxu0 %v1704
        %2513 = vmatprep.subr.bf16.mxu0 %v1713
        %2514 = vmatpush1.bf16.msra.mxu0 %v1712
        %2515 = vmatprep.subr.bf16.mxu0 %v1721
        %2516 = vmatpush1.bf16.msra.mxu0 %v1720
        %2517 = vmatprep.subr.bf16.mxu0 %v1729
        %2518 = vmatpush1.bf16.msra.mxu0 %v1728
        %2519 = vmatprep.subr.bf16.mxu0 %v1737
        %2520 = vmatpush1.bf16.msra.mxu0 %v1736
        %2521 = vmatprep.subr.bf16.mxu0 %v1745
        %2522 = vmatpush1.bf16.msra.mxu0 %v1744
        %2523 = vmatprep.subr.bf16.mxu0 %v1753
        %2524 = vmatpush1.bf16.msra.mxu0 %v1752
        %2525 = vmatprep.subr.bf16.mxu0 %v1761
        %2526 = vmatpush1.bf16.msra.mxu0 %v1760
        %2527 = vmatprep.mubr.bf16.mxu0 %v2368
        %2528 = vmatmul.mubr.bf16.gmra.mrb[0].mxu0 %v2365
        %v2529 = vpop.f32.mrb[0].mxu0
        %v2530 = vadd.f32 0.0, %v2529
        %v2531 = vpop.f32.mrb[0].mxu0
        %v2532 = vadd.f32 0.0, %v2531
        %v2533 = vpop.f32.mrb[0].mxu0
        %v2534 = vpop.f32.mrb[0].mxu0
        %2535 = vdwg.mxu0
        %v2544 = vrot.slane %v2407, 6
        %v2545 = vrot.slane %v2409, 6
        %v2546 = vrot.slane %v2448, 6
        %v2547 = vrot.slane %v2450, 6
        %v2548 = vrot.slane %v2489, 6
        %v2549 = vrot.slane %v2491, 6
        %v2550 = vrot.slane %v2530, 6
        %v2551 = vrot.slane %v2532, 6
        %v2560 = vadd.f32 %v1121, %v2544
        %v2561 = vadd.f32 %v1123, %v2545
        %v2562 = vadd.f32 %v1162, %v2546
        %v2563 = vadd.f32 %v1164, %v2547
        %v2564 = vadd.f32 %v1203, %v2548
        %v2565 = vadd.f32 %v1205, %v2549
        %v2566 = vadd.f32 %v1244, %v2550
        %v2567 = vadd.f32 %v1246, %v2551
        %v2568 = vxor.u32 %v2560, 2147483648
        %v2569 = vxor.u32 %v2561, 2147483648
        %v2570 = vmul.f32 %v2568, 1.442695
        %v2571 = vpow.pop %v2570
        %v2572 = vmul.f32 %v2569, 1.442695
        %v2573 = vpow.pop %v2572
        %v2574 = vadd.f32 %v2571, 1.0
        %v2575 = vadd.f32 %v2573, 1.0
        %v2576 = vrcp.pop %v2574
        %v2577 = vmul.f32 1.0, %v2576
        %v2578 = vrcp.pop %v2575
        %v2579 = vmul.f32 1.0, %v2578
        %v2580 = vxor.u32 %v2562, 2147483648
        %v2581 = vxor.u32 %v2563, 2147483648
        %v2582 = vmul.f32 %v2580, 1.442695
        %v2583 = vpow.pop %v2582
        %v2584 = vmul.f32 %v2581, 1.442695
        %v2585 = vpow.pop %v2584
        %v2586 = vadd.f32 %v2583, 1.0
        %v2587 = vadd.f32 %v2585, 1.0
        %v2588 = vrcp.pop %v2586
        %v2589 = vmul.f32 1.0, %v2588
        %v2590 = vrcp.pop %v2587
        %v2591 = vmul.f32 1.0, %v2590
        %v2592 = vtanh.pop %v2564
        %v2593 = vtanh.pop %v2565
        %v2594 = vxor.u32 %v2566, 2147483648
        %v2595 = vxor.u32 %v2567, 2147483648
        %v2596 = vmul.f32 %v2594, 1.442695
        %v2597 = vpow.pop %v2596
        %v2598 = vmul.f32 %v2595, 1.442695
        %v2599 = vpow.pop %v2598
        %v2600 = vadd.f32 %v2597, 1.0
        %v2601 = vadd.f32 %v2599, 1.0
        %v2602 = vrcp.pop %v2600
        %v2603 = vmul.f32 1.0, %v2602
        %v2604 = vrcp.pop %v2601
        %v2605 = vmul.f32 1.0, %v2604
        %v2608 = vrot.slane %v2356, 7
        %v2609 = vrot.slane %v2357, 7
        %v2612 = vmul.f32 %v2589, %v2608
        %v2613 = vmul.f32 %v2591, %v2609
        %v2614 = vmul.f32 %v2577, %v2592
        %v2615 = vmul.f32 %v2579, %v2593
        %v2616 = vadd.f32 %v2612, %v2614
        %v2617 = vadd.f32 %v2613, %v2615
        %v2618 = vtanh.pop %v2616
        %v2619 = vtanh.pop %v2617
        %v2620 = vmul.f32 %v2603, %v2618
        %v2621 = vmul.f32 %v2605, %v2619
        %v2622 = vpack.c.bf16 %v2620, %v2620
        %v2623 = vpack.c.bf16 %v2621, %v2621
        %v2626 = vrot.slane %v2622, 1
        %v2627 = vrot.slane %v2623, 1
        %2630 = vmatprep.subr.bf16.mxu0 %v1635
        %2631 = vmatpush1.bf16.msra.mxu0 %v1634
        %2632 = vmatprep.subr.bf16.mxu0 %v1643
        %2633 = vmatpush1.bf16.msra.mxu0 %v1642
        %2634 = vmatprep.subr.bf16.mxu0 %v1651
        %2635 = vmatpush1.bf16.msra.mxu0 %v1650
        %2636 = vmatprep.subr.bf16.mxu0 %v1659
        %2637 = vmatpush1.bf16.msra.mxu0 %v1658
        %2638 = vmatprep.subr.bf16.mxu0 %v1667
        %2639 = vmatpush1.bf16.msra.mxu0 %v1666
        %2640 = vmatprep.subr.bf16.mxu0 %v1675
        %2641 = vmatpush1.bf16.msra.mxu0 %v1674
        %2642 = vmatprep.subr.bf16.mxu0 %v1683
        %2643 = vmatpush1.bf16.msra.mxu0 %v1682
        %2644 = vmatprep.subr.bf16.mxu0 %v1691
        %2645 = vmatpush1.bf16.msra.mxu0 %v1690
        %2646 = vmatprep.subr.bf16.mxu0 %v1699
        %2647 = vmatpush1.bf16.msra.mxu0 %v1698
        %2648 = vmatprep.subr.bf16.mxu0 %v1707
        %2649 = vmatpush1.bf16.msra.mxu0 %v1706
        %2650 = vmatprep.subr.bf16.mxu0 %v1715
        %2651 = vmatpush1.bf16.msra.mxu0 %v1714
        %2652 = vmatprep.subr.bf16.mxu0 %v1723
        %2653 = vmatpush1.bf16.msra.mxu0 %v1722
        %2654 = vmatprep.subr.bf16.mxu0 %v1731
        %2655 = vmatpush1.bf16.msra.mxu0 %v1730
        %2656 = vmatprep.subr.bf16.mxu0 %v1739
        %2657 = vmatpush1.bf16.msra.mxu0 %v1738
        %2658 = vmatprep.subr.bf16.mxu0 %v1747
        %2659 = vmatpush1.bf16.msra.mxu0 %v1746
        %2660 = vmatprep.subr.bf16.mxu0 %v1755
        %2661 = vmatpush1.bf16.msra.mxu0 %v1754
        %2662 = vmatprep.mubr.bf16.mxu0 %v2627
        %2663 = vmatmul.mubr.bf16.gmra.mrb[0].mxu0 %v2626
        %v2664 = vpop.f32.mrb[0].mxu0
        %v2665 = vadd.f32 0.0, %v2664
        %v2666 = vpop.f32.mrb[0].mxu0
        %v2667 = vadd.f32 0.0, %v2666
        %v2668 = vpop.f32.mrb[0].mxu0
        %v2669 = vpop.f32.mrb[0].mxu0
        %2670 = vdwg.mxu0
        %2671 = vmatprep.subr.bf16.mxu0 %v1637
        %2672 = vmatpush1.bf16.msra.mxu0 %v1636
        %2673 = vmatprep.subr.bf16.mxu0 %v1645
        %2674 = vmatpush1.bf16.msra.mxu0 %v1644
        %2675 = vmatprep.subr.bf16.mxu0 %v1653
        %2676 = vmatpush1.bf16.msra.mxu0 %v1652
        %2677 = vmatprep.subr.bf16.mxu0 %v1661
        %2678 = vmatpush1.bf16.msra.mxu0 %v1660
        %2679 = vmatprep.subr.bf16.mxu0 %v1669
        %2680 = vmatpush1.bf16.msra.mxu0 %v1668
        %2681 = vmatprep.subr.bf16.mxu0 %v1677
        %2682 = vmatpush1.bf16.msra.mxu0 %v1676
        %2683 = vmatprep.subr.bf16.mxu0 %v1685
        %2684 = vmatpush1.bf16.msra.mxu0 %v1684
        %2685 = vmatprep.subr.bf16.mxu0 %v1693
        %2686 = vmatpush1.bf16.msra.mxu0 %v1692
        %2687 = vmatprep.subr.bf16.mxu0 %v1701
        %2688 = vmatpush1.bf16.msra.mxu0 %v1700
        %2689 = vmatprep.subr.bf16.mxu0 %v1709
        %2690 = vmatpush1.bf16.msra.mxu0 %v1708
        %2691 = vmatprep.subr.bf16.mxu0 %v1717
        %2692 = vmatpush1.bf16.msra.mxu0 %v1716
        %2693 = vmatprep.subr.bf16.mxu0 %v1725
        %2694 = vmatpush1.bf16.msra.mxu0 %v1724
        %2695 = vmatprep.subr.bf16.mxu0 %v1733
        %2696 = vmatpush1.bf16.msra.mxu0 %v1732
        %2697 = vmatprep.subr.bf16.mxu0 %v1741
        %2698 = vmatpush1.bf16.msra.mxu0 %v1740
        %2699 = vmatprep.subr.bf16.mxu0 %v1749
        %2700 = vmatpush1.bf16.msra.mxu0 %v1748
        %2701 = vmatprep.subr.bf16.mxu0 %v1757
        %2702 = vmatpush1.bf16.msra.mxu0 %v1756
        %2703 = vmatprep.mubr.bf16.mxu0 %v2627
        %2704 = vmatmul.mubr.bf16.gmra.mrb[0].mxu0 %v2626
        %v2705 = vpop.f32.mrb[0].mxu0
        %v2706 = vadd.f32 0.0, %v2705
        %v2707 = vpop.f32.mrb[0].mxu0
        %v2708 = vadd.f32 0.0, %v2707
        %v2709 = vpop.f32.mrb[0].mxu0
        %v2710 = vpop.f32.mrb[0].mxu0
        %2711 = vdwg.mxu0
        %2712 = vmatprep.subr.bf16.mxu0 %v1639
        %2713 = vmatpush1.bf16.msra.mxu0 %v1638
        %2714 = vmatprep.subr.bf16.mxu0 %v1647
        %2715 = vmatpush1.bf16.msra.mxu0 %v1646
        %2716 = vmatprep.subr.bf16.mxu0 %v1655
        %2717 = vmatpush1.bf16.msra.mxu0 %v1654
        %2718 = vmatprep.subr.bf16.mxu0 %v1663
        %2719 = vmatpush1.bf16.msra.mxu0 %v1662
        %2720 = vmatprep.subr.bf16.mxu0 %v1671
        %2721 = vmatpush1.bf16.msra.mxu0 %v1670
        %2722 = vmatprep.subr.bf16.mxu0 %v1679
        %2723 = vmatpush1.bf16.msra.mxu0 %v1678
        %2724 = vmatprep.subr.bf16.mxu0 %v1687
        %2725 = vmatpush1.bf16.msra.mxu0 %v1686
        %2726 = vmatprep.subr.bf16.mxu0 %v1695
        %2727 = vmatpush1.bf16.msra.mxu0 %v1694
        %2728 = vmatprep.subr.bf16.mxu0 %v1703
        %2729 = vmatpush1.bf16.msra.mxu0 %v1702
        %2730 = vmatprep.subr.bf16.mxu0 %v1711
        %2731 = vmatpush1.bf16.msra.mxu0 %v1710
        %2732 = vmatprep.subr.bf16.mxu0 %v1719
        %2733 = vmatpush1.bf16.msra.mxu0 %v1718
        %2734 = vmatprep.subr.bf16.mxu0 %v1727
        %2735 = vmatpush1.bf16.msra.mxu0 %v1726
        %2736 = vmatprep.subr.bf16.mxu0 %v1735
        %2737 = vmatpush1.bf16.msra.mxu0 %v1734
        %2738 = vmatprep.subr.bf16.mxu0 %v1743
        %2739 = vmatpush1.bf16.msra.mxu0 %v1742
        %2740 = vmatprep.subr.bf16.mxu0 %v1751
        %2741 = vmatpush1.bf16.msra.mxu0 %v1750
        %2742 = vmatprep.subr.bf16.mxu0 %v1759
        %2743 = vmatpush1.bf16.msra.mxu0 %v1758
        %2744 = vmatprep.mubr.bf16.mxu0 %v2627
        %2745 = vmatmul.mubr.bf16.gmra.mrb[0].mxu0 %v2626
        %v2746 = vpop.f32.mrb[0].mxu0
        %v2747 = vadd.f32 0.0, %v2746
        %v2748 = vpop.f32.mrb[0].mxu0
        %v2749 = vadd.f32 0.0, %v2748
        %v2750 = vpop.f32.mrb[0].mxu0
        %v2751 = vpop.f32.mrb[0].mxu0
        %2752 = vdwg.mxu0
        %2753 = vmatprep.subr.bf16.mxu0 %v1641
        %2754 = vmatpush1.bf16.msra.mxu0 %v1640
        %2755 = vmatprep.subr.bf16.mxu0 %v1649
        %2756 = vmatpush1.bf16.msra.mxu0 %v1648
        %2757 = vmatprep.subr.bf16.mxu0 %v1657
        %2758 = vmatpush1.bf16.msra.mxu0 %v1656
        %2759 = vmatprep.subr.bf16.mxu0 %v1665
        %2760 = vmatpush1.bf16.msra.mxu0 %v1664
        %2761 = vmatprep.subr.bf16.mxu0 %v1673
        %2762 = vmatpush1.bf16.msra.mxu0 %v1672
        %2763 = vmatprep.subr.bf16.mxu0 %v1681
        %2764 = vmatpush1.bf16.msra.mxu0 %v1680
        %2765 = vmatprep.subr.bf16.mxu0 %v1689
        %2766 = vmatpush1.bf16.msra.mxu0 %v1688
        %2767 = vmatprep.subr.bf16.mxu0 %v1697
        %2768 = vmatpush1.bf16.msra.mxu0 %v1696
        %2769 = vmatprep.subr.bf16.mxu0 %v1705
        %2770 = vmatpush1.bf16.msra.mxu0 %v1704
        %2771 = vmatprep.subr.bf16.mxu0 %v1713
        %2772 = vmatpush1.bf16.msra.mxu0 %v1712
        %2773 = vmatprep.subr.bf16.mxu0 %v1721
        %2774 = vmatpush1.bf16.msra.mxu0 %v1720
        %2775 = vmatprep.subr.bf16.mxu0 %v1729
        %2776 = vmatpush1.bf16.msra.mxu0 %v1728
        %2777 = vmatprep.subr.bf16.mxu0 %v1737
        %2778 = vmatpush1.bf16.msra.mxu0 %v1736
        %2779 = vmatprep.subr.bf16.mxu0 %v1745
        %2780 = vmatpush1.bf16.msra.mxu0 %v1744
        %2781 = vmatprep.subr.bf16.mxu0 %v1753
        %2782 = vmatpush1.bf16.msra.mxu0 %v1752
        %2783 = vmatprep.subr.bf16.mxu0 %v1761
        %2784 = vmatpush1.bf16.msra.mxu0 %v1760
        %2785 = vmatprep.mubr.bf16.mxu0 %v2627
        %2786 = vmatmul.mubr.bf16.gmra.mrb[0].mxu0 %v2626
        %v2787 = vpop.f32.mrb[0].mxu0
        %v2788 = vadd.f32 0.0, %v2787
        %v2789 = vpop.f32.mrb[0].mxu0
        %v2790 = vadd.f32 0.0, %v2789
        %v2791 = vpop.f32.mrb[0].mxu0
        %v2792 = vpop.f32.mrb[0].mxu0
        %2793 = vdwg.mxu0
        %v2802 = vrot.slane %v2665, 5
        %v2803 = vrot.slane %v2667, 5
        %v2804 = vrot.slane %v2706, 5
        %v2805 = vrot.slane %v2708, 5
        %v2806 = vrot.slane %v2747, 5
        %v2807 = vrot.slane %v2749, 5
        %v2808 = vrot.slane %v2788, 5
        %v2809 = vrot.slane %v2790, 5
        %v2818 = vadd.f32 %v1121, %v2802
        %v2819 = vadd.f32 %v1123, %v2803
        %v2820 = vadd.f32 %v1162, %v2804
        %v2821 = vadd.f32 %v1164, %v2805
        %v2822 = vadd.f32 %v1203, %v2806
        %v2823 = vadd.f32 %v1205, %v2807
        %v2824 = vadd.f32 %v1244, %v2808
        %v2825 = vadd.f32 %v1246, %v2809
        %v2826 = vxor.u32 %v2818, 2147483648
        %v2827 = vxor.u32 %v2819, 2147483648
        %v2828 = vmul.f32 %v2826, 1.442695
        %v2829 = vpow.pop %v2828
        %v2830 = vmul.f32 %v2827, 1.442695
        %v2831 = vpow.pop %v2830
        %v2832 = vadd.f32 %v2829, 1.0
        %v2833 = vadd.f32 %v2831, 1.0
        %v2834 = vrcp.pop %v2832
        %v2835 = vmul.f32 1.0, %v2834
        %v2836 = vrcp.pop %v2833
        %v2837 = vmul.f32 1.0, %v2836
        %v2838 = vxor.u32 %v2820, 2147483648
        %v2839 = vxor.u32 %v2821, 2147483648
        %v2840 = vmul.f32 %v2838, 1.442695
        %v2841 = vpow.pop %v2840
        %v2842 = vmul.f32 %v2839, 1.442695
        %v2843 = vpow.pop %v2842
        %v2844 = vadd.f32 %v2841, 1.0
        %v2845 = vadd.f32 %v2843, 1.0
        %v2846 = vrcp.pop %v2844
        %v2847 = vmul.f32 1.0, %v2846
        %v2848 = vrcp.pop %v2845
        %v2849 = vmul.f32 1.0, %v2848
        %v2850 = vtanh.pop %v2822
        %v2851 = vtanh.pop %v2823
        %v2852 = vxor.u32 %v2824, 2147483648
        %v2853 = vxor.u32 %v2825, 2147483648
        %v2854 = vmul.f32 %v2852, 1.442695
        %v2855 = vpow.pop %v2854
        %v2856 = vmul.f32 %v2853, 1.442695
        %v2857 = vpow.pop %v2856
        %v2858 = vadd.f32 %v2855, 1.0
        %v2859 = vadd.f32 %v2857, 1.0
        %v2860 = vrcp.pop %v2858
        %v2861 = vmul.f32 1.0, %v2860
        %v2862 = vrcp.pop %v2859
        %v2863 = vmul.f32 1.0, %v2862
        %v2866 = vrot.slane %v2616, 7
        %v2867 = vrot.slane %v2617, 7
        %v2870 = vmul.f32 %v2847, %v2866
        %v2871 = vmul.f32 %v2849, %v2867
        %v2872 = vmul.f32 %v2835, %v2850
        %v2873 = vmul.f32 %v2837, %v2851
        %v2874 = vadd.f32 %v2870, %v2872
        %v2875 = vadd.f32 %v2871, %v2873
        %v2876 = vtanh.pop %v2874
        %v2877 = vtanh.pop %v2875
        %v2878 = vmul.f32 %v2861, %v2876
        %v2879 = vmul.f32 %v2863, %v2877
        %v2880 = vpack.c.bf16 %v2878, %v2878
        %v2881 = vpack.c.bf16 %v2879, %v2879
        %v2883 = vshrl.u32 %v2880, 16
        %v2885 = vrot.slane %v2883, 1
        %v2887 = vshrl.u32 %v2881, 16
        %v2889 = vrot.slane %v2887, 1
        %2892 = vmatprep.subr.bf16.mxu0 %v1635
        %2893 = vmatpush1.bf16.msra.mxu0 %v1634
        %2894 = vmatprep.subr.bf16.mxu0 %v1643
        %2895 = vmatpush1.bf16.msra.mxu0 %v1642
        %2896 = vmatprep.subr.bf16.mxu0 %v1651
        %2897 = vmatpush1.bf16.msra.mxu0 %v1650
        %2898 = vmatprep.subr.bf16.mxu0 %v1659
        %2899 = vmatpush1.bf16.msra.mxu0 %v1658
        %2900 = vmatprep.subr.bf16.mxu0 %v1667
        %2901 = vmatpush1.bf16.msra.mxu0 %v1666
        %2902 = vmatprep.subr.bf16.mxu0 %v1675
        %2903 = vmatpush1.bf16.msra.mxu0 %v1674
        %2904 = vmatprep.subr.bf16.mxu0 %v1683
        %2905 = vmatpush1.bf16.msra.mxu0 %v1682
        %2906 = vmatprep.subr.bf16.mxu0 %v1691
        %2907 = vmatpush1.bf16.msra.mxu0 %v1690
        %2908 = vmatprep.subr.bf16.mxu0 %v1699
        %2909 = vmatpush1.bf16.msra.mxu0 %v1698
        %2910 = vmatprep.subr.bf16.mxu0 %v1707
        %2911 = vmatpush1.bf16.msra.mxu0 %v1706
        %2912 = vmatprep.subr.bf16.mxu0 %v1715
        %2913 = vmatpush1.bf16.msra.mxu0 %v1714
        %2914 = vmatprep.subr.bf16.mxu0 %v1723
        %2915 = vmatpush1.bf16.msra.mxu0 %v1722
        %2916 = vmatprep.subr.bf16.mxu0 %v1731
        %2917 = vmatpush1.bf16.msra.mxu0 %v1730
        %2918 = vmatprep.subr.bf16.mxu0 %v1739
        %2919 = vmatpush1.bf16.msra.mxu0 %v1738
        %2920 = vmatprep.subr.bf16.mxu0 %v1747
        %2921 = vmatpush1.bf16.msra.mxu0 %v1746
        %2922 = vmatprep.subr.bf16.mxu0 %v1755
        %2923 = vmatpush1.bf16.msra.mxu0 %v1754
        %2924 = vmatprep.mubr.bf16.mxu0 %v2889
        %2925 = vmatmul.mubr.bf16.gmra.mrb[0].mxu0 %v2885
        %v2926 = vpop.f32.mrb[0].mxu0
        %v2927 = vadd.f32 0.0, %v2926
        %v2928 = vpop.f32.mrb[0].mxu0
        %v2929 = vadd.f32 0.0, %v2928
        %v2930 = vpop.f32.mrb[0].mxu0
        %v2931 = vpop.f32.mrb[0].mxu0
        %2932 = vdwg.mxu0
        %2933 = vmatprep.subr.bf16.mxu0 %v1637
        %2934 = vmatpush1.bf16.msra.mxu0 %v1636
        %2935 = vmatprep.subr.bf16.mxu0 %v1645
        %2936 = vmatpush1.bf16.msra.mxu0 %v1644
        %2937 = vmatprep.subr.bf16.mxu0 %v1653
        %2938 = vmatpush1.bf16.msra.mxu0 %v1652
        %2939 = vmatprep.subr.bf16.mxu0 %v1661
        %2940 = vmatpush1.bf16.msra.mxu0 %v1660
        %2941 = vmatprep.subr.bf16.mxu0 %v1669
        %2942 = vmatpush1.bf16.msra.mxu0 %v1668
        %2943 = vmatprep.subr.bf16.mxu0 %v1677
        %2944 = vmatpush1.bf16.msra.mxu0 %v1676
        %2945 = vmatprep.subr.bf16.mxu0 %v1685
        %2946 = vmatpush1.bf16.msra.mxu0 %v1684
        %2947 = vmatprep.subr.bf16.mxu0 %v1693
        %2948 = vmatpush1.bf16.msra.mxu0 %v1692
        %2949 = vmatprep.subr.bf16.mxu0 %v1701
        %2950 = vmatpush1.bf16.msra.mxu0 %v1700
        %2951 = vmatprep.subr.bf16.mxu0 %v1709
        %2952 = vmatpush1.bf16.msra.mxu0 %v1708
        %2953 = vmatprep.subr.bf16.mxu0 %v1717
        %2954 = vmatpush1.bf16.msra.mxu0 %v1716
        %2955 = vmatprep.subr.bf16.mxu0 %v1725
        %2956 = vmatpush1.bf16.msra.mxu0 %v1724
        %2957 = vmatprep.subr.bf16.mxu0 %v1733
        %2958 = vmatpush1.bf16.msra.mxu0 %v1732
        %2959 = vmatprep.subr.bf16.mxu0 %v1741
        %2960 = vmatpush1.bf16.msra.mxu0 %v1740
        %2961 = vmatprep.subr.bf16.mxu0 %v1749
        %2962 = vmatpush1.bf16.msra.mxu0 %v1748
        %2963 = vmatprep.subr.bf16.mxu0 %v1757
        %2964 = vmatpush1.bf16.msra.mxu0 %v1756
        %2965 = vmatprep.mubr.bf16.mxu0 %v2889
        %2966 = vmatmul.mubr.bf16.gmra.mrb[0].mxu0 %v2885
        %v2967 = vpop.f32.mrb[0].mxu0
        %v2968 = vadd.f32 0.0, %v2967
        %v2969 = vpop.f32.mrb[0].mxu0
        %v2970 = vadd.f32 0.0, %v2969
        %v2971 = vpop.f32.mrb[0].mxu0
        %v2972 = vpop.f32.mrb[0].mxu0
        %2973 = vdwg.mxu0
        %2974 = vmatprep.subr.bf16.mxu0 %v1639
        %2975 = vmatpush1.bf16.msra.mxu0 %v1638
        %2976 = vmatprep.subr.bf16.mxu0 %v1647
        %2977 = vmatpush1.bf16.msra.mxu0 %v1646
        %2978 = vmatprep.subr.bf16.mxu0 %v1655
        %2979 = vmatpush1.bf16.msra.mxu0 %v1654
        %2980 = vmatprep.subr.bf16.mxu0 %v1663
        %2981 = vmatpush1.bf16.msra.mxu0 %v1662
        %2982 = vmatprep.subr.bf16.mxu0 %v1671
        %2983 = vmatpush1.bf16.msra.mxu0 %v1670
        %2984 = vmatprep.subr.bf16.mxu0 %v1679
        %2985 = vmatpush1.bf16.msra.mxu0 %v1678
        %2986 = vmatprep.subr.bf16.mxu0 %v1687
        %2987 = vmatpush1.bf16.msra.mxu0 %v1686
        %2988 = vmatprep.subr.bf16.mxu0 %v1695
        %2989 = vmatpush1.bf16.msra.mxu0 %v1694
        %2990 = vmatprep.subr.bf16.mxu0 %v1703
        %2991 = vmatpush1.bf16.msra.mxu0 %v1702
        %2992 = vmatprep.subr.bf16.mxu0 %v1711
        %2993 = vmatpush1.bf16.msra.mxu0 %v1710
        %2994 = vmatprep.subr.bf16.mxu0 %v1719
        %2995 = vmatpush1.bf16.msra.mxu0 %v1718
        %2996 = vmatprep.subr.bf16.mxu0 %v1727
        %2997 = vmatpush1.bf16.msra.mxu0 %v1726
        %2998 = vmatprep.subr.bf16.mxu0 %v1735
        %2999 = vmatpush1.bf16.msra.mxu0 %v1734
        %3000 = vmatprep.subr.bf16.mxu0 %v1743
        %3001 = vmatpush1.bf16.msra.mxu0 %v1742
        %3002 = vmatprep.subr.bf16.mxu0 %v1751
        %3003 = vmatpush1.bf16.msra.mxu0 %v1750
        %3004 = vmatprep.subr.bf16.mxu0 %v1759
        %3005 = vmatpush1.bf16.msra.mxu0 %v1758
        %3006 = vmatprep.mubr.bf16.mxu0 %v2889
        %3007 = vmatmul.mubr.bf16.gmra.mrb[0].mxu0 %v2885
        %v3008 = vpop.f32.mrb[0].mxu0
        %v3009 = vadd.f32 0.0, %v3008
        %v3010 = vpop.f32.mrb[0].mxu0
        %v3011 = vadd.f32 0.0, %v3010
        %v3012 = vpop.f32.mrb[0].mxu0
        %v3013 = vpop.f32.mrb[0].mxu0
        %3014 = vdwg.mxu0
        %3015 = vmatprep.subr.bf16.mxu0 %v1641
        %3016 = vmatpush1.bf16.msra.mxu0 %v1640
        %3017 = vmatprep.subr.bf16.mxu0 %v1649
        %3018 = vmatpush1.bf16.msra.mxu0 %v1648
        %3019 = vmatprep.subr.bf16.mxu0 %v1657
        %3020 = vmatpush1.bf16.msra.mxu0 %v1656
        %3021 = vmatprep.subr.bf16.mxu0 %v1665
        %3022 = vmatpush1.bf16.msra.mxu0 %v1664
        %3023 = vmatprep.subr.bf16.mxu0 %v1673
        %3024 = vmatpush1.bf16.msra.mxu0 %v1672
        %3025 = vmatprep.subr.bf16.mxu0 %v1681
        %3026 = vmatpush1.bf16.msra.mxu0 %v1680
        %3027 = vmatprep.subr.bf16.mxu0 %v1689
        %3028 = vmatpush1.bf16.msra.mxu0 %v1688
        %3029 = vmatprep.subr.bf16.mxu0 %v1697
        %3030 = vmatpush1.bf16.msra.mxu0 %v1696
        %3031 = vmatprep.subr.bf16.mxu0 %v1705
        %3032 = vmatpush1.bf16.msra.mxu0 %v1704
        %3033 = vmatprep.subr.bf16.mxu0 %v1713
        %3034 = vmatpush1.bf16.msra.mxu0 %v1712
        %3035 = vmatprep.subr.bf16.mxu0 %v1721
        %3036 = vmatpush1.bf16.msra.mxu0 %v1720
        %3037 = vmatprep.subr.bf16.mxu0 %v1729
        %3038 = vmatpush1.bf16.msra.mxu0 %v1728
        %3039 = vmatprep.subr.bf16.mxu0 %v1737
        %3040 = vmatpush1.bf16.msra.mxu0 %v1736
        %3041 = vmatprep.subr.bf16.mxu0 %v1745
        %3042 = vmatpush1.bf16.msra.mxu0 %v1744
        %3043 = vmatprep.subr.bf16.mxu0 %v1753
        %3044 = vmatpush1.bf16.msra.mxu0 %v1752
        %3045 = vmatprep.subr.bf16.mxu0 %v1761
        %3046 = vmatpush1.bf16.msra.mxu0 %v1760
        %3047 = vmatprep.mubr.bf16.mxu0 %v2889
        %3048 = vmatmul.mubr.bf16.gmra.mrb[0].mxu0 %v2885
        %v3049 = vpop.f32.mrb[0].mxu0
        %v3050 = vadd.f32 0.0, %v3049
        %v3051 = vpop.f32.mrb[0].mxu0
        %v3052 = vadd.f32 0.0, %v3051
        %v3053 = vpop.f32.mrb[0].mxu0
        %v3054 = vpop.f32.mrb[0].mxu0
        %3055 = vdwg.mxu0
        %v3064 = vrot.slane %v2927, 4
        %v3065 = vrot.slane %v2929, 4
        %v3066 = vrot.slane %v2968, 4
        %v3067 = vrot.slane %v2970, 4
        %v3068 = vrot.slane %v3009, 4
        %v3069 = vrot.slane %v3011, 4
        %v3070 = vrot.slane %v3050, 4
        %v3071 = vrot.slane %v3052, 4
        %v3080 = vadd.f32 %v1121, %v3064
        %v3081 = vadd.f32 %v1123, %v3065
        %v3082 = vadd.f32 %v1162, %v3066
        %v3083 = vadd.f32 %v1164, %v3067
        %v3084 = vadd.f32 %v1203, %v3068
        %v3085 = vadd.f32 %v1205, %v3069
        %v3086 = vadd.f32 %v1244, %v3070
        %v3087 = vadd.f32 %v1246, %v3071
        %v3088 = vxor.u32 %v3080, 2147483648
        %v3089 = vxor.u32 %v3081, 2147483648
        %v3090 = vmul.f32 %v3088, 1.442695
        %v3091 = vpow.pop %v3090
        %v3092 = vmul.f32 %v3089, 1.442695
        %v3093 = vpow.pop %v3092
        %v3094 = vadd.f32 %v3091, 1.0
        %v3095 = vadd.f32 %v3093, 1.0
        %v3096 = vrcp.pop %v3094
        %v3097 = vmul.f32 1.0, %v3096
        %v3098 = vrcp.pop %v3095
        %v3099 = vmul.f32 1.0, %v3098
        %v3100 = vxor.u32 %v3082, 2147483648
        %v3101 = vxor.u32 %v3083, 2147483648
        %v3102 = vmul.f32 %v3100, 1.442695
        %v3103 = vpow.pop %v3102
        %v3104 = vmul.f32 %v3101, 1.442695
        %v3105 = vpow.pop %v3104
        %v3106 = vadd.f32 %v3103, 1.0
        %v3107 = vadd.f32 %v3105, 1.0
        %v3108 = vrcp.pop %v3106
        %v3109 = vmul.f32 1.0, %v3108
        %v3110 = vrcp.pop %v3107
        %v3111 = vmul.f32 1.0, %v3110
        %v3112 = vtanh.pop %v3084
        %v3113 = vtanh.pop %v3085
        %v3114 = vxor.u32 %v3086, 2147483648
        %v3115 = vxor.u32 %v3087, 2147483648
        %v3116 = vmul.f32 %v3114, 1.442695
        %v3117 = vpow.pop %v3116
        %v3118 = vmul.f32 %v3115, 1.442695
        %v3119 = vpow.pop %v3118
        %v3120 = vadd.f32 %v3117, 1.0
        %v3121 = vadd.f32 %v3119, 1.0
        %v3122 = vrcp.pop %v3120
        %v3123 = vmul.f32 1.0, %v3122
        %v3124 = vrcp.pop %v3121
        %v3125 = vmul.f32 1.0, %v3124
        %v3128 = vrot.slane %v2874, 7
        %v3129 = vrot.slane %v2875, 7
        %v3132 = vmul.f32 %v3109, %v3128
        %v3133 = vmul.f32 %v3111, %v3129
        %v3134 = vmul.f32 %v3097, %v3112
        %v3135 = vmul.f32 %v3099, %v3113
        %v3136 = vadd.f32 %v3132, %v3134
        %v3137 = vadd.f32 %v3133, %v3135
        %v3138 = vtanh.pop %v3136
        %v3139 = vtanh.pop %v3137
        %v3140 = vmul.f32 %v3123, %v3138
        %v3141 = vmul.f32 %v3125, %v3139
        %vm3142 = vcmask 1040384
        %v3143 = vsel %vm3142, %v2108, %v2360
        %v3144 = vsel %vm3142, %v2109, %v2361
        %vm3145 = vcmask 1041408
        %v3146 = vsel %vm3145, %v3143, %v2620
        %v3147 = vsel %vm3145, %v3144, %v2621
        %vm3148 = vcmask 1042432
        %v3149 = vsel %vm3148, %v3146, %v2878
        %v3150 = vsel %vm3148, %v3147, %v2879
        %vm3151 = vcmask 1043456
        %v3152 = vsel %vm3151, %v3149, %v3140
        %v3153 = vsel %vm3151, %v3150, %v3141
        %p3154 = scmp.eq.s32.totalorder %s15, 2
        %p3155 = por %p178, %p3154
        // Predicated region
        $region37: #{_lambda_.1} parent=31 // pred_check
          %p3156 = pneg %p3155
        $region38: #{_lambda_.1} parent=31 // pred_check_branch
          %3158 = sbr.rel (%p3156) target = $region40
        $region39: #{_lambda_.1} parent=31 // pred_region
          %3159 = vst [vmem:[#allocation2] sm:$0x1f] %v3152
          %3160 = vst [vmem:[#allocation2 + $0x8] sm:$0x1f] %v3153
        $region40: #{_lambda_.1} parent=31 // pred_fallthru
          _
        %p3161 = scmp.eq.s32.totalorder %s15, 1
        // Predicated region
        $region41: #{_lambda_.1} parent=31 // pred_check
          %p3162 = pneg %p3161
        $region42: #{_lambda_.1} parent=31 // pred_check_branch
          %3164 = sbr.rel (%p3162) target = $region44
        $region43: #{_lambda_.1} parent=31 // pred_region
          %v3165 = vxor.u32 %v3152, 2147483648
          %v3166 = vxor.u32 %v3153, 2147483648
          %v3167 = vmul.f32 %v3165, 1.442695
          %v3168 = vpow.pop %v3167
          %v3169 = vmul.f32 %v3166, 1.442695
          %v3170 = vpow.pop %v3169
          %v3171 = vadd.f32 %v3168, 1.0
          %v3172 = vadd.f32 %v3170, 1.0
          %v3173 = vrcp.pop %v3171
          %v3174 = vmul.f32 1.0, %v3173
          %v3175 = vrcp.pop %v3172
          %v3176 = vmul.f32 1.0, %v3175
          %3177 = vst [vmem:[#allocation2] sm:$0x1f] %v3174
          %3178 = vst [vmem:[#allocation2 + $0x8] sm:$0x1f] %v3176
        $region44: #{_lambda_.1} parent=31 // pred_fallthru
          _
        %p3179 = scmp.eq.s32.totalorder %s15, 3
        // Predicated region
        $region45: #{_lambda_.1} parent=31 // pred_check
          %p3180 = pneg %p3179
        $region46: #{_lambda_.1} parent=31 // pred_check_branch
          %3182 = sbr.rel (%p3180) target = $region48
        $region47: #{_lambda_.1} parent=31 // pred_region
          %v3183 = vxor.u32 %v3152, 2147483648
          %v3184 = vxor.u32 %v3153, 2147483648
          %v3185 = vmul.f32 %v3183, 1.442695
          %v3186 = vpow.pop %v3185
          %v3187 = vmul.f32 %v3184, 1.442695
          %v3188 = vpow.pop %v3187
          %v3189 = vadd.f32 %v3186, 1.0
          %v3190 = vadd.f32 %v3188, 1.0
          %v3191 = vrcp.pop %v3189
          %v3192 = vmul.f32 1.0, %v3191
          %v3193 = vrcp.pop %v3190
          %v3194 = vmul.f32 1.0, %v3193
          %3195 = vst [vmem:[#allocation3] sm:$0x1f] %v3192
          %3196 = vst [vmem:[#allocation3 + $0x8] sm:$0x1f] %v3194
        $region48: #{_lambda_.1} parent=31 // pred_fallthru
          _
        // Predicated region
        $region49: #{_lambda_.1} parent=31 // pred_check
          %p3197 = pneg %p101
        $region50: #{_lambda_.1} parent=31 // pred_check_branch
          %3199 = sbr.rel (%p3197) target = $region52
        $region51: #{_lambda_.1} parent=31 // pred_region
          %s3201 = ssub.s32 256, 256
          %3202 = vsyncadd [#allocation4], %s3201
          %s3204 = sshll.u32 [#allocation3], 4
          %s3205 = int_to_ptr.vmem [resolvable:$true] %s3204
          %3207 = dma.vmem_to_hbm [thread:$0]  %s3205, 256, %s3, [#allocation4]
        $region52: #{_lambda_.1} parent=31 // pred_fallthru
          _
        // Predicated region
        $region53: #{_lambda_.1} parent=31 // pred_check
          %p3208 = pneg %p101
        $region54: #{_lambda_.1} parent=31 // pred_check_branch
          %3210 = sbr.rel (%p3208) target = $region56
        $region55: #{_lambda_.1} parent=31 // pred_region
          %3211 = dma.done [#allocation4], 256
        $region56: #{_lambda_.1} parent=31 // pred_fallthru
          _
      $region32: #{_lambda_.1} parent=5 // pred_fallthru
        _
      %p3212 = scmp.le.s32.totalorder 2, %s10
      // Predicated region
      $region57: #{_lambda_.1} parent=5 // pred_check
        %p3213 = pneg %p3212
      $region58: #{_lambda_.1} parent=5 // pred_check_branch
        %3215 = sbr.rel (%p3213) target = $region60
      $region59: #{_lambda_.1} parent=5 // pred_region
        %s3216 = ssub.s32 %s10, 2
      $region60: #{_lambda_.1} parent=5 // pred_fallthru
        _
    $region6: #{_lambda_.1} parent=1 // loop_footer
      %s14 = sadd.s32 1, %s10
    $region7: #{_lambda_.1} parent=1 // loop_footer_branch
      %9 = sbr.rel target = $region3
    $region8: #{_lambda_.1} parent=1 // loop_exit
      _
    %3217 = vsyncpa [#allocation4], 1
    %s3218 = scalar_lea.sflag [#allocation4], 1
    %3219 = vsyncpa %s3218, 1

</llo_original>
